<compile_context>
chip_gen: v7x
topology: tpu7x:2x2x1
jax: 0.10.0
libtpu: 0.0.40
codegen_flags: <defaults>
</compile_context>

<pallas_src>
import math
from functools import partial
from itertools import product

import numpy as np
import jax
import jax.numpy as jnp
from jax.experimental import pallas as pl
from jax.experimental.pallas import tpu as pltpu

LANES = 128
VMEM_LIMIT = 48 * 1024 * 1024   # fits v7x (64 MiB physical) and v5e/v6e (128 MiB)


def _round_up(x, m):
    return ((x + m - 1) // m) * m


def _pick_tm(m, cap=1024):
    """Row tile: as big as possible (amortize per-step overhead) while keeping
    >= 2 grid steps when m allows it (megacore sharding on v7x)."""
    tm = _round_up(max(1, -(-m // 2)), 128)
    return max(128, min(cap, tm))


# --------------------------- Pallas kernels ---------------------------------

def _matmul_bias_kernel(a_ref, b_ref, bias_ref, o_ref, *, relu):
    acc = jnp.dot(a_ref[...], b_ref[...], preferred_element_type=jnp.float32)
    acc = acc + bias_ref[...]
    if relu:
        acc = jnp.maximum(acc, 0.0)
    o_ref[...] = acc.astype(o_ref.dtype)


def matmul_bias(a, b, bias, *, relu, out_dtype):
    """act(a @ b + bias).  a: (M, K) bf16, b: (K, N) bf16, bias: (1, N) f32."""
    M, K = a.shape
    N = b.shape[1]
    tm = _pick_tm(M, cap=2048)          # small K -> large row tiles are cheap
    return pl.pallas_call(
        partial(_matmul_bias_kernel, relu=relu),
        out_shape=jax.ShapeDtypeStruct((M, N), out_dtype),
        grid=(pl.cdiv(M, tm),),
        in_specs=[
            pl.BlockSpec((tm, K), lambda i: (i, 0)),
            pl.BlockSpec((K, N), lambda i: (0, 0)),    # weights stay resident
            pl.BlockSpec((1, N), lambda i: (0, 0)),
        ],
        out_specs=pl.BlockSpec((tm, N), lambda i: (i, 0)),
        compiler_params=pltpu.CompilerParams(
            dimension_semantics=("parallel",),
            vmem_limit_bytes=VMEM_LIMIT),
    )(a, b, bias)


def _window_max_kernel(*refs):
    o_ref = refs[-1]
    m = refs[0][...]
    for r in refs[1:-1]:
        m = jnp.maximum(m, r[...])
    o_ref[...] = m


def window_max(wins):
    """Elementwise max over a list of identically-shaped (R, 128) arrays."""
    W = len(wins)
    R, L = wins[0].shape
    tm = _pick_tm(R, cap=1024)
    return pl.pallas_call(
        _window_max_kernel,
        out_shape=jax.ShapeDtypeStruct((R, L), wins[0].dtype),
        grid=(pl.cdiv(R, tm),),
        in_specs=[pl.BlockSpec((tm, L), lambda i: (i, 0))] * W,
        out_specs=pl.BlockSpec((tm, L), lambda i: (i, 0)),
        compiler_params=pltpu.CompilerParams(
            dimension_semantics=("parallel",),
            vmem_limit_bytes=VMEM_LIMIT),
    )(*wins)


def _l2norm_kernel(x_ref, w_ref, o_ref, *, eps):
    x = x_ref[...].astype(jnp.float32)
    norm = jnp.sqrt(jnp.sum(x * x, axis=-1, keepdims=True)) + eps
    o_ref[...] = ((x / norm) * w_ref[...]).astype(o_ref.dtype)


@jax.jit
def l2norm_rows(x, weight):
    """Row-wise L2 normalisation over channels * learned per-channel weight."""
    M, C = x.shape
    tm = _pick_tm(M, cap=1024)
    return pl.pallas_call(
        partial(_l2norm_kernel, eps=1e-10),
        out_shape=jax.ShapeDtypeStruct((M, C), x.dtype),
        grid=(pl.cdiv(M, tm),),
        in_specs=[
            pl.BlockSpec((tm, C), lambda i: (i, 0)),
            pl.BlockSpec((1, C), lambda i: (0, 0)),
        ],
        out_specs=pl.BlockSpec((tm, C), lambda i: (i, 0)),
        compiler_params=pltpu.CompilerParams(
            dimension_semantics=("parallel",),
            vmem_limit_bytes=VMEM_LIMIT),
    )(x, weight.reshape(1, C).astype(jnp.float32))


# ----------------------------- layer glue ------------------------------------

@partial(jax.jit, static_argnames=("stride", "padding", "dilation", "relu", "out_f32"))
def _conv2d_impl(x, w, b, *, stride, padding, dilation, relu, out_f32):
    """x: (N, H, W, Cin) NHWC bf16; w: (kh, kw, Cin, Cout) f32; b: (Cout,) f32."""
    N, H, Wd, Cin = x.shape
    kh, kw, _, Cout = w.shape
    Ho = (H + 2 * padding - dilation * (kh - 1) - 1) // stride + 1
    Wo = (Wd + 2 * padding - dilation * (kw - 1) - 1) // stride + 1
    xp = jnp.pad(x, ((0, 0), (padding, padding), (padding, padding), (0, 0)))
    cols = []
    for dh in range(kh):
        for dw in range(kw):
            hs, ws = dh * dilation, dw * dilation
            cols.append(xp[:, hs:hs + stride * (Ho - 1) + 1:stride,
                             ws:ws + stride * (Wo - 1) + 1:stride, :])
    K = kh * kw * Cin
    Kp = _round_up(K, 8)
    if Kp != K:     # fuse the K zero-padding into the concatenate (single write)
        cols.append(jnp.zeros((N, Ho, Wo, Kp - K), x.dtype))
    a = jnp.concatenate(cols, axis=-1).reshape(N * Ho * Wo, Kp)
    wm = w.reshape(K, Cout).astype(jnp.bfloat16)
    if Kp != K:
        wm = jnp.pad(wm, ((0, Kp - K), (0, 0)))
    out_dtype = jnp.float32 if out_f32 else jnp.bfloat16
    y = matmul_bias(a, wm, b.reshape(1, Cout).astype(jnp.float32),
                    relu=relu, out_dtype=out_dtype)
    return y.reshape(N, Ho, Wo, Cout)


def conv2d(x, w, b, *, stride=1, padding=0, dilation=1, relu=True, out_f32=False):
    return _conv2d_impl(x, w, b, stride=stride, padding=padding,
                        dilation=dilation, relu=relu, out_f32=out_f32)


@partial(jax.jit, static_argnames=("kernel", "stride", "padding", "ceil_mode"))
def _maxpool_impl(x, *, kernel, stride, padding, ceil_mode):
    N, H, Wd, C = x.shape

    def out_size(sz):
        eff = sz + 2 * padding - kernel
        return (-(-eff // stride) if ceil_mode else eff // stride) + 1

    Ho, Wo = out_size(H), out_size(Wd)
    need_h = (Ho - 1) * stride + kernel
    need_w = (Wo - 1) * stride + kernel
    xp = jnp.pad(
        x,
        ((0, 0),
         (padding, max(0, need_h - H - padding)),
         (padding, max(0, need_w - Wd - padding)),
         (0, 0)),
        constant_values=-jnp.inf)     # -inf = PyTorch max-pool padding semantics
    Lr = N * Ho * Wo * C
    R = pl.cdiv(Lr, LANES)
    Lp = R * LANES
    wins = []
    for dh in range(kernel):
        for dw in range(kernel):
            s = xp[:, dh:dh + stride * (Ho - 1) + 1:stride,
                     dw:dw + stride * (Wo - 1) + 1:stride, :].reshape(Lr)
            if Lp != Lr:
                s = jnp.pad(s, (0, Lp - Lr))
            wins.append(s.reshape(R, LANES))      # lane-dense layout
    y = window_max(wins)
    return y.reshape(Lp)[:Lr].reshape(N, Ho, Wo, C)


def maxpool2d(x, *, kernel, stride, padding=0, ceil_mode=False):
    return _maxpool_impl(x, kernel=kernel, stride=stride, padding=padding,
                         ceil_mode=ceil_mode)


# ------------------------- model construction --------------------------------

BASE_CFG = [64, 64, 'M', 128, 128, 'M', 256, 256, 256, 'C',
            512, 512, 512, 'M', 512, 512, 512]
EXTRAS_CFG = [256, 'S', 512, 128, 'S', 256, 128, 256, 128, 256]
MBOX = [4, 6, 6, 6, 4, 4]
NUM_CLASSES = 21
CH_DIV = 8              # scale every channel width down by 8 (synthetic model)
VGG_CONV43_IDX = 13     # fused ops covering torch vgg layers [0:23] (relu4_3)

VOC_CFG = {
    'num_classes': 21,
    'feature_maps': [38, 19, 10, 5, 3, 1],
    'min_dim': 300,
    'steps': [8, 16, 32, 64, 100, 300],
    'min_sizes': [30, 60, 111, 162, 213, 264],
    'max_sizes': [60, 111, 162, 213, 264, 315],
    'aspect_ratios': [[2], [2, 3], [2, 3], [2, 3], [2], [2]],
    'variance': [0.1, 0.2],
    'clip': True,
}


def prior_box(cfg):
    mean = []
    image_size = cfg['min_dim']
    for k, f in enumerate(cfg['feature_maps']):
        for i, j in product(range(f), repeat=2):
            f_k = image_size / cfg['steps'][k]
            cx = (j + 0.5) / f_k
            cy = (i + 0.5) / f_k
            s_k = cfg['min_sizes'][k] / image_size
            mean += [cx, cy, s_k, s_k]
            s_k_prime = math.sqrt(s_k * (cfg['max_sizes'][k] / image_size))
            mean += [cx, cy, s_k_prime, s_k_prime]
            for ar in cfg['aspect_ratios'][k]:
                mean += [cx, cy, s_k * math.sqrt(ar), s_k / math.sqrt(ar)]
                mean += [cx, cy, s_k / math.sqrt(ar), s_k * math.sqrt(ar)]
    out = np.asarray(mean, dtype=np.float32).reshape(-1, 4)
    if cfg['clip']:
        out = np.clip(out, 0.0, 1.0)
    return jnp.asarray(out)


def _conv_init(key, cin, cout, k):
    fan_in = cin * k * k
    w = jax.random.normal(key, (k, k, cin, cout), jnp.float32) * math.sqrt(2.0 / fan_in)
    b = jnp.zeros((cout,), jnp.float32)
    return w, b


def build_params(key):
    c = lambda v: v // CH_DIV
    keys = iter(jax.random.split(key, 64))

    # --- VGG base (mirrors vgg(cfg, 3) + pool5/conv6/conv7, conv+ReLU fused) ---
    vgg_ops = []
    in_ch = 3
    for v in BASE_CFG:
        if v == 'M':
            vgg_ops.append(dict(kind='pool', k=2, s=2, p=0, ceil=False))
        elif v == 'C':
            vgg_ops.append(dict(kind='pool', k=2, s=2, p=0, ceil=True))
        else:
            w, b = _conv_init(next(keys), in_ch, c(v), 3)
            vgg_ops.append(dict(kind='conv', w=w, b=b, s=1, p=1, d=1, relu=True))
            in_ch = c(v)
    vgg_ops.append(dict(kind='pool', k=3, s=1, p=1, ceil=False))        # pool5
    w, b = _conv_init(next(keys), in_ch, c(1024), 3)                    # conv6 (dilated)
    vgg_ops.append(dict(kind='conv', w=w, b=b, s=1, p=6, d=6, relu=True))
    w, b = _conv_init(next(keys), c(1024), c(1024), 1)                  # conv7
    vgg_ops.append(dict(kind='conv', w=w, b=b, s=1, p=0, d=1, relu=True))

    # --- extras (mirrors add_extras; F.relu is applied in forward -> fused) ---
    extra_ops = []
    in_ch = c(1024)
    flag = False
    for k_i, v in enumerate(EXTRAS_CFG):
        if in_ch != 'S':
            ksz = (1, 3)[flag]
            if v == 'S':
                w, b = _conv_init(next(keys), in_ch, c(EXTRAS_CFG[k_i + 1]), ksz)
                extra_ops.append(dict(kind='conv', w=w, b=b, s=2, p=1, d=1, relu=True))
            else:
                w, b = _conv_init(next(keys), in_ch, c(v), ksz)
                extra_ops.append(dict(kind='conv', w=w, b=b, s=1, p=0, d=1, relu=True))
            flag = not flag
        in_ch = 'S' if v == 'S' else c(v)

    # --- multibox heads: loc + conf fused along output channels (one 3x3 conv
    #     per source, split into [nb*4 | nb*21] afterwards) ----------------------
    src_channels = [c(512), c(1024), c(512), c(256), c(256), c(256)]
    heads = []
    for cin, nb in zip(src_channels, MBOX):
        wl, bl = _conv_init(next(keys), cin, nb * 4, 3)
        wc, bc = _conv_init(next(keys), cin, nb * NUM_CLASSES, 3)
        heads.append(dict(w=jnp.concatenate([wl, wc], axis=-1),
                          b=jnp.concatenate([bl, bc], axis=-1),
                          nb=nb))

    return dict(
        vgg=vgg_ops, extras=extra_ops, heads=heads,
        l2norm_w=jnp.full((c(512),), 20.0, jnp.float32),   # L2Norm(512, 20)
        priors=prior_box(VOC_CFG),
    )


# ------------------------------- forward -------------------------------------

def apply_op(x, op):
    if op['kind'] == 'conv':
        return conv2d(x, op['w'], op['b'], stride=op['s'], padding=op['p'],
                      dilation=op['d'], relu=op['relu'])
    return maxpool2d(x, kernel=op['k'], stride=op['s'], padding=op['p'],
                     ceil_mode=op['ceil'])


def ssd_forward(params, x_nchw):
    """Mirrors SSD.forward (phase='train').  x_nchw: (N, 3, 300, 300)."""
    x = jnp.transpose(x_nchw, (0, 2, 3, 1)).astype(jnp.bfloat16)   # NCHW -> NHWC
    sources, loc, conf = [], [], []

    for op in params['vgg'][:VGG_CONV43_IDX]:      # torch vgg layers 0..22
        x = apply_op(x, op)
    N, H, W, C = x.shape
    s = l2norm_rows(x.reshape(N * H * W, C), params['l2norm_w']).reshape(N, H, W, C)
    sources.append(s)

    for op in params['vgg'][VGG_CONV43_IDX:]:      # torch vgg layers 23..end
        x = apply_op(x, op)
    sources.append(x)

    for k, op in enumerate(params['extras']):      # relu fused into each conv
        x = apply_op(x, op)
        if k % 2 == 1:
            sources.append(x)

    for src, hd in zip(sources, params['heads']):
        nb = hd['nb']
        y = conv2d(src, hd['w'], hd['b'], stride=1, padding=1,
                   relu=False, out_f32=True)
        # NHWC outputs already equal .permute(0, 2, 3, 1).contiguous()
        B = y.shape[0]
        loc.append(y[..., :nb * 4].reshape(B, -1))
        conf.append(y[..., nb * 4:].reshape(B, -1))

    loc = jnp.concatenate(loc, axis=1)
    conf = jnp.concatenate(conf, axis=1)
    B = x_nchw.shape[0]
    return (loc.reshape(B, -1, 4),
            conf.reshape(B, -1, NUM_CLASSES),
            params['priors'])


# --------------------------------- main ---------------------------------------

if __name__ == "__main__":
    key = jax.random.PRNGKey(0)
    pkey, xkey = jax.random.split(key)
    params = build_params(pkey)

    # input image batch, NCHW like the PyTorch module: [batch, 3, 300, 300]
    x = jax.random.normal(xkey, (2, 3, 300, 300), jnp.float32)

    loc, conf, priors = jax.block_until_ready(ssd_forward(params, x))

    assert loc.shape == (2, 8732, 4), loc.shape
    assert conf.shape == (2, 8732, NUM_CLASSES), conf.shape
    assert priors.shape == (8732, 4), priors.shape
    assert loc.shape[1] == priors.shape[0]
    assert bool(jnp.all(jnp.isfinite(loc))) and bool(jnp.all(jnp.isfinite(conf)))
    print("KERNEL_OK")
</pallas_src>

<mosaic_0001>
module attributes {stable_mosaic.version = 11 : i64} {
  func.func @_matmul_bias_kernel(%arg0: i32, %arg1: memref<2048x32xbf16, #tpu.memory_space<vmem>>, %arg2: memref<32x8xbf16, #tpu.memory_space<vmem>>, %arg3: memref<1x8xf32, #tpu.memory_space<vmem>>, %arg4: memref<2048x8xbf16, #tpu.memory_space<vmem>>) attributes {dimension_semantics = [#tpu.dimension_semantics<parallel>], iteration_bounds = array<i64: 88>, scalar_prefetch = 0 : i64, scratch_operands = 0 : i64, tpu.core_type = #tpu.core_type<tc>, window_params = [{transform_indices = @transform_0, window_bounds = array<i64: 2048, 32>}, {pipeline_mode = #tpu.pipeline_mode<synchronous>, transform_indices = @transform_1, window_bounds = array<i64: 32, 8>}, {pipeline_mode = #tpu.pipeline_mode<synchronous>, transform_indices = @transform_2, window_bounds = array<i64: 1, 8>}, {transform_indices = @transform_3, window_bounds = array<i64: 2048, 8>}]} {
    %c0 = arith.constant 0 : index
    %c0_0 = arith.constant 0 : index
    %0 = vector.load %arg1[%c0, %c0_0] : memref<2048x32xbf16, #tpu.memory_space<vmem>>, vector<2048x32xbf16>
    %c0_1 = arith.constant 0 : index
    %c0_2 = arith.constant 0 : index
    %1 = vector.load %arg2[%c0_1, %c0_2] : memref<32x8xbf16, #tpu.memory_space<vmem>>, vector<32x8xbf16>
    %cst = arith.constant dense<0.000000e+00> : vector<2048x8xf32>
    %2 = tpu.matmul %0, %1, %cst {dimension_numbers = #tpu.dot_dimension_numbers<[1], [0], [0], [1], [0, 0, 1, 1], [], []>} : vector<2048x32xbf16>, vector<32x8xbf16>, vector<2048x8xf32> -> vector<2048x8xf32>
    %c0_3 = arith.constant 0 : index
    %c0_4 = arith.constant 0 : index
    %3 = vector.load %arg3[%c0_3, %c0_4] : memref<1x8xf32, #tpu.memory_space<vmem>>, vector<1x8xf32>
    %4 = vector.broadcast %3 : vector<1x8xf32> to vector<2048x8xf32>
    %5 = arith.addf %2, %4 : vector<2048x8xf32>
    %cst_5 = arith.constant 0.000000e+00 : f32
    %6 = vector.broadcast %cst_5 : f32 to vector<2048x8xf32>
    %7 = arith.maximumf %5, %6 : vector<2048x8xf32>
    %8 = arith.truncf %7 : vector<2048x8xf32> to vector<2048x8xbf16>
    %c0_6 = arith.constant 0 : index
    %c0_7 = arith.constant 0 : index
    %9 = vector.load %arg4[%c0_6, %c0_7] : memref<2048x8xbf16, #tpu.memory_space<vmem>>, vector<2048x8xbf16>
    tpu.vector_store %arg4[%c0_6, %c0_7], %8 {strides = array<i32>} : memref<2048x8xbf16, #tpu.memory_space<vmem>>, vector<2048x8xbf16>,
    return
  }
  func.func @transform_0(%arg0: i32) -> (i32, i32) {
    %c0_i32 = arith.constant 0 : i32
    %c0_i32_0 = arith.constant 0 : i32
    return %arg0, %c0_i32 : i32, i32
  }
  func.func @transform_1(%arg0: i32) -> (i32, i32) {
    %c0_i32 = arith.constant 0 : i32
    %c0_i32_0 = arith.constant 0 : i32
    %c0_i32_1 = arith.constant 0 : i32
    return %c0_i32, %c0_i32_0 : i32, i32
  }
  func.func @transform_2(%arg0: i32) -> (i32, i32) {
    %c0_i32 = arith.constant 0 : i32
    %c0_i32_0 = arith.constant 0 : i32
    %c0_i32_1 = arith.constant 0 : i32
    return %c0_i32, %c0_i32_0 : i32, i32
  }
  func.func @transform_3(%arg0: i32) -> (i32, i32) {
    %c0_i32 = arith.constant 0 : i32
    %c0_i32_0 = arith.constant 0 : i32
    return %arg0, %c0_i32 : i32, i32
  }
}

</mosaic_0001>

<llo_original>
// kernel: _conv2d_impl.1
$region0: #{_conv2d_impl.1}
  #allocation0 [shape = 'u32[]', space=smem, size = 0x4, offset = 0x4, fixed_abs, tag = 'smem constant byte address 0x4 - core index']
  #allocation1 [shape = 'u32[144,128]{1,0:T(1,128)}', space=vmem, size = 0x12000, scoped, tag = 'internal scratch']
  %s0 = inlined_call_operand.hbm [shape: bf16[180000,32], index: 0, kind: input, shape index: {}]
  %s1 = inlined_call_operand.vmem [shape: bf16[32,8], index: 1, kind: input, shape index: {}]
  %s2 = inlined_call_operand.vmem [shape: f32[1,8], index: 2, kind: input, shape index: {}]
  %s3 = inlined_call_operand.hbm [shape: bf16[180000,8], index: 3, kind: output, shape index: {}]
  %s4 = sld [smem:[#allocation0]]
  $region49: #{_conv2d_impl.1} parent=0
    _
  %s6 = ssub.s32 1, %s4
  %s7 = scalar_select 0, %s6, %s4
  $region1: #{_conv2d_impl.1} parent=0
    #allocation2 [shape = 'u8[1048576]{0}', space=vmem, size = 0x100000, scoped, tag = 'input window, operand 0']
    #allocation3 [shape = 's32[2]{0}', space=sflag, size = 0x8, scoped, tag = 'scoped memory for _conv2d_impl.1']
    #allocation4 [shape = 's32[2]{0}', space=sflag, size = 0x8, scoped, tag = 'scoped memory for _conv2d_impl.1']
    #allocation5 [shape = 'u8[1048576]{0}', space=vmem, size = 0x100000, scoped, tag = 'output window, operand 0']
    %8 = vsyncpa [#allocation3], 0
    %s9 = scalar_lea.sflag [#allocation3], 1
    %10 = vsyncpa %s9, 0
    %11 = vsyncpa [#allocation4], 0
    %s12 = scalar_lea.sflag [#allocation4], 1
    %13 = vsyncpa %s12, 0
    loop: start=0, step=1, limit=90
    $region2: #{_conv2d_impl.1} parent=1 // loop_pre_header
      _
    $region3: #{_conv2d_impl.1} parent=1 // loop_header
      %s15 = sphi 0, %s19
      %p16 = scmp.ge.s32.totalorder %s15, 90
      %s25 = sphi 0, %s27
      %s28 = sphi 0, %s25
      %s29 = sphi 0, %s28
      %s45 = sphi 0, %s29
      %s49 = sphi 0, %s49
      %s51 = sphi 0, %s49
      %s52 = sphi 0, %s51
      %s66 = sphi 0, %s52
      %s70 = sphi 0, %s70
      %s72 = sphi 0, %s70
      %s73 = sphi 0, %s72
      %s87 = sphi 0, %s73
      %s93 = sphi 0, %s95
      %s96 = sphi 0, %s93
      %s97 = sphi 0, %s96
      %s113 = sphi 0, %s97
    $region4: #{_conv2d_impl.1} parent=1 // loop_header_branch
      %18 = sbr.rel (%p16) target = $region8
    $region5: #{_conv2d_impl.1} parent=1 // loop_body
      %s20 = ssub.s32 %s15, 1
      %s21 = ssub.s32 %s15, 2
      %s22 = sadd.s32 %s15, 1
      %s23 = ssub.s32 %s15, %s22
      %p24 = scmp.eq.s32.totalorder %s23, 0
      %s26 = sadd.s32 %s25, 1
      %s27 = scalar_select %p24, %s25, %s26
      %p30 = pneg %p24
      %p31 = scmp.eq.s32.totalorder %s15, 87
      %p32 = por %p30, %p31
      %p33 = scmp.ne.s32.totalorder %s25, %s28
      %p34 = scmp.eq.s32.totalorder %s15, 0
      %p35 = por %p33, %p34
      %p36 = scmp.ne.s32.totalorder %s25, %s28
      %p37 = scmp.eq.s32.totalorder %s20, 87
      %p38 = por %p36, %p37
      %p39 = scmp.ne.s32.totalorder %s28, %s29
      %p40 = scmp.eq.s32.totalorder %s20, 0
      %p41 = por %p39, %p40
      %p42 = scmp.ne.s32.totalorder %s28, %s29
      %p43 = scmp.eq.s32.totalorder %s21, 87
      %p44 = por %p42, %p43
      %p46 = scmp.ne.s32.totalorder %s29, %s45
      %p47 = scmp.eq.s32.totalorder %s21, 0
      %p48 = por %p46, %p47
      %s50 = sadd.s32 %s49, 1
      %p53 = scmp.eq.s32.totalorder %s15, 87
      %p54 = scmp.ne.s32.totalorder %s49, %s51
      %p55 = scmp.eq.s32.totalorder %s15, 0
      %p56 = por %p54, %p55
      %p57 = scmp.ne.s32.totalorder %s49, %s51
      %p58 = scmp.eq.s32.totalorder %s20, 87
      %p59 = por %p57, %p58
      %p60 = scmp.ne.s32.totalorder %s51, %s52
      %p61 = scmp.eq.s32.totalorder %s20, 0
      %p62 = por %p60, %p61
      %p63 = scmp.ne.s32.totalorder %s51, %s52
      %p64 = scmp.eq.s32.totalorder %s21, 87
      %p65 = por %p63, %p64
      %p67 = scmp.ne.s32.totalorder %s52, %s66
      %p68 = scmp.eq.s32.totalorder %s21, 0
      %p69 = por %p67, %p68
      %s71 = sadd.s32 %s70, 1
      %p74 = scmp.eq.s32.totalorder %s15, 87
      %p75 = scmp.ne.s32.totalorder %s70, %s72
      %p76 = scmp.eq.s32.totalorder %s15, 0
      %p77 = por %p75, %p76
      %p78 = scmp.ne.s32.totalorder %s70, %s72
      %p79 = scmp.eq.s32.totalorder %s20, 87
      %p80 = por %p78, %p79
      %p81 = scmp.ne.s32.totalorder %s72, %s73
      %p82 = scmp.eq.s32.totalorder %s20, 0
      %p83 = por %p81, %p82
      %p84 = scmp.ne.s32.totalorder %s72, %s73
      %p85 = scmp.eq.s32.totalorder %s21, 87
      %p86 = por %p84, %p85
      %p88 = scmp.ne.s32.totalorder %s73, %s87
      %p89 = scmp.eq.s32.totalorder %s21, 0
      %p90 = por %p88, %p89
      %s91 = ssub.s32 %s15, %s22
      %p92 = scmp.eq.s32.totalorder %s91, 0
      %s94 = sadd.s32 %s93, 1
      %s95 = scalar_select %p92, %s93, %s94
      %p98 = pneg %p92
      %p99 = scmp.eq.s32.totalorder %s15, 87
      %p100 = por %p98, %p99
      %p101 = scmp.ne.s32.totalorder %s93, %s96
      %p102 = scmp.eq.s32.totalorder %s15, 0
      %p103 = por %p101, %p102
      %p104 = scmp.ne.s32.totalorder %s93, %s96
      %p105 = scmp.eq.s32.totalorder %s20, 87
      %p106 = por %p104, %p105
      %p107 = scmp.ne.s32.totalorder %s96, %s97
      %p108 = scmp.eq.s32.totalorder %s20, 0
      %p109 = por %p107, %p108
      %p110 = scmp.ne.s32.totalorder %s96, %s97
      %p111 = scmp.eq.s32.totalorder %s21, 87
      %p112 = por %p110, %p111
      %p114 = scmp.ne.s32.totalorder %s97, %s113
      %p115 = scmp.eq.s32.totalorder %s21, 0
      %p116 = por %p114, %p115
      %p117 = scmp.le.s32.totalorder 1, %s15
      %p118 = scmp.lt.s32.totalorder %s15, 89
      %p119 = pnand %p117, %p118
      %p120 = pneg %p119
      // Predicated region
      $region9: #{_conv2d_impl.1} parent=5 // pred_check
        _
      $region10: #{_conv2d_impl.1} parent=5 // pred_check_branch
        %122 = sbr.rel (%p119) target = $region12
      $region11: #{_conv2d_impl.1} parent=5 // pred_region
        %s123 = ssub.s32 %s15, 1
        // Predicated region
        $region13: #{_conv2d_impl.1} parent=11 // pred_check
          %p124 = pneg %p62
        $region14: #{_conv2d_impl.1} parent=11 // pred_check_branch
          %126 = sbr.rel (%p124) target = $region16
        $region15: #{_conv2d_impl.1} parent=11 // pred_region
          _
        $region16: #{_conv2d_impl.1} parent=11 // pred_fallthru
          _
        // Predicated region
        $region17: #{_conv2d_impl.1} parent=11 // pred_check
          %p127 = pneg %p83
        $region18: #{_conv2d_impl.1} parent=11 // pred_check_branch
          %129 = sbr.rel (%p127) target = $region20
        $region19: #{_conv2d_impl.1} parent=11 // pred_region
          _
        $region20: #{_conv2d_impl.1} parent=11 // pred_fallthru
          _
      $region12: #{_conv2d_impl.1} parent=5 // pred_fallthru
        _
      %p130 = scmp.lt.s32.totalorder %s15, 88
      // Predicated region
      $region21: #{_conv2d_impl.1} parent=5 // pred_check
        %p131 = pneg %p130
      $region22: #{_conv2d_impl.1} parent=5 // pred_check_branch
        %133 = sbr.rel (%p131) target = $region24
      $region23: #{_conv2d_impl.1} parent=5 // pred_region
        // Predicated region
        $region25: #{_conv2d_impl.1} parent=23 // pred_check
          %p134 = pneg %p35
        $region26: #{_conv2d_impl.1} parent=23 // pred_check_branch
          %136 = sbr.rel (%p134) target = $region28
        $region27: #{_conv2d_impl.1} parent=23 // pred_region
          %s137 = sand.u32 %s25, 1
          %s138 = scalar_lea.sflag [#allocation3], %s137
          %s139 = sand.u32 %s25, 1
          %s140 = smul.addr %s139, 1024
          %s141 = scalar_lea.vmem [#allocation2], %s140
          %s142 = smul.u32 256, %s15
          %s143 = ssub.s32 22500, %s142
          %p144 = scmp.lt.s32.totalorder %s143, 256
          %s145 = scalar_select %p144, %s143, 256
          %s146 = smul.u32 64, %s145
          %s148 = ssub.s32 16384, %s146
          %149 = vsyncadd %s138, %s148
          %p150 = scmp.ne.s32.totalorder 0, %s146
          %s151 = smul.addr %s142, 64
          %s152 = scalar_lea.hbm %s0, %s151
          %s153 = smul.u32 4, %s145
          %s154 = sshll.u32 %s141, 4
          %s155 = int_to_ptr.vmem [resolvable:$true] %s154
          %s156 = sshll.u32 %s153, 4
          %160 = dma.hbm_to_vmem [thread:$0]  (%p150), %s152, %s156, %s155, %s138, 64, 64, 4
        $region28: #{_conv2d_impl.1} parent=23 // pred_fallthru
          _
      $region24: #{_conv2d_impl.1} parent=5 // pred_fallthru
        _
      %p161 = scmp.le.s32.totalorder 1, %s15
      %p162 = scmp.lt.s32.totalorder %s15, 89
      %p163 = pnand %p161, %p162
      %p164 = pneg %p163
      // Predicated region
      $region29: #{_conv2d_impl.1} parent=5 // pred_check
        _
      $region30: #{_conv2d_impl.1} parent=5 // pred_check_branch
        %166 = sbr.rel (%p163) target = $region32
      $region31: #{_conv2d_impl.1} parent=5 // pred_region
        %s167 = ssub.s32 %s15, 1
        %s168 = sand.u32 %s28, 1
        %s169 = scalar_lea.sflag [#allocation3], %s168
        %s170 = sand.u32 %s28, 1
        %s171 = smul.addr %s170, 1024
        %s172 = scalar_lea.vmem [#allocation2], %s171
        // Predicated region
        $region33: #{_conv2d_impl.1} parent=31 // pred_check
          %p173 = pneg %p41
        $region34: #{_conv2d_impl.1} parent=31 // pred_check_branch
          %175 = sbr.rel (%p173) target = $region36
        $region35: #{_conv2d_impl.1} parent=31 // pred_region
          %176 = dma.done %s169, 16384
        $region36: #{_conv2d_impl.1} parent=31 // pred_fallthru
          _
        %s177 = sand.u32 %s28, 1
        %s178 = scalar_lea.sflag [#allocation3], %s177
        %s179 = sand.u32 %s28, 1
        %s180 = smul.addr %s179, 1024
        %s181 = scalar_lea.vmem [#allocation2], %s180
        %p182 = pneg %p41
        %p183 = pneg %p38
        %p184 = pneg %p62
        %p185 = pneg %p59
        %p186 = pneg %p83
        %p187 = pneg %p80
        %p188 = pneg %p109
        %p189 = pneg %p106
        %s190 = sand.u32 %s96, 1
        %s191 = scalar_lea.sflag [#allocation4], %s190
        %s192 = sand.u32 %s96, 1
        %s193 = smul.addr %s192, 1024
        %s194 = scalar_lea.vmem [#allocation5], %s193
        %s195 = smul.u32 256, %s20
        %s196 = ssub.s32 22500, %s195
        %p197 = scmp.lt.s32.totalorder %s196, 256
        %s198 = scalar_select %p197, %s196, 256
        %s199 = smul.u32 64, %s198
        %s200 = smul.u32 256, %s20
        %s201 = ssub.s32 22500, %s200
        %p202 = scmp.lt.s32.totalorder %s201, 256
        %s203 = scalar_select %p202, %s201, 256
        %s204 = smul.u32 64, %s203
        %v206 = vld [vmem:[%s172] sm:$0xf]
        %v207 = vld [vmem:[%s172 + $0x4] sm:$0xf]
        %v208 = vld [vmem:[%s172 + $0x8] sm:$0xf]
        %v209 = vld [vmem:[%s172 + $0xc] sm:$0xf]
        %v210 = vld [vmem:[%s172 + $0x10] sm:$0xf]
        %v211 = vld [vmem:[%s172 + $0x14] sm:$0xf]
        %v212 = vld [vmem:[%s172 + $0x18] sm:$0xf]
        %v213 = vld [vmem:[%s172 + $0x1c] sm:$0xf]
        %v214 = vld [vmem:[%s172 + $0x20] sm:$0xf]
        %v215 = vld [vmem:[%s172 + $0x24] sm:$0xf]
        %v216 = vld [vmem:[%s172 + $0x28] sm:$0xf]
        %v217 = vld [vmem:[%s172 + $0x2c] sm:$0xf]
        %v218 = vld [vmem:[%s172 + $0x30] sm:$0xf]
        %v219 = vld [vmem:[%s172 + $0x34] sm:$0xf]
        %v220 = vld [vmem:[%s172 + $0x38] sm:$0xf]
        %v221 = vld [vmem:[%s172 + $0x3c] sm:$0xf]
        %v222 = vld [vmem:[%s172 + $0x40] sm:$0xf]
        %v223 = vld [vmem:[%s172 + $0x44] sm:$0xf]
        %v224 = vld [vmem:[%s172 + $0x48] sm:$0xf]
        %v225 = vld [vmem:[%s172 + $0x4c] sm:$0xf]
        %v226 = vld [vmem:[%s172 + $0x50] sm:$0xf]
        %v227 = vld [vmem:[%s172 + $0x54] sm:$0xf]
        %v228 = vld [vmem:[%s172 + $0x58] sm:$0xf]
        %v229 = vld [vmem:[%s172 + $0x5c] sm:$0xf]
        %v230 = vld [vmem:[%s172 + $0x60] sm:$0xf]
        %v231 = vld [vmem:[%s172 + $0x64] sm:$0xf]
        %v232 = vld [vmem:[%s172 + $0x68] sm:$0xf]
        %v233 = vld [vmem:[%s172 + $0x6c] sm:$0xf]
        %v234 = vld [vmem:[%s172 + $0x70] sm:$0xf]
        %v235 = vld [vmem:[%s172 + $0x74] sm:$0xf]
        %v236 = vld [vmem:[%s172 + $0x78] sm:$0xf]
        %v237 = vld [vmem:[%s172 + $0x7c] sm:$0xf]
        %v238 = vld [vmem:[%s172 + $0x80] sm:$0xf]
        %v239 = vld [vmem:[%s172 + $0x84] sm:$0xf]
        %v240 = vld [vmem:[%s172 + $0x88] sm:$0xf]
        %v241 = vld [vmem:[%s172 + $0x8c] sm:$0xf]
        %v242 = vld [vmem:[%s172 + $0x90] sm:$0xf]
        %v243 = vld [vmem:[%s172 + $0x94] sm:$0xf]
        %v244 = vld [vmem:[%s172 + $0x98] sm:$0xf]
        %v245 = vld [vmem:[%s172 + $0x9c] sm:$0xf]
        %v246 = vld [vmem:[%s172 + $0xa0] sm:$0xf]
        %v247 = vld [vmem:[%s172 + $0xa4] sm:$0xf]
        %v248 = vld [vmem:[%s172 + $0xa8] sm:$0xf]
        %v249 = vld [vmem:[%s172 + $0xac] sm:$0xf]
        %v250 = vld [vmem:[%s172 + $0xb0] sm:$0xf]
        %v251 = vld [vmem:[%s172 + $0xb4] sm:$0xf]
        %v252 = vld [vmem:[%s172 + $0xb8] sm:$0xf]
        %v253 = vld [vmem:[%s172 + $0xbc] sm:$0xf]
        %v254 = vld [vmem:[%s172 + $0xc0] sm:$0xf]
        %v255 = vld [vmem:[%s172 + $0xc4] sm:$0xf]
        %v256 = vld [vmem:[%s172 + $0xc8] sm:$0xf]
        %v257 = vld [vmem:[%s172 + $0xcc] sm:$0xf]
        %v258 = vld [vmem:[%s172 + $0xd0] sm:$0xf]
        %v259 = vld [vmem:[%s172 + $0xd4] sm:$0xf]
        %v260 = vld [vmem:[%s172 + $0xd8] sm:$0xf]
        %v261 = vld [vmem:[%s172 + $0xdc] sm:$0xf]
        %v262 = vld [vmem:[%s172 + $0xe0] sm:$0xf]
        %v263 = vld [vmem:[%s172 + $0xe4] sm:$0xf]
        %v264 = vld [vmem:[%s172 + $0xe8] sm:$0xf]
        %v265 = vld [vmem:[%s172 + $0xec] sm:$0xf]
        %v266 = vld [vmem:[%s172 + $0xf0] sm:$0xf]
        %v267 = vld [vmem:[%s172 + $0xf4] sm:$0xf]
        %v268 = vld [vmem:[%s172 + $0xf8] sm:$0xf]
        %v269 = vld [vmem:[%s172 + $0xfc] sm:$0xf]
        %v270 = vld [vmem:[%s172 + $0x100] sm:$0xf]
        %v271 = vld [vmem:[%s172 + $0x104] sm:$0xf]
        %v272 = vld [vmem:[%s172 + $0x108] sm:$0xf]
        %v273 = vld [vmem:[%s172 + $0x10c] sm:$0xf]
        %v274 = vld [vmem:[%s172 + $0x110] sm:$0xf]
        %v275 = vld [vmem:[%s172 + $0x114] sm:$0xf]
        %v276 = vld [vmem:[%s172 + $0x118] sm:$0xf]
        %v277 = vld [vmem:[%s172 + $0x11c] sm:$0xf]
        %v278 = vld [vmem:[%s172 + $0x120] sm:$0xf]
        %v279 = vld [vmem:[%s172 + $0x124] sm:$0xf]
        %v280 = vld [vmem:[%s172 + $0x128] sm:$0xf]
        %v281 = vld [vmem:[%s172 + $0x12c] sm:$0xf]
        %v282 = vld [vmem:[%s172 + $0x130] sm:$0xf]
        %v283 = vld [vmem:[%s172 + $0x134] sm:$0xf]
        %v284 = vld [vmem:[%s172 + $0x138] sm:$0xf]
        %v285 = vld [vmem:[%s172 + $0x13c] sm:$0xf]
        %v286 = vld [vmem:[%s172 + $0x140] sm:$0xf]
        %v287 = vld [vmem:[%s172 + $0x144] sm:$0xf]
        %v288 = vld [vmem:[%s172 + $0x148] sm:$0xf]
        %v289 = vld [vmem:[%s172 + $0x14c] sm:$0xf]
        %v290 = vld [vmem:[%s172 + $0x150] sm:$0xf]
        %v291 = vld [vmem:[%s172 + $0x154] sm:$0xf]
        %v292 = vld [vmem:[%s172 + $0x158] sm:$0xf]
        %v293 = vld [vmem:[%s172 + $0x15c] sm:$0xf]
        %v294 = vld [vmem:[%s172 + $0x160] sm:$0xf]
        %v295 = vld [vmem:[%s172 + $0x164] sm:$0xf]
        %v296 = vld [vmem:[%s172 + $0x168] sm:$0xf]
        %v297 = vld [vmem:[%s172 + $0x16c] sm:$0xf]
        %v298 = vld [vmem:[%s172 + $0x170] sm:$0xf]
        %v299 = vld [vmem:[%s172 + $0x174] sm:$0xf]
        %v300 = vld [vmem:[%s172 + $0x178] sm:$0xf]
        %v301 = vld [vmem:[%s172 + $0x17c] sm:$0xf]
        %v302 = vld [vmem:[%s172 + $0x180] sm:$0xf]
        %v303 = vld [vmem:[%s172 + $0x184] sm:$0xf]
        %v304 = vld [vmem:[%s172 + $0x188] sm:$0xf]
        %v305 = vld [vmem:[%s172 + $0x18c] sm:$0xf]
        %v306 = vld [vmem:[%s172 + $0x190] sm:$0xf]
        %v307 = vld [vmem:[%s172 + $0x194] sm:$0xf]
        %v308 = vld [vmem:[%s172 + $0x198] sm:$0xf]
        %v309 = vld [vmem:[%s172 + $0x19c] sm:$0xf]
        %v310 = vld [vmem:[%s172 + $0x1a0] sm:$0xf]
        %v311 = vld [vmem:[%s172 + $0x1a4] sm:$0xf]
        %v312 = vld [vmem:[%s172 + $0x1a8] sm:$0xf]
        %v313 = vld [vmem:[%s172 + $0x1ac] sm:$0xf]
        %v314 = vld [vmem:[%s172 + $0x1b0] sm:$0xf]
        %v315 = vld [vmem:[%s172 + $0x1b4] sm:$0xf]
        %v316 = vld [vmem:[%s172 + $0x1b8] sm:$0xf]
        %v317 = vld [vmem:[%s172 + $0x1bc] sm:$0xf]
        %v318 = vld [vmem:[%s172 + $0x1c0] sm:$0xf]
        %v319 = vld [vmem:[%s172 + $0x1c4] sm:$0xf]
        %v320 = vld [vmem:[%s172 + $0x1c8] sm:$0xf]
        %v321 = vld [vmem:[%s172 + $0x1cc] sm:$0xf]
        %v322 = vld [vmem:[%s172 + $0x1d0] sm:$0xf]
        %v323 = vld [vmem:[%s172 + $0x1d4] sm:$0xf]
        %v324 = vld [vmem:[%s172 + $0x1d8] sm:$0xf]
        %v325 = vld [vmem:[%s172 + $0x1dc] sm:$0xf]
        %v326 = vld [vmem:[%s172 + $0x1e0] sm:$0xf]
        %v327 = vld [vmem:[%s172 + $0x1e4] sm:$0xf]
        %v328 = vld [vmem:[%s172 + $0x1e8] sm:$0xf]
        %v329 = vld [vmem:[%s172 + $0x1ec] sm:$0xf]
        %v330 = vld [vmem:[%s172 + $0x1f0] sm:$0xf]
        %v331 = vld [vmem:[%s172 + $0x1f4] sm:$0xf]
        %v332 = vld [vmem:[%s172 + $0x1f8] sm:$0xf]
        %v333 = vld [vmem:[%s172 + $0x1fc] sm:$0xf]
        %v334 = vld [vmem:[%s172 + $0x200] sm:$0xf]
        %v335 = vld [vmem:[%s172 + $0x204] sm:$0xf]
        %v336 = vld [vmem:[%s172 + $0x208] sm:$0xf]
        %v337 = vld [vmem:[%s172 + $0x20c] sm:$0xf]
        %v338 = vld [vmem:[%s172 + $0x210] sm:$0xf]
        %v339 = vld [vmem:[%s172 + $0x214] sm:$0xf]
        %v340 = vld [vmem:[%s172 + $0x218] sm:$0xf]
        %v341 = vld [vmem:[%s172 + $0x21c] sm:$0xf]
        %v342 = vld [vmem:[%s172 + $0x220] sm:$0xf]
        %v343 = vld [vmem:[%s172 + $0x224] sm:$0xf]
        %v344 = vld [vmem:[%s172 + $0x228] sm:$0xf]
        %v345 = vld [vmem:[%s172 + $0x22c] sm:$0xf]
        %v346 = vld [vmem:[%s172 + $0x230] sm:$0xf]
        %v347 = vld [vmem:[%s172 + $0x234] sm:$0xf]
        %v348 = vld [vmem:[%s172 + $0x238] sm:$0xf]
        %v349 = vld [vmem:[%s172 + $0x23c] sm:$0xf]
        %v350 = vld [vmem:[%s172 + $0x240] sm:$0xf]
        %v351 = vld [vmem:[%s172 + $0x244] sm:$0xf]
        %v352 = vld [vmem:[%s172 + $0x248] sm:$0xf]
        %v353 = vld [vmem:[%s172 + $0x24c] sm:$0xf]
        %v354 = vld [vmem:[%s172 + $0x250] sm:$0xf]
        %v355 = vld [vmem:[%s172 + $0x254] sm:$0xf]
        %v356 = vld [vmem:[%s172 + $0x258] sm:$0xf]
        %v357 = vld [vmem:[%s172 + $0x25c] sm:$0xf]
        %v358 = vld [vmem:[%s172 + $0x260] sm:$0xf]
        %v359 = vld [vmem:[%s172 + $0x264] sm:$0xf]
        %v360 = vld [vmem:[%s172 + $0x268] sm:$0xf]
        %v361 = vld [vmem:[%s172 + $0x26c] sm:$0xf]
        %v362 = vld [vmem:[%s172 + $0x270] sm:$0xf]
        %v363 = vld [vmem:[%s172 + $0x274] sm:$0xf]
        %v364 = vld [vmem:[%s172 + $0x278] sm:$0xf]
        %v365 = vld [vmem:[%s172 + $0x27c] sm:$0xf]
        %v366 = vld [vmem:[%s172 + $0x280] sm:$0xf]
        %v367 = vld [vmem:[%s172 + $0x284] sm:$0xf]
        %v368 = vld [vmem:[%s172 + $0x288] sm:$0xf]
        %v369 = vld [vmem:[%s172 + $0x28c] sm:$0xf]
        %v370 = vld [vmem:[%s172 + $0x290] sm:$0xf]
        %v371 = vld [vmem:[%s172 + $0x294] sm:$0xf]
        %v372 = vld [vmem:[%s172 + $0x298] sm:$0xf]
        %v373 = vld [vmem:[%s172 + $0x29c] sm:$0xf]
        %v374 = vld [vmem:[%s172 + $0x2a0] sm:$0xf]
        %v375 = vld [vmem:[%s172 + $0x2a4] sm:$0xf]
        %v376 = vld [vmem:[%s172 + $0x2a8] sm:$0xf]
        %v377 = vld [vmem:[%s172 + $0x2ac] sm:$0xf]
        %v378 = vld [vmem:[%s172 + $0x2b0] sm:$0xf]
        %v379 = vld [vmem:[%s172 + $0x2b4] sm:$0xf]
        %v380 = vld [vmem:[%s172 + $0x2b8] sm:$0xf]
        %v381 = vld [vmem:[%s172 + $0x2bc] sm:$0xf]
        %v382 = vld [vmem:[%s172 + $0x2c0] sm:$0xf]
        %v383 = vld [vmem:[%s172 + $0x2c4] sm:$0xf]
        %v384 = vld [vmem:[%s172 + $0x2c8] sm:$0xf]
        %v385 = vld [vmem:[%s172 + $0x2cc] sm:$0xf]
        %v386 = vld [vmem:[%s172 + $0x2d0] sm:$0xf]
        %v387 = vld [vmem:[%s172 + $0x2d4] sm:$0xf]
        %v388 = vld [vmem:[%s172 + $0x2d8] sm:$0xf]
        %v389 = vld [vmem:[%s172 + $0x2dc] sm:$0xf]
        %v390 = vld [vmem:[%s172 + $0x2e0] sm:$0xf]
        %v391 = vld [vmem:[%s172 + $0x2e4] sm:$0xf]
        %v392 = vld [vmem:[%s172 + $0x2e8] sm:$0xf]
        %v393 = vld [vmem:[%s172 + $0x2ec] sm:$0xf]
        %v394 = vld [vmem:[%s172 + $0x2f0] sm:$0xf]
        %v395 = vld [vmem:[%s172 + $0x2f4] sm:$0xf]
        %v396 = vld [vmem:[%s172 + $0x2f8] sm:$0xf]
        %v397 = vld [vmem:[%s172 + $0x2fc] sm:$0xf]
        %v398 = vld [vmem:[%s172 + $0x300] sm:$0xf]
        %v399 = vld [vmem:[%s172 + $0x304] sm:$0xf]
        %v400 = vld [vmem:[%s172 + $0x308] sm:$0xf]
        %v401 = vld [vmem:[%s172 + $0x30c] sm:$0xf]
        %v402 = vld [vmem:[%s172 + $0x310] sm:$0xf]
        %v403 = vld [vmem:[%s172 + $0x314] sm:$0xf]
        %v404 = vld [vmem:[%s172 + $0x318] sm:$0xf]
        %v405 = vld [vmem:[%s172 + $0x31c] sm:$0xf]
        %v406 = vld [vmem:[%s172 + $0x320] sm:$0xf]
        %v407 = vld [vmem:[%s172 + $0x324] sm:$0xf]
        %v408 = vld [vmem:[%s172 + $0x328] sm:$0xf]
        %v409 = vld [vmem:[%s172 + $0x32c] sm:$0xf]
        %v410 = vld [vmem:[%s172 + $0x330] sm:$0xf]
        %v411 = vld [vmem:[%s172 + $0x334] sm:$0xf]
        %v412 = vld [vmem:[%s172 + $0x338] sm:$0xf]
        %v413 = vld [vmem:[%s172 + $0x33c] sm:$0xf]
        %v414 = vld [vmem:[%s172 + $0x340] sm:$0xf]
        %v415 = vld [vmem:[%s172 + $0x344] sm:$0xf]
        %v416 = vld [vmem:[%s172 + $0x348] sm:$0xf]
        %v417 = vld [vmem:[%s172 + $0x34c] sm:$0xf]
        %v418 = vld [vmem:[%s172 + $0x350] sm:$0xf]
        %v419 = vld [vmem:[%s172 + $0x354] sm:$0xf]
        %v420 = vld [vmem:[%s172 + $0x358] sm:$0xf]
        %v421 = vld [vmem:[%s172 + $0x35c] sm:$0xf]
        %v422 = vld [vmem:[%s172 + $0x360] sm:$0xf]
        %v423 = vld [vmem:[%s172 + $0x364] sm:$0xf]
        %v424 = vld [vmem:[%s172 + $0x368] sm:$0xf]
        %v425 = vld [vmem:[%s172 + $0x36c] sm:$0xf]
        %v426 = vld [vmem:[%s172 + $0x370] sm:$0xf]
        %v427 = vld [vmem:[%s172 + $0x374] sm:$0xf]
        %v428 = vld [vmem:[%s172 + $0x378] sm:$0xf]
        %v429 = vld [vmem:[%s172 + $0x37c] sm:$0xf]
        %v430 = vld [vmem:[%s172 + $0x380] sm:$0xf]
        %v431 = vld [vmem:[%s172 + $0x384] sm:$0xf]
        %v432 = vld [vmem:[%s172 + $0x388] sm:$0xf]
        %v433 = vld [vmem:[%s172 + $0x38c] sm:$0xf]
        %v434 = vld [vmem:[%s172 + $0x390] sm:$0xf]
        %v435 = vld [vmem:[%s172 + $0x394] sm:$0xf]
        %v436 = vld [vmem:[%s172 + $0x398] sm:$0xf]
        %v437 = vld [vmem:[%s172 + $0x39c] sm:$0xf]
        %v438 = vld [vmem:[%s172 + $0x3a0] sm:$0xf]
        %v439 = vld [vmem:[%s172 + $0x3a4] sm:$0xf]
        %v440 = vld [vmem:[%s172 + $0x3a8] sm:$0xf]
        %v441 = vld [vmem:[%s172 + $0x3ac] sm:$0xf]
        %v442 = vld [vmem:[%s172 + $0x3b0] sm:$0xf]
        %v443 = vld [vmem:[%s172 + $0x3b4] sm:$0xf]
        %v444 = vld [vmem:[%s172 + $0x3b8] sm:$0xf]
        %v445 = vld [vmem:[%s172 + $0x3bc] sm:$0xf]
        %v446 = vld [vmem:[%s172 + $0x3c0] sm:$0xf]
        %v447 = vld [vmem:[%s172 + $0x3c4] sm:$0xf]
        %v448 = vld [vmem:[%s172 + $0x3c8] sm:$0xf]
        %v449 = vld [vmem:[%s172 + $0x3cc] sm:$0xf]
        %v450 = vld [vmem:[%s172 + $0x3d0] sm:$0xf]
        %v451 = vld [vmem:[%s172 + $0x3d4] sm:$0xf]
        %v452 = vld [vmem:[%s172 + $0x3d8] sm:$0xf]
        %v453 = vld [vmem:[%s172 + $0x3dc] sm:$0xf]
        %v454 = vld [vmem:[%s172 + $0x3e0] sm:$0xf]
        %v455 = vld [vmem:[%s172 + $0x3e4] sm:$0xf]
        %v456 = vld [vmem:[%s172 + $0x3e8] sm:$0xf]
        %v457 = vld [vmem:[%s172 + $0x3ec] sm:$0xf]
        %v458 = vld [vmem:[%s172 + $0x3f0] sm:$0xf]
        %v459 = vld [vmem:[%s172 + $0x3f4] sm:$0xf]
        %v460 = vld [vmem:[%s172 + $0x3f8] sm:$0xf]
        %v461 = vld [vmem:[%s172 + $0x3fc] sm:$0xf]
        %v462 = vld [vmem:[%s1] sm:$0xf]
        %v463 = vld [vmem:[%s1 + $0x4] sm:$0xf]
        %v464 = vld [vmem:[%s1 + $0x8] sm:$0xf]
        %v465 = vld [vmem:[%s1 + $0xc] sm:$0xf]
        %v466 = vld [vmem:[%s2] sm:$0x1]
        %v468 = vlaneseq
        %v469 = vshrl.u32 %v468, 7
        %v470 = vsub.s32 0, %v469
        %v471 = vrot.slane %v466, %v470
        %v729 = vunpack.c.l.b16 %v206
        %v730 = vunpack.c.l.b16 %v207
        %v731 = vunpack.c.l.b16 %v208
        %v732 = vunpack.c.l.b16 %v209
        %v733 = vunpack.c.l.b16 %v210
        %v734 = vunpack.c.l.b16 %v211
        %v735 = vunpack.c.l.b16 %v212
        %v736 = vunpack.c.l.b16 %v213
        %v737 = vunpack.c.l.b16 %v214
        %v738 = vunpack.c.l.b16 %v215
        %v739 = vunpack.c.l.b16 %v216
        %v740 = vunpack.c.l.b16 %v217
        %v741 = vunpack.c.l.b16 %v218
        %v742 = vunpack.c.l.b16 %v219
        %v743 = vunpack.c.l.b16 %v220
        %v744 = vunpack.c.l.b16 %v221
        %v745 = vunpack.c.l.b16 %v222
        %v746 = vunpack.c.l.b16 %v223
        %v747 = vunpack.c.l.b16 %v224
        %v748 = vunpack.c.l.b16 %v225
        %v749 = vunpack.c.l.b16 %v226
        %v750 = vunpack.c.l.b16 %v227
        %v751 = vunpack.c.l.b16 %v228
        %v752 = vunpack.c.l.b16 %v229
        %v753 = vunpack.c.l.b16 %v230
        %v754 = vunpack.c.l.b16 %v231
        %v755 = vunpack.c.l.b16 %v232
        %v756 = vunpack.c.l.b16 %v233
        %v757 = vunpack.c.l.b16 %v234
        %v758 = vunpack.c.l.b16 %v235
        %v759 = vunpack.c.l.b16 %v236
        %v760 = vunpack.c.l.b16 %v237
        %v761 = vunpack.c.l.b16 %v238
        %v762 = vunpack.c.l.b16 %v239
        %v763 = vunpack.c.l.b16 %v240
        %v764 = vunpack.c.l.b16 %v241
        %v765 = vunpack.c.l.b16 %v242
        %v766 = vunpack.c.l.b16 %v243
        %v767 = vunpack.c.l.b16 %v244
        %v768 = vunpack.c.l.b16 %v245
        %v769 = vunpack.c.l.b16 %v246
        %v770 = vunpack.c.l.b16 %v247
        %v771 = vunpack.c.l.b16 %v248
        %v772 = vunpack.c.l.b16 %v249
        %v773 = vunpack.c.l.b16 %v250
        %v774 = vunpack.c.l.b16 %v251
        %v775 = vunpack.c.l.b16 %v252
        %v776 = vunpack.c.l.b16 %v253
        %v777 = vunpack.c.l.b16 %v254
        %v778 = vunpack.c.l.b16 %v255
        %v779 = vunpack.c.l.b16 %v256
        %v780 = vunpack.c.l.b16 %v257
        %v781 = vunpack.c.l.b16 %v258
        %v782 = vunpack.c.l.b16 %v259
        %v783 = vunpack.c.l.b16 %v260
        %v784 = vunpack.c.l.b16 %v261
        %v785 = vunpack.c.l.b16 %v262
        %v786 = vunpack.c.l.b16 %v263
        %v787 = vunpack.c.l.b16 %v264
        %v788 = vunpack.c.l.b16 %v265
        %v789 = vunpack.c.l.b16 %v266
        %v790 = vunpack.c.l.b16 %v267
        %v791 = vunpack.c.l.b16 %v268
        %v792 = vunpack.c.l.b16 %v269
        %v793 = vunpack.c.l.b16 %v270
        %v794 = vunpack.c.l.b16 %v271
        %v795 = vunpack.c.l.b16 %v272
        %v796 = vunpack.c.l.b16 %v273
        %v797 = vunpack.c.l.b16 %v274
        %v798 = vunpack.c.l.b16 %v275
        %v799 = vunpack.c.l.b16 %v276
        %v800 = vunpack.c.l.b16 %v277
        %v801 = vunpack.c.l.b16 %v278
        %v802 = vunpack.c.l.b16 %v279
        %v803 = vunpack.c.l.b16 %v280
        %v804 = vunpack.c.l.b16 %v281
        %v805 = vunpack.c.l.b16 %v282
        %v806 = vunpack.c.l.b16 %v283
        %v807 = vunpack.c.l.b16 %v284
        %v808 = vunpack.c.l.b16 %v285
        %v809 = vunpack.c.l.b16 %v286
        %v810 = vunpack.c.l.b16 %v287
        %v811 = vunpack.c.l.b16 %v288
        %v812 = vunpack.c.l.b16 %v289
        %v813 = vunpack.c.l.b16 %v290
        %v814 = vunpack.c.l.b16 %v291
        %v815 = vunpack.c.l.b16 %v292
        %v816 = vunpack.c.l.b16 %v293
        %v817 = vunpack.c.l.b16 %v294
        %v818 = vunpack.c.l.b16 %v295
        %v819 = vunpack.c.l.b16 %v296
        %v820 = vunpack.c.l.b16 %v297
        %v821 = vunpack.c.l.b16 %v298
        %v822 = vunpack.c.l.b16 %v299
        %v823 = vunpack.c.l.b16 %v300
        %v824 = vunpack.c.l.b16 %v301
        %v825 = vunpack.c.l.b16 %v302
        %v826 = vunpack.c.l.b16 %v303
        %v827 = vunpack.c.l.b16 %v304
        %v828 = vunpack.c.l.b16 %v305
        %v829 = vunpack.c.l.b16 %v306
        %v830 = vunpack.c.l.b16 %v307
        %v831 = vunpack.c.l.b16 %v308
        %v832 = vunpack.c.l.b16 %v309
        %v833 = vunpack.c.l.b16 %v310
        %v834 = vunpack.c.l.b16 %v311
        %v835 = vunpack.c.l.b16 %v312
        %v836 = vunpack.c.l.b16 %v313
        %v837 = vunpack.c.l.b16 %v314
        %v838 = vunpack.c.l.b16 %v315
        %v839 = vunpack.c.l.b16 %v316
        %v840 = vunpack.c.l.b16 %v317
        %v841 = vunpack.c.l.b16 %v318
        %v842 = vunpack.c.l.b16 %v319
        %v843 = vunpack.c.l.b16 %v320
        %v844 = vunpack.c.l.b16 %v321
        %v845 = vunpack.c.l.b16 %v322
        %v846 = vunpack.c.l.b16 %v323
        %v847 = vunpack.c.l.b16 %v324
        %v848 = vunpack.c.l.b16 %v325
        %v849 = vunpack.c.l.b16 %v326
        %v850 = vunpack.c.l.b16 %v327
        %v851 = vunpack.c.l.b16 %v328
        %v852 = vunpack.c.l.b16 %v329
        %v853 = vunpack.c.l.b16 %v330
        %v854 = vunpack.c.l.b16 %v331
        %v855 = vunpack.c.l.b16 %v332
        %v856 = vunpack.c.l.b16 %v333
        %v857 = vunpack.c.l.b16 %v334
        %v858 = vunpack.c.l.b16 %v335
        %v859 = vunpack.c.l.b16 %v336
        %v860 = vunpack.c.l.b16 %v337
        %v861 = vunpack.c.l.b16 %v338
        %v862 = vunpack.c.l.b16 %v339
        %v863 = vunpack.c.l.b16 %v340
        %v864 = vunpack.c.l.b16 %v341
        %v865 = vunpack.c.l.b16 %v342
        %v866 = vunpack.c.l.b16 %v343
        %v867 = vunpack.c.l.b16 %v344
        %v868 = vunpack.c.l.b16 %v345
        %v869 = vunpack.c.l.b16 %v346
        %v870 = vunpack.c.l.b16 %v347
        %v871 = vunpack.c.l.b16 %v348
        %v872 = vunpack.c.l.b16 %v349
        %v873 = vunpack.c.l.b16 %v350
        %v874 = vunpack.c.l.b16 %v351
        %v875 = vunpack.c.l.b16 %v352
        %v876 = vunpack.c.l.b16 %v353
        %v877 = vunpack.c.l.b16 %v354
        %v878 = vunpack.c.l.b16 %v355
        %v879 = vunpack.c.l.b16 %v356
        %v880 = vunpack.c.l.b16 %v357
        %v881 = vunpack.c.l.b16 %v358
        %v882 = vunpack.c.l.b16 %v359
        %v883 = vunpack.c.l.b16 %v360
        %v884 = vunpack.c.l.b16 %v361
        %v885 = vunpack.c.l.b16 %v362
        %v886 = vunpack.c.l.b16 %v363
        %v887 = vunpack.c.l.b16 %v364
        %v888 = vunpack.c.l.b16 %v365
        %v889 = vunpack.c.l.b16 %v366
        %v890 = vunpack.c.l.b16 %v367
        %v891 = vunpack.c.l.b16 %v368
        %v892 = vunpack.c.l.b16 %v369
        %v893 = vunpack.c.l.b16 %v370
        %v894 = vunpack.c.l.b16 %v371
        %v895 = vunpack.c.l.b16 %v372
        %v896 = vunpack.c.l.b16 %v373
        %v897 = vunpack.c.l.b16 %v374
        %v898 = vunpack.c.l.b16 %v375
        %v899 = vunpack.c.l.b16 %v376
        %v900 = vunpack.c.l.b16 %v377
        %v901 = vunpack.c.l.b16 %v378
        %v902 = vunpack.c.l.b16 %v379
        %v903 = vunpack.c.l.b16 %v380
        %v904 = vunpack.c.l.b16 %v381
        %v905 = vunpack.c.l.b16 %v382
        %v906 = vunpack.c.l.b16 %v383
        %v907 = vunpack.c.l.b16 %v384
        %v908 = vunpack.c.l.b16 %v385
        %v909 = vunpack.c.l.b16 %v386
        %v910 = vunpack.c.l.b16 %v387
        %v911 = vunpack.c.l.b16 %v388
        %v912 = vunpack.c.l.b16 %v389
        %v913 = vunpack.c.l.b16 %v390
        %v914 = vunpack.c.l.b16 %v391
        %v915 = vunpack.c.l.b16 %v392
        %v916 = vunpack.c.l.b16 %v393
        %v917 = vunpack.c.l.b16 %v394
        %v918 = vunpack.c.l.b16 %v395
        %v919 = vunpack.c.l.b16 %v396
        %v920 = vunpack.c.l.b16 %v397
        %v921 = vunpack.c.l.b16 %v398
        %v922 = vunpack.c.l.b16 %v399
        %v923 = vunpack.c.l.b16 %v400
        %v924 = vunpack.c.l.b16 %v401
        %v925 = vunpack.c.l.b16 %v402
        %v926 = vunpack.c.l.b16 %v403
        %v927 = vunpack.c.l.b16 %v404
        %v928 = vunpack.c.l.b16 %v405
        %v929 = vunpack.c.l.b16 %v406
        %v930 = vunpack.c.l.b16 %v407
        %v931 = vunpack.c.l.b16 %v408
        %v932 = vunpack.c.l.b16 %v409
        %v933 = vunpack.c.l.b16 %v410
        %v934 = vunpack.c.l.b16 %v411
        %v935 = vunpack.c.l.b16 %v412
        %v936 = vunpack.c.l.b16 %v413
        %v937 = vunpack.c.l.b16 %v414
        %v938 = vunpack.c.l.b16 %v415
        %v939 = vunpack.c.l.b16 %v416
        %v940 = vunpack.c.l.b16 %v417
        %v941 = vunpack.c.l.b16 %v418
        %v942 = vunpack.c.l.b16 %v419
        %v943 = vunpack.c.l.b16 %v420
        %v944 = vunpack.c.l.b16 %v421
        %v945 = vunpack.c.l.b16 %v422
        %v946 = vunpack.c.l.b16 %v423
        %v947 = vunpack.c.l.b16 %v424
        %v948 = vunpack.c.l.b16 %v425
        %v949 = vunpack.c.l.b16 %v426
        %v950 = vunpack.c.l.b16 %v427
        %v951 = vunpack.c.l.b16 %v428
        %v952 = vunpack.c.l.b16 %v429
        %v953 = vunpack.c.l.b16 %v430
        %v954 = vunpack.c.l.b16 %v431
        %v955 = vunpack.c.l.b16 %v432
        %v956 = vunpack.c.l.b16 %v433
        %v957 = vunpack.c.l.b16 %v434
        %v958 = vunpack.c.l.b16 %v435
        %v959 = vunpack.c.l.b16 %v436
        %v960 = vunpack.c.l.b16 %v437
        %v961 = vunpack.c.l.b16 %v438
        %v962 = vunpack.c.l.b16 %v439
        %v963 = vunpack.c.l.b16 %v440
        %v964 = vunpack.c.l.b16 %v441
        %v965 = vunpack.c.l.b16 %v442
        %v966 = vunpack.c.l.b16 %v443
        %v967 = vunpack.c.l.b16 %v444
        %v968 = vunpack.c.l.b16 %v445
        %v969 = vunpack.c.l.b16 %v446
        %v970 = vunpack.c.l.b16 %v447
        %v971 = vunpack.c.l.b16 %v448
        %v972 = vunpack.c.l.b16 %v449
        %v973 = vunpack.c.l.b16 %v450
        %v974 = vunpack.c.l.b16 %v451
        %v975 = vunpack.c.l.b16 %v452
        %v976 = vunpack.c.l.b16 %v453
        %v977 = vunpack.c.l.b16 %v454
        %v978 = vunpack.c.l.b16 %v455
        %v979 = vunpack.c.l.b16 %v456
        %v980 = vunpack.c.l.b16 %v457
        %v981 = vunpack.c.l.b16 %v458
        %v982 = vunpack.c.l.b16 %v459
        %v983 = vunpack.c.l.b16 %v460
        %v984 = vunpack.c.l.b16 %v461
        %v985 = vpack.c.b16 %v730, %v729
        %v986 = vpack.c.b16 %v732, %v731
        %v987 = vpack.c.b16 %v734, %v733
        %v988 = vpack.c.b16 %v736, %v735
        %v989 = vpack.c.b16 %v738, %v737
        %v990 = vpack.c.b16 %v740, %v739
        %v991 = vpack.c.b16 %v742, %v741
        %v992 = vpack.c.b16 %v744, %v743
        %v993 = vpack.c.b16 %v746, %v745
        %v994 = vpack.c.b16 %v748, %v747
        %v995 = vpack.c.b16 %v750, %v749
        %v996 = vpack.c.b16 %v752, %v751
        %v997 = vpack.c.b16 %v754, %v753
        %v998 = vpack.c.b16 %v756, %v755
        %v999 = vpack.c.b16 %v758, %v757
        %v1000 = vpack.c.b16 %v760, %v759
        %v1001 = vpack.c.b16 %v762, %v761
        %v1002 = vpack.c.b16 %v764, %v763
        %v1003 = vpack.c.b16 %v766, %v765
        %v1004 = vpack.c.b16 %v768, %v767
        %v1005 = vpack.c.b16 %v770, %v769
        %v1006 = vpack.c.b16 %v772, %v771
        %v1007 = vpack.c.b16 %v774, %v773
        %v1008 = vpack.c.b16 %v776, %v775
        %v1009 = vpack.c.b16 %v778, %v777
        %v1010 = vpack.c.b16 %v780, %v779
        %v1011 = vpack.c.b16 %v782, %v781
        %v1012 = vpack.c.b16 %v784, %v783
        %v1013 = vpack.c.b16 %v786, %v785
        %v1014 = vpack.c.b16 %v788, %v787
        %v1015 = vpack.c.b16 %v790, %v789
        %v1016 = vpack.c.b16 %v792, %v791
        %v1017 = vpack.c.b16 %v794, %v793
        %v1018 = vpack.c.b16 %v796, %v795
        %v1019 = vpack.c.b16 %v798, %v797
        %v1020 = vpack.c.b16 %v800, %v799
        %v1021 = vpack.c.b16 %v802, %v801
        %v1022 = vpack.c.b16 %v804, %v803
        %v1023 = vpack.c.b16 %v806, %v805
        %v1024 = vpack.c.b16 %v808, %v807
        %v1025 = vpack.c.b16 %v810, %v809
        %v1026 = vpack.c.b16 %v812, %v811
        %v1027 = vpack.c.b16 %v814, %v813
        %v1028 = vpack.c.b16 %v816, %v815
        %v1029 = vpack.c.b16 %v818, %v817
        %v1030 = vpack.c.b16 %v820, %v819
        %v1031 = vpack.c.b16 %v822, %v821
        %v1032 = vpack.c.b16 %v824, %v823
        %v1033 = vpack.c.b16 %v826, %v825
        %v1034 = vpack.c.b16 %v828, %v827
        %v1035 = vpack.c.b16 %v830, %v829
        %v1036 = vpack.c.b16 %v832, %v831
        %v1037 = vpack.c.b16 %v834, %v833
        %v1038 = vpack.c.b16 %v836, %v835
        %v1039 = vpack.c.b16 %v838, %v837
        %v1040 = vpack.c.b16 %v840, %v839
        %v1041 = vpack.c.b16 %v842, %v841
        %v1042 = vpack.c.b16 %v844, %v843
        %v1043 = vpack.c.b16 %v846, %v845
        %v1044 = vpack.c.b16 %v848, %v847
        %v1045 = vpack.c.b16 %v850, %v849
        %v1046 = vpack.c.b16 %v852, %v851
        %v1047 = vpack.c.b16 %v854, %v853
        %v1048 = vpack.c.b16 %v856, %v855
        %v1049 = vpack.c.b16 %v858, %v857
        %v1050 = vpack.c.b16 %v860, %v859
        %v1051 = vpack.c.b16 %v862, %v861
        %v1052 = vpack.c.b16 %v864, %v863
        %v1053 = vpack.c.b16 %v866, %v865
        %v1054 = vpack.c.b16 %v868, %v867
        %v1055 = vpack.c.b16 %v870, %v869
        %v1056 = vpack.c.b16 %v872, %v871
        %v1057 = vpack.c.b16 %v874, %v873
        %v1058 = vpack.c.b16 %v876, %v875
        %v1059 = vpack.c.b16 %v878, %v877
        %v1060 = vpack.c.b16 %v880, %v879
        %v1061 = vpack.c.b16 %v882, %v881
        %v1062 = vpack.c.b16 %v884, %v883
        %v1063 = vpack.c.b16 %v886, %v885
        %v1064 = vpack.c.b16 %v888, %v887
        %v1065 = vpack.c.b16 %v890, %v889
        %v1066 = vpack.c.b16 %v892, %v891
        %v1067 = vpack.c.b16 %v894, %v893
        %v1068 = vpack.c.b16 %v896, %v895
        %v1069 = vpack.c.b16 %v898, %v897
        %v1070 = vpack.c.b16 %v900, %v899
        %v1071 = vpack.c.b16 %v902, %v901
        %v1072 = vpack.c.b16 %v904, %v903
        %v1073 = vpack.c.b16 %v906, %v905
        %v1074 = vpack.c.b16 %v908, %v907
        %v1075 = vpack.c.b16 %v910, %v909
        %v1076 = vpack.c.b16 %v912, %v911
        %v1077 = vpack.c.b16 %v914, %v913
        %v1078 = vpack.c.b16 %v916, %v915
        %v1079 = vpack.c.b16 %v918, %v917
        %v1080 = vpack.c.b16 %v920, %v919
        %v1081 = vpack.c.b16 %v922, %v921
        %v1082 = vpack.c.b16 %v924, %v923
        %v1083 = vpack.c.b16 %v926, %v925
        %v1084 = vpack.c.b16 %v928, %v927
        %v1085 = vpack.c.b16 %v930, %v929
        %v1086 = vpack.c.b16 %v932, %v931
        %v1087 = vpack.c.b16 %v934, %v933
        %v1088 = vpack.c.b16 %v936, %v935
        %v1089 = vpack.c.b16 %v938, %v937
        %v1090 = vpack.c.b16 %v940, %v939
        %v1091 = vpack.c.b16 %v942, %v941
        %v1092 = vpack.c.b16 %v944, %v943
        %v1093 = vpack.c.b16 %v946, %v945
        %v1094 = vpack.c.b16 %v948, %v947
        %v1095 = vpack.c.b16 %v950, %v949
        %v1096 = vpack.c.b16 %v952, %v951
        %v1097 = vpack.c.b16 %v954, %v953
        %v1098 = vpack.c.b16 %v956, %v955
        %v1099 = vpack.c.b16 %v958, %v957
        %v1100 = vpack.c.b16 %v960, %v959
        %v1101 = vpack.c.b16 %v962, %v961
        %v1102 = vpack.c.b16 %v964, %v963
        %v1103 = vpack.c.b16 %v966, %v965
        %v1104 = vpack.c.b16 %v968, %v967
        %v1105 = vpack.c.b16 %v970, %v969
        %v1106 = vpack.c.b16 %v972, %v971
        %v1107 = vpack.c.b16 %v974, %v973
        %v1108 = vpack.c.b16 %v976, %v975
        %v1109 = vpack.c.b16 %v978, %v977
        %v1110 = vpack.c.b16 %v980, %v979
        %v1111 = vpack.c.b16 %v982, %v981
        %v1112 = vpack.c.b16 %v984, %v983
        %v1117 = vunpack.c.l.b16 %v462
        %v1118 = vunpack.c.l.b16 %v463
        %v1119 = vunpack.c.l.b16 %v464
        %v1120 = vunpack.c.l.b16 %v465
        %v1121 = vpack.c.b16 %v1118, %v1117
        %v1122 = vpack.c.b16 %v1120, %v1119
        %vm1125 = vcmask 261120
        %v1127 = vsel %vm1125, %v985, 0
        %v1130 = vsel %vm1125, %v986, 0
        %v1133 = vsel %vm1125, %v987, 0
        %v1136 = vsel %vm1125, %v988, 0
        %v1139 = vsel %vm1125, %v989, 0
        %v1142 = vsel %vm1125, %v990, 0
        %v1145 = vsel %vm1125, %v991, 0
        %v1148 = vsel %vm1125, %v992, 0
        %v1151 = vsel %vm1125, %v993, 0
        %v1154 = vsel %vm1125, %v994, 0
        %v1157 = vsel %vm1125, %v995, 0
        %v1160 = vsel %vm1125, %v996, 0
        %v1163 = vsel %vm1125, %v997, 0
        %v1166 = vsel %vm1125, %v998, 0
        %v1169 = vsel %vm1125, %v999, 0
        %v1172 = vsel %vm1125, %v1000, 0
        %v1175 = vsel %vm1125, %v1001, 0
        %v1178 = vsel %vm1125, %v1002, 0
        %v1181 = vsel %vm1125, %v1003, 0
        %v1184 = vsel %vm1125, %v1004, 0
        %v1187 = vsel %vm1125, %v1005, 0
        %v1190 = vsel %vm1125, %v1006, 0
        %v1193 = vsel %vm1125, %v1007, 0
        %v1196 = vsel %vm1125, %v1008, 0
        %v1199 = vsel %vm1125, %v1009, 0
        %v1202 = vsel %vm1125, %v1010, 0
        %v1205 = vsel %vm1125, %v1011, 0
        %v1208 = vsel %vm1125, %v1012, 0
        %v1211 = vsel %vm1125, %v1013, 0
        %v1214 = vsel %vm1125, %v1014, 0
        %v1217 = vsel %vm1125, %v1015, 0
        %v1220 = vsel %vm1125, %v1016, 0
        %v1223 = vsel %vm1125, %v1017, 0
        %v1226 = vsel %vm1125, %v1018, 0
        %v1229 = vsel %vm1125, %v1019, 0
        %v1232 = vsel %vm1125, %v1020, 0
        %v1235 = vsel %vm1125, %v1021, 0
        %v1238 = vsel %vm1125, %v1022, 0
        %v1241 = vsel %vm1125, %v1023, 0
        %v1244 = vsel %vm1125, %v1024, 0
        %v1247 = vsel %vm1125, %v1025, 0
        %v1250 = vsel %vm1125, %v1026, 0
        %v1253 = vsel %vm1125, %v1027, 0
        %v1256 = vsel %vm1125, %v1028, 0
        %v1259 = vsel %vm1125, %v1029, 0
        %v1262 = vsel %vm1125, %v1030, 0
        %v1265 = vsel %vm1125, %v1031, 0
        %v1268 = vsel %vm1125, %v1032, 0
        %v1271 = vsel %vm1125, %v1033, 0
        %v1274 = vsel %vm1125, %v1034, 0
        %v1277 = vsel %vm1125, %v1035, 0
        %v1280 = vsel %vm1125, %v1036, 0
        %v1283 = vsel %vm1125, %v1037, 0
        %v1286 = vsel %vm1125, %v1038, 0
        %v1289 = vsel %vm1125, %v1039, 0
        %v1292 = vsel %vm1125, %v1040, 0
        %v1295 = vsel %vm1125, %v1041, 0
        %v1298 = vsel %vm1125, %v1042, 0
        %v1301 = vsel %vm1125, %v1043, 0
        %v1304 = vsel %vm1125, %v1044, 0
        %v1307 = vsel %vm1125, %v1045, 0
        %v1310 = vsel %vm1125, %v1046, 0
        %v1313 = vsel %vm1125, %v1047, 0
        %v1316 = vsel %vm1125, %v1048, 0
        %v1319 = vsel %vm1125, %v1049, 0
        %v1322 = vsel %vm1125, %v1050, 0
        %v1325 = vsel %vm1125, %v1051, 0
        %v1328 = vsel %vm1125, %v1052, 0
        %v1331 = vsel %vm1125, %v1053, 0
        %v1334 = vsel %vm1125, %v1054, 0
        %v1337 = vsel %vm1125, %v1055, 0
        %v1340 = vsel %vm1125, %v1056, 0
        %v1343 = vsel %vm1125, %v1057, 0
        %v1346 = vsel %vm1125, %v1058, 0
        %v1349 = vsel %vm1125, %v1059, 0
        %v1352 = vsel %vm1125, %v1060, 0
        %v1355 = vsel %vm1125, %v1061, 0
        %v1358 = vsel %vm1125, %v1062, 0
        %v1361 = vsel %vm1125, %v1063, 0
        %v1364 = vsel %vm1125, %v1064, 0
        %v1367 = vsel %vm1125, %v1065, 0
        %v1370 = vsel %vm1125, %v1066, 0
        %v1373 = vsel %vm1125, %v1067, 0
        %v1376 = vsel %vm1125, %v1068, 0
        %v1379 = vsel %vm1125, %v1069, 0
        %v1382 = vsel %vm1125, %v1070, 0
        %v1385 = vsel %vm1125, %v1071, 0
        %v1388 = vsel %vm1125, %v1072, 0
        %v1391 = vsel %vm1125, %v1073, 0
        %v1394 = vsel %vm1125, %v1074, 0
        %v1397 = vsel %vm1125, %v1075, 0
        %v1400 = vsel %vm1125, %v1076, 0
        %v1403 = vsel %vm1125, %v1077, 0
        %v1406 = vsel %vm1125, %v1078, 0
        %v1409 = vsel %vm1125, %v1079, 0
        %v1412 = vsel %vm1125, %v1080, 0
        %v1415 = vsel %vm1125, %v1081, 0
        %v1418 = vsel %vm1125, %v1082, 0
        %v1421 = vsel %vm1125, %v1083, 0
        %v1424 = vsel %vm1125, %v1084, 0
        %v1427 = vsel %vm1125, %v1085, 0
        %v1430 = vsel %vm1125, %v1086, 0
        %v1433 = vsel %vm1125, %v1087, 0
        %v1436 = vsel %vm1125, %v1088, 0
        %v1439 = vsel %vm1125, %v1089, 0
        %v1442 = vsel %vm1125, %v1090, 0
        %v1445 = vsel %vm1125, %v1091, 0
        %v1448 = vsel %vm1125, %v1092, 0
        %v1451 = vsel %vm1125, %v1093, 0
        %v1454 = vsel %vm1125, %v1094, 0
        %v1457 = vsel %vm1125, %v1095, 0
        %v1460 = vsel %vm1125, %v1096, 0
        %v1463 = vsel %vm1125, %v1097, 0
        %v1466 = vsel %vm1125, %v1098, 0
        %v1469 = vsel %vm1125, %v1099, 0
        %v1472 = vsel %vm1125, %v1100, 0
        %v1475 = vsel %vm1125, %v1101, 0
        %v1478 = vsel %vm1125, %v1102, 0
        %v1481 = vsel %vm1125, %v1103, 0
        %v1484 = vsel %vm1125, %v1104, 0
        %v1487 = vsel %vm1125, %v1105, 0
        %v1490 = vsel %vm1125, %v1106, 0
        %v1493 = vsel %vm1125, %v1107, 0
        %v1496 = vsel %vm1125, %v1108, 0
        %v1499 = vsel %vm1125, %v1109, 0
        %v1502 = vsel %vm1125, %v1110, 0
        %v1505 = vsel %vm1125, %v1111, 0
        %v1508 = vsel %vm1125, %v1112, 0
        %1510 = vmatprep.subr.bf16.mxu0 0
        %1511 = vmatpush1.bf16.msra.mxu0 %v1121
        %1512 = vmatprep.subr.bf16.mxu0 0
        %1513 = vmatpush1.bf16.msra.mxu0 %v1122
        %1514 = vmatprep.subr.bf16.mxu0 0
        %1515 = vmatpush1.bf16.msra.mxu0 0
        %1516 = vmatprep.subr.bf16.mxu0 0
        %1517 = vmatpush1.bf16.msra.mxu0 0
        %1518 = vmatprep.subr.bf16.mxu0 0
        %1519 = vmatpush1.bf16.msra.mxu0 0
        %1520 = vmatprep.subr.bf16.mxu0 0
        %1521 = vmatpush1.bf16.msra.mxu0 0
        %1522 = vmatprep.subr.bf16.mxu0 0
        %1523 = vmatpush1.bf16.msra.mxu0 0
        %1524 = vmatprep.subr.bf16.mxu0 0
        %1525 = vmatpush1.bf16.msra.mxu0 0
        %1526 = vmatprep.subr.bf16.mxu0 0
        %1527 = vmatpush1.bf16.msra.mxu0 0
        %1528 = vmatprep.subr.bf16.mxu0 0
        %1529 = vmatpush1.bf16.msra.mxu0 0
        %1530 = vmatprep.subr.bf16.mxu0 0
        %1531 = vmatpush1.bf16.msra.mxu0 0
        %1532 = vmatprep.subr.bf16.mxu0 0
        %1533 = vmatpush1.bf16.msra.mxu0 0
        %1534 = vmatprep.subr.bf16.mxu0 0
        %1535 = vmatpush1.bf16.msra.mxu0 0
        %1536 = vmatprep.subr.bf16.mxu0 0
        %1537 = vmatpush1.bf16.msra.mxu0 0
        %1538 = vmatprep.subr.bf16.mxu0 0
        %1539 = vmatpush1.bf16.msra.mxu0 0
        %1540 = vmatprep.subr.bf16.mxu0 0
        %1541 = vmatpush1.bf16.msra.mxu0 0
        %1542 = vmatprep.mubr.bf16.mxu0 0
        %1543 = vmatmul.mubr.bf16.gmra.mrb[0].mxu0 %v1127
        %v1544 = vpop.f32.mrb[0].mxu0
        %v1545 = vadd.f32 %v471, %v1544
        %v1546 = vpop.f32.mrb[0].mxu0
        %v1547 = vpop.f32.mrb[0].mxu0
        %v1548 = vadd.f32 %v471, %v1547
        %v1549 = vpop.f32.mrb[0].mxu0
        %1550 = vmatprep.mubr.bf16.mxu0 0
        %1551 = vmatmul.mubr.bf16.gmra.mrb[0].mxu0 %v1130
        %v1552 = vpop.f32.mrb[0].mxu0
        %v1553 = vadd.f32 %v471, %v1552
        %v1554 = vpop.f32.mrb[0].mxu0
        %v1555 = vpop.f32.mrb[0].mxu0
        %v1556 = vadd.f32 %v471, %v1555
        %v1557 = vpop.f32.mrb[0].mxu0
        %1558 = vmatprep.mubr.bf16.mxu0 0
        %1559 = vmatmul.mubr.bf16.gmra.mrb[0].mxu0 %v1133
        %v1560 = vpop.f32.mrb[0].mxu0
        %v1561 = vadd.f32 %v471, %v1560
        %v1562 = vpop.f32.mrb[0].mxu0
        %v1563 = vpop.f32.mrb[0].mxu0
        %v1564 = vadd.f32 %v471, %v1563
        %v1565 = vpop.f32.mrb[0].mxu0
        %1566 = vmatprep.mubr.bf16.mxu0 0
        %1567 = vmatmul.mubr.bf16.gmra.mrb[0].mxu0 %v1136
        %v1568 = vpop.f32.mrb[0].mxu0
        %v1569 = vadd.f32 %v471, %v1568
        %v1570 = vpop.f32.mrb[0].mxu0
        %v1571 = vpop.f32.mrb[0].mxu0
        %v1572 = vadd.f32 %v471, %v1571
        %v1573 = vpop.f32.mrb[0].mxu0
        %1574 = vmatprep.mubr.bf16.mxu0 0
        %1575 = vmatmul.mubr.bf16.gmra.mrb[0].mxu0 %v1139
        %v1576 = vpop.f32.mrb[0].mxu0
        %v1577 = vadd.f32 %v471, %v1576
        %v1578 = vpop.f32.mrb[0].mxu0
        %v1579 = vpop.f32.mrb[0].mxu0
        %v1580 = vadd.f32 %v471, %v1579
        %v1581 = vpop.f32.mrb[0].mxu0
        %1582 = vmatprep.mubr.bf16.mxu0 0
        %1583 = vmatmul.mubr.bf16.gmra.mrb[0].mxu0 %v1142
        %v1584 = vpop.f32.mrb[0].mxu0
        %v1585 = vadd.f32 %v471, %v1584
        %v1586 = vpop.f32.mrb[0].mxu0
        %v1587 = vpop.f32.mrb[0].mxu0
        %v1588 = vadd.f32 %v471, %v1587
        %v1589 = vpop.f32.mrb[0].mxu0
        %1590 = vmatprep.mubr.bf16.mxu0 0
        %1591 = vmatmul.mubr.bf16.gmra.mrb[0].mxu0 %v1145
        %v1592 = vpop.f32.mrb[0].mxu0
        %v1593 = vadd.f32 %v471, %v1592
        %v1594 = vpop.f32.mrb[0].mxu0
        %v1595 = vpop.f32.mrb[0].mxu0
        %v1596 = vadd.f32 %v471, %v1595
        %v1597 = vpop.f32.mrb[0].mxu0
        %1598 = vmatprep.mubr.bf16.mxu0 0
        %1599 = vmatmul.mubr.bf16.gmra.mrb[0].mxu0 %v1148
        %v1600 = vpop.f32.mrb[0].mxu0
        %v1601 = vadd.f32 %v471, %v1600
        %v1602 = vpop.f32.mrb[0].mxu0
        %v1603 = vpop.f32.mrb[0].mxu0
        %v1604 = vadd.f32 %v471, %v1603
        %v1605 = vpop.f32.mrb[0].mxu0
        %1606 = vmatprep.mubr.bf16.mxu0 0
        %1607 = vmatmul.mubr.bf16.gmra.mrb[0].mxu0 %v1151
        %v1608 = vpop.f32.mrb[0].mxu0
        %v1609 = vadd.f32 %v471, %v1608
        %v1610 = vpop.f32.mrb[0].mxu0
        %v1611 = vpop.f32.mrb[0].mxu0
        %v1612 = vadd.f32 %v471, %v1611
        %v1613 = vpop.f32.mrb[0].mxu0
        %1614 = vmatprep.mubr.bf16.mxu0 0
        %1615 = vmatmul.mubr.bf16.gmra.mrb[0].mxu0 %v1154
        %v1616 = vpop.f32.mrb[0].mxu0
        %v1617 = vadd.f32 %v471, %v1616
        %v1618 = vpop.f32.mrb[0].mxu0
        %v1619 = vpop.f32.mrb[0].mxu0
        %v1620 = vadd.f32 %v471, %v1619
        %v1621 = vpop.f32.mrb[0].mxu0
        %1622 = vmatprep.mubr.bf16.mxu0 0
        %1623 = vmatmul.mubr.bf16.gmra.mrb[0].mxu0 %v1157
        %v1624 = vpop.f32.mrb[0].mxu0
        %v1625 = vadd.f32 %v471, %v1624
        %v1626 = vpop.f32.mrb[0].mxu0
        %v1627 = vpop.f32.mrb[0].mxu0
        %v1628 = vadd.f32 %v471, %v1627
        %v1629 = vpop.f32.mrb[0].mxu0
        %1630 = vmatprep.mubr.bf16.mxu0 0
        %1631 = vmatmul.mubr.bf16.gmra.mrb[0].mxu0 %v1160
        %v1632 = vpop.f32.mrb[0].mxu0
        %v1633 = vadd.f32 %v471, %v1632
        %v1634 = vpop.f32.mrb[0].mxu0
        %v1635 = vpop.f32.mrb[0].mxu0
        %v1636 = vadd.f32 %v471, %v1635
        %v1637 = vpop.f32.mrb[0].mxu0
        %1638 = vmatprep.mubr.bf16.mxu0 0
        %1639 = vmatmul.mubr.bf16.gmra.mrb[0].mxu0 %v1163
        %v1640 = vpop.f32.mrb[0].mxu0
        %v1641 = vadd.f32 %v471, %v1640
        %v1642 = vpop.f32.mrb[0].mxu0
        %v1643 = vpop.f32.mrb[0].mxu0
        %v1644 = vadd.f32 %v471, %v1643
        %v1645 = vpop.f32.mrb[0].mxu0
        %1646 = vmatprep.mubr.bf16.mxu0 0
        %1647 = vmatmul.mubr.bf16.gmra.mrb[0].mxu0 %v1166
        %v1648 = vpop.f32.mrb[0].mxu0
        %v1649 = vadd.f32 %v471, %v1648
        %v1650 = vpop.f32.mrb[0].mxu0
        %v1651 = vpop.f32.mrb[0].mxu0
        %v1652 = vadd.f32 %v471, %v1651
        %v1653 = vpop.f32.mrb[0].mxu0
        %1654 = vmatprep.mubr.bf16.mxu0 0
        %1655 = vmatmul.mubr.bf16.gmra.mrb[0].mxu0 %v1169
        %v1656 = vpop.f32.mrb[0].mxu0
        %v1657 = vadd.f32 %v471, %v1656
        %v1658 = vpop.f32.mrb[0].mxu0
        %v1659 = vpop.f32.mrb[0].mxu0
        %v1660 = vadd.f32 %v471, %v1659
        %v1661 = vpop.f32.mrb[0].mxu0
        %1662 = vmatprep.mubr.bf16.mxu0 0
        %1663 = vmatmul.mubr.bf16.gmra.mrb[0].mxu0 %v1172
        %v1664 = vpop.f32.mrb[0].mxu0
        %v1665 = vadd.f32 %v471, %v1664
        %v1666 = vpop.f32.mrb[0].mxu0
        %v1667 = vpop.f32.mrb[0].mxu0
        %v1668 = vadd.f32 %v471, %v1667
        %v1669 = vpop.f32.mrb[0].mxu0
        %1670 = vmatprep.mubr.bf16.mxu0 0
        %1671 = vmatmul.mubr.bf16.gmra.mrb[0].mxu0 %v1175
        %v1672 = vpop.f32.mrb[0].mxu0
        %v1673 = vadd.f32 %v471, %v1672
        %v1674 = vpop.f32.mrb[0].mxu0
        %v1675 = vpop.f32.mrb[0].mxu0
        %v1676 = vadd.f32 %v471, %v1675
        %v1677 = vpop.f32.mrb[0].mxu0
        %1678 = vmatprep.mubr.bf16.mxu0 0
        %1679 = vmatmul.mubr.bf16.gmra.mrb[0].mxu0 %v1178
        %v1680 = vpop.f32.mrb[0].mxu0
        %v1681 = vadd.f32 %v471, %v1680
        %v1682 = vpop.f32.mrb[0].mxu0
        %v1683 = vpop.f32.mrb[0].mxu0
        %v1684 = vadd.f32 %v471, %v1683
        %v1685 = vpop.f32.mrb[0].mxu0
        %1686 = vmatprep.mubr.bf16.mxu0 0
        %1687 = vmatmul.mubr.bf16.gmra.mrb[0].mxu0 %v1181
        %v1688 = vpop.f32.mrb[0].mxu0
        %v1689 = vadd.f32 %v471, %v1688
        %v1690 = vpop.f32.mrb[0].mxu0
        %v1691 = vpop.f32.mrb[0].mxu0
        %v1692 = vadd.f32 %v471, %v1691
        %v1693 = vpop.f32.mrb[0].mxu0
        %1694 = vmatprep.mubr.bf16.mxu0 0
        %1695 = vmatmul.mubr.bf16.gmra.mrb[0].mxu0 %v1184
        %v1696 = vpop.f32.mrb[0].mxu0
        %v1697 = vadd.f32 %v471, %v1696
        %v1698 = vpop.f32.mrb[0].mxu0
        %v1699 = vpop.f32.mrb[0].mxu0
        %v1700 = vadd.f32 %v471, %v1699
        %v1701 = vpop.f32.mrb[0].mxu0
        %1702 = vmatprep.mubr.bf16.mxu0 0
        %1703 = vmatmul.mubr.bf16.gmra.mrb[0].mxu0 %v1187
        %v1704 = vpop.f32.mrb[0].mxu0
        %v1705 = vadd.f32 %v471, %v1704
        %v1706 = vpop.f32.mrb[0].mxu0
        %v1707 = vpop.f32.mrb[0].mxu0
        %v1708 = vadd.f32 %v471, %v1707
        %v1709 = vpop.f32.mrb[0].mxu0
        %1710 = vmatprep.mubr.bf16.mxu0 0
        %1711 = vmatmul.mubr.bf16.gmra.mrb[0].mxu0 %v1190
        %v1712 = vpop.f32.mrb[0].mxu0
        %v1713 = vadd.f32 %v471, %v1712
        %v1714 = vpop.f32.mrb[0].mxu0
        %v1715 = vpop.f32.mrb[0].mxu0
        %v1716 = vadd.f32 %v471, %v1715
        %v1717 = vpop.f32.mrb[0].mxu0
        %1718 = vmatprep.mubr.bf16.mxu0 0
        %1719 = vmatmul.mubr.bf16.gmra.mrb[0].mxu0 %v1193
        %v1720 = vpop.f32.mrb[0].mxu0
        %v1721 = vadd.f32 %v471, %v1720
        %v1722 = vpop.f32.mrb[0].mxu0
        %v1723 = vpop.f32.mrb[0].mxu0
        %v1724 = vadd.f32 %v471, %v1723
        %v1725 = vpop.f32.mrb[0].mxu0
        %1726 = vmatprep.mubr.bf16.mxu0 0
        %1727 = vmatmul.mubr.bf16.gmra.mrb[0].mxu0 %v1196
        %v1728 = vpop.f32.mrb[0].mxu0
        %v1729 = vadd.f32 %v471, %v1728
        %v1730 = vpop.f32.mrb[0].mxu0
        %v1731 = vpop.f32.mrb[0].mxu0
        %v1732 = vadd.f32 %v471, %v1731
        %v1733 = vpop.f32.mrb[0].mxu0
        %1734 = vmatprep.mubr.bf16.mxu0 0
        %1735 = vmatmul.mubr.bf16.gmra.mrb[0].mxu0 %v1199
        %v1736 = vpop.f32.mrb[0].mxu0
        %v1737 = vadd.f32 %v471, %v1736
        %v1738 = vpop.f32.mrb[0].mxu0
        %v1739 = vpop.f32.mrb[0].mxu0
        %v1740 = vadd.f32 %v471, %v1739
        %v1741 = vpop.f32.mrb[0].mxu0
        %1742 = vmatprep.mubr.bf16.mxu0 0
        %1743 = vmatmul.mubr.bf16.gmra.mrb[0].mxu0 %v1202
        %v1744 = vpop.f32.mrb[0].mxu0
        %v1745 = vadd.f32 %v471, %v1744
        %v1746 = vpop.f32.mrb[0].mxu0
        %v1747 = vpop.f32.mrb[0].mxu0
        %v1748 = vadd.f32 %v471, %v1747
        %v1749 = vpop.f32.mrb[0].mxu0
        %1750 = vmatprep.mubr.bf16.mxu0 0
        %1751 = vmatmul.mubr.bf16.gmra.mrb[0].mxu0 %v1205
        %v1752 = vpop.f32.mrb[0].mxu0
        %v1753 = vadd.f32 %v471, %v1752
        %v1754 = vpop.f32.mrb[0].mxu0
        %v1755 = vpop.f32.mrb[0].mxu0
        %v1756 = vadd.f32 %v471, %v1755
        %v1757 = vpop.f32.mrb[0].mxu0
        %1758 = vmatprep.mubr.bf16.mxu0 0
        %1759 = vmatmul.mubr.bf16.gmra.mrb[0].mxu0 %v1208
        %v1760 = vpop.f32.mrb[0].mxu0
        %v1761 = vadd.f32 %v471, %v1760
        %v1762 = vpop.f32.mrb[0].mxu0
        %v1763 = vpop.f32.mrb[0].mxu0
        %v1764 = vadd.f32 %v471, %v1763
        %v1765 = vpop.f32.mrb[0].mxu0
        %1766 = vmatprep.mubr.bf16.mxu0 0
        %1767 = vmatmul.mubr.bf16.gmra.mrb[0].mxu0 %v1211
        %v1768 = vpop.f32.mrb[0].mxu0
        %v1769 = vadd.f32 %v471, %v1768
        %v1770 = vpop.f32.mrb[0].mxu0
        %v1771 = vpop.f32.mrb[0].mxu0
        %v1772 = vadd.f32 %v471, %v1771
        %v1773 = vpop.f32.mrb[0].mxu0
        %1774 = vmatprep.mubr.bf16.mxu0 0
        %1775 = vmatmul.mubr.bf16.gmra.mrb[0].mxu0 %v1214
        %v1776 = vpop.f32.mrb[0].mxu0
        %v1777 = vadd.f32 %v471, %v1776
        %v1778 = vpop.f32.mrb[0].mxu0
        %v1779 = vpop.f32.mrb[0].mxu0
        %v1780 = vadd.f32 %v471, %v1779
        %v1781 = vpop.f32.mrb[0].mxu0
        %1782 = vmatprep.mubr.bf16.mxu0 0
        %1783 = vmatmul.mubr.bf16.gmra.mrb[0].mxu0 %v1217
        %v1784 = vpop.f32.mrb[0].mxu0
        %v1785 = vadd.f32 %v471, %v1784
        %v1786 = vpop.f32.mrb[0].mxu0
        %v1787 = vpop.f32.mrb[0].mxu0
        %v1788 = vadd.f32 %v471, %v1787
        %v1789 = vpop.f32.mrb[0].mxu0
        %1790 = vmatprep.mubr.bf16.mxu0 0
        %1791 = vmatmul.mubr.bf16.gmra.mrb[0].mxu0 %v1220
        %v1792 = vpop.f32.mrb[0].mxu0
        %v1793 = vadd.f32 %v471, %v1792
        %v1794 = vpop.f32.mrb[0].mxu0
        %v1795 = vpop.f32.mrb[0].mxu0
        %v1796 = vadd.f32 %v471, %v1795
        %v1797 = vpop.f32.mrb[0].mxu0
        %1798 = vmatprep.mubr.bf16.mxu0 0
        %1799 = vmatmul.mubr.bf16.gmra.mrb[0].mxu0 %v1223
        %v1800 = vpop.f32.mrb[0].mxu0
        %v1801 = vadd.f32 %v471, %v1800
        %v1802 = vpop.f32.mrb[0].mxu0
        %v1803 = vpop.f32.mrb[0].mxu0
        %v1804 = vadd.f32 %v471, %v1803
        %v1805 = vpop.f32.mrb[0].mxu0
        %1806 = vmatprep.mubr.bf16.mxu0 0
        %1807 = vmatmul.mubr.bf16.gmra.mrb[0].mxu0 %v1226
        %v1808 = vpop.f32.mrb[0].mxu0
        %v1809 = vadd.f32 %v471, %v1808
        %v1810 = vpop.f32.mrb[0].mxu0
        %v1811 = vpop.f32.mrb[0].mxu0
        %v1812 = vadd.f32 %v471, %v1811
        %v1813 = vpop.f32.mrb[0].mxu0
        %1814 = vmatprep.mubr.bf16.mxu0 0
        %1815 = vmatmul.mubr.bf16.gmra.mrb[0].mxu0 %v1229
        %v1816 = vpop.f32.mrb[0].mxu0
        %v1817 = vadd.f32 %v471, %v1816
        %v1818 = vpop.f32.mrb[0].mxu0
        %v1819 = vpop.f32.mrb[0].mxu0
        %v1820 = vadd.f32 %v471, %v1819
        %v1821 = vpop.f32.mrb[0].mxu0
        %1822 = vmatprep.mubr.bf16.mxu0 0
        %1823 = vmatmul.mubr.bf16.gmra.mrb[0].mxu0 %v1232
        %v1824 = vpop.f32.mrb[0].mxu0
        %v1825 = vadd.f32 %v471, %v1824
        %v1826 = vpop.f32.mrb[0].mxu0
        %v1827 = vpop.f32.mrb[0].mxu0
        %v1828 = vadd.f32 %v471, %v1827
        %v1829 = vpop.f32.mrb[0].mxu0
        %1830 = vmatprep.mubr.bf16.mxu0 0
        %1831 = vmatmul.mubr.bf16.gmra.mrb[0].mxu0 %v1235
        %v1832 = vpop.f32.mrb[0].mxu0
        %v1833 = vadd.f32 %v471, %v1832
        %v1834 = vpop.f32.mrb[0].mxu0
        %v1835 = vpop.f32.mrb[0].mxu0
        %v1836 = vadd.f32 %v471, %v1835
        %v1837 = vpop.f32.mrb[0].mxu0
        %1838 = vmatprep.mubr.bf16.mxu0 0
        %1839 = vmatmul.mubr.bf16.gmra.mrb[0].mxu0 %v1238
        %v1840 = vpop.f32.mrb[0].mxu0
        %v1841 = vadd.f32 %v471, %v1840
        %v1842 = vpop.f32.mrb[0].mxu0
        %v1843 = vpop.f32.mrb[0].mxu0
        %v1844 = vadd.f32 %v471, %v1843
        %v1845 = vpop.f32.mrb[0].mxu0
        %1846 = vmatprep.mubr.bf16.mxu0 0
        %1847 = vmatmul.mubr.bf16.gmra.mrb[0].mxu0 %v1241
        %v1848 = vpop.f32.mrb[0].mxu0
        %v1849 = vadd.f32 %v471, %v1848
        %v1850 = vpop.f32.mrb[0].mxu0
        %v1851 = vpop.f32.mrb[0].mxu0
        %v1852 = vadd.f32 %v471, %v1851
        %v1853 = vpop.f32.mrb[0].mxu0
        %1854 = vmatprep.mubr.bf16.mxu0 0
        %1855 = vmatmul.mubr.bf16.gmra.mrb[0].mxu0 %v1244
        %v1856 = vpop.f32.mrb[0].mxu0
        %v1857 = vadd.f32 %v471, %v1856
        %v1858 = vpop.f32.mrb[0].mxu0
        %v1859 = vpop.f32.mrb[0].mxu0
        %v1860 = vadd.f32 %v471, %v1859
        %v1861 = vpop.f32.mrb[0].mxu0
        %1862 = vmatprep.mubr.bf16.mxu0 0
        %1863 = vmatmul.mubr.bf16.gmra.mrb[0].mxu0 %v1247
        %v1864 = vpop.f32.mrb[0].mxu0
        %v1865 = vadd.f32 %v471, %v1864
        %v1866 = vpop.f32.mrb[0].mxu0
        %v1867 = vpop.f32.mrb[0].mxu0
        %v1868 = vadd.f32 %v471, %v1867
        %v1869 = vpop.f32.mrb[0].mxu0
        %1870 = vmatprep.mubr.bf16.mxu0 0
        %1871 = vmatmul.mubr.bf16.gmra.mrb[0].mxu0 %v1250
        %v1872 = vpop.f32.mrb[0].mxu0
        %v1873 = vadd.f32 %v471, %v1872
        %v1874 = vpop.f32.mrb[0].mxu0
        %v1875 = vpop.f32.mrb[0].mxu0
        %v1876 = vadd.f32 %v471, %v1875
        %v1877 = vpop.f32.mrb[0].mxu0
        %1878 = vmatprep.mubr.bf16.mxu0 0
        %1879 = vmatmul.mubr.bf16.gmra.mrb[0].mxu0 %v1253
        %v1880 = vpop.f32.mrb[0].mxu0
        %v1881 = vadd.f32 %v471, %v1880
        %v1882 = vpop.f32.mrb[0].mxu0
        %v1883 = vpop.f32.mrb[0].mxu0
        %v1884 = vadd.f32 %v471, %v1883
        %v1885 = vpop.f32.mrb[0].mxu0
        %1886 = vmatprep.mubr.bf16.mxu0 0
        %1887 = vmatmul.mubr.bf16.gmra.mrb[0].mxu0 %v1256
        %v1888 = vpop.f32.mrb[0].mxu0
        %v1889 = vadd.f32 %v471, %v1888
        %v1890 = vpop.f32.mrb[0].mxu0
        %v1891 = vpop.f32.mrb[0].mxu0
        %v1892 = vadd.f32 %v471, %v1891
        %v1893 = vpop.f32.mrb[0].mxu0
        %1894 = vmatprep.mubr.bf16.mxu0 0
        %1895 = vmatmul.mubr.bf16.gmra.mrb[0].mxu0 %v1259
        %v1896 = vpop.f32.mrb[0].mxu0
        %v1897 = vadd.f32 %v471, %v1896
        %v1898 = vpop.f32.mrb[0].mxu0
        %v1899 = vpop.f32.mrb[0].mxu0
        %v1900 = vadd.f32 %v471, %v1899
        %v1901 = vpop.f32.mrb[0].mxu0
        %1902 = vmatprep.mubr.bf16.mxu0 0
        %1903 = vmatmul.mubr.bf16.gmra.mrb[0].mxu0 %v1262
        %v1904 = vpop.f32.mrb[0].mxu0
        %v1905 = vadd.f32 %v471, %v1904
        %v1906 = vpop.f32.mrb[0].mxu0
        %v1907 = vpop.f32.mrb[0].mxu0
        %v1908 = vadd.f32 %v471, %v1907
        %v1909 = vpop.f32.mrb[0].mxu0
        %1910 = vmatprep.mubr.bf16.mxu0 0
        %1911 = vmatmul.mubr.bf16.gmra.mrb[0].mxu0 %v1265
        %v1912 = vpop.f32.mrb[0].mxu0
        %v1913 = vadd.f32 %v471, %v1912
        %v1914 = vpop.f32.mrb[0].mxu0
        %v1915 = vpop.f32.mrb[0].mxu0
        %v1916 = vadd.f32 %v471, %v1915
        %v1917 = vpop.f32.mrb[0].mxu0
        %1918 = vmatprep.mubr.bf16.mxu0 0
        %1919 = vmatmul.mubr.bf16.gmra.mrb[0].mxu0 %v1268
        %v1920 = vpop.f32.mrb[0].mxu0
        %v1921 = vadd.f32 %v471, %v1920
        %v1922 = vpop.f32.mrb[0].mxu0
        %v1923 = vpop.f32.mrb[0].mxu0
        %v1924 = vadd.f32 %v471, %v1923
        %v1925 = vpop.f32.mrb[0].mxu0
        %1926 = vmatprep.mubr.bf16.mxu0 0
        %1927 = vmatmul.mubr.bf16.gmra.mrb[0].mxu0 %v1271
        %v1928 = vpop.f32.mrb[0].mxu0
        %v1929 = vadd.f32 %v471, %v1928
        %v1930 = vpop.f32.mrb[0].mxu0
        %v1931 = vpop.f32.mrb[0].mxu0
        %v1932 = vadd.f32 %v471, %v1931
        %v1933 = vpop.f32.mrb[0].mxu0
        %1934 = vmatprep.mubr.bf16.mxu0 0
        %1935 = vmatmul.mubr.bf16.gmra.mrb[0].mxu0 %v1274
        %v1936 = vpop.f32.mrb[0].mxu0
        %v1937 = vadd.f32 %v471, %v1936
        %v1938 = vpop.f32.mrb[0].mxu0
        %v1939 = vpop.f32.mrb[0].mxu0
        %v1940 = vadd.f32 %v471, %v1939
        %v1941 = vpop.f32.mrb[0].mxu0
        %1942 = vmatprep.mubr.bf16.mxu0 0
        %1943 = vmatmul.mubr.bf16.gmra.mrb[0].mxu0 %v1277
        %v1944 = vpop.f32.mrb[0].mxu0
        %v1945 = vadd.f32 %v471, %v1944
        %v1946 = vpop.f32.mrb[0].mxu0
        %v1947 = vpop.f32.mrb[0].mxu0
        %v1948 = vadd.f32 %v471, %v1947
        %v1949 = vpop.f32.mrb[0].mxu0
        %1950 = vmatprep.mubr.bf16.mxu0 0
        %1951 = vmatmul.mubr.bf16.gmra.mrb[0].mxu0 %v1280
        %v1952 = vpop.f32.mrb[0].mxu0
        %v1953 = vadd.f32 %v471, %v1952
        %v1954 = vpop.f32.mrb[0].mxu0
        %v1955 = vpop.f32.mrb[0].mxu0
        %v1956 = vadd.f32 %v471, %v1955
        %v1957 = vpop.f32.mrb[0].mxu0
        %1958 = vmatprep.mubr.bf16.mxu0 0
        %1959 = vmatmul.mubr.bf16.gmra.mrb[0].mxu0 %v1283
        %v1960 = vpop.f32.mrb[0].mxu0
        %v1961 = vadd.f32 %v471, %v1960
        %v1962 = vpop.f32.mrb[0].mxu0
        %v1963 = vpop.f32.mrb[0].mxu0
        %v1964 = vadd.f32 %v471, %v1963
        %v1965 = vpop.f32.mrb[0].mxu0
        %1966 = vmatprep.mubr.bf16.mxu0 0
        %1967 = vmatmul.mubr.bf16.gmra.mrb[0].mxu0 %v1286
        %v1968 = vpop.f32.mrb[0].mxu0
        %v1969 = vadd.f32 %v471, %v1968
        %v1970 = vpop.f32.mrb[0].mxu0
        %v1971 = vpop.f32.mrb[0].mxu0
        %v1972 = vadd.f32 %v471, %v1971
        %v1973 = vpop.f32.mrb[0].mxu0
        %1974 = vmatprep.mubr.bf16.mxu0 0
        %1975 = vmatmul.mubr.bf16.gmra.mrb[0].mxu0 %v1289
        %v1976 = vpop.f32.mrb[0].mxu0
        %v1977 = vadd.f32 %v471, %v1976
        %v1978 = vpop.f32.mrb[0].mxu0
        %v1979 = vpop.f32.mrb[0].mxu0
        %v1980 = vadd.f32 %v471, %v1979
        %v1981 = vpop.f32.mrb[0].mxu0
        %1982 = vmatprep.mubr.bf16.mxu0 0
        %1983 = vmatmul.mubr.bf16.gmra.mrb[0].mxu0 %v1292
        %v1984 = vpop.f32.mrb[0].mxu0
        %v1985 = vadd.f32 %v471, %v1984
        %v1986 = vpop.f32.mrb[0].mxu0
        %v1987 = vpop.f32.mrb[0].mxu0
        %v1988 = vadd.f32 %v471, %v1987
        %v1989 = vpop.f32.mrb[0].mxu0
        %1990 = vmatprep.mubr.bf16.mxu0 0
        %1991 = vmatmul.mubr.bf16.gmra.mrb[0].mxu0 %v1295
        %v1992 = vpop.f32.mrb[0].mxu0
        %v1993 = vadd.f32 %v471, %v1992
        %v1994 = vpop.f32.mrb[0].mxu0
        %v1995 = vpop.f32.mrb[0].mxu0
        %v1996 = vadd.f32 %v471, %v1995
        %v1997 = vpop.f32.mrb[0].mxu0
        %1998 = vmatprep.mubr.bf16.mxu0 0
        %1999 = vmatmul.mubr.bf16.gmra.mrb[0].mxu0 %v1298
        %v2000 = vpop.f32.mrb[0].mxu0
        %v2001 = vadd.f32 %v471, %v2000
        %v2002 = vpop.f32.mrb[0].mxu0
        %v2003 = vpop.f32.mrb[0].mxu0
        %v2004 = vadd.f32 %v471, %v2003
        %v2005 = vpop.f32.mrb[0].mxu0
        %2006 = vmatprep.mubr.bf16.mxu0 0
        %2007 = vmatmul.mubr.bf16.gmra.mrb[0].mxu0 %v1301
        %v2008 = vpop.f32.mrb[0].mxu0
        %v2009 = vadd.f32 %v471, %v2008
        %v2010 = vpop.f32.mrb[0].mxu0
        %v2011 = vpop.f32.mrb[0].mxu0
        %v2012 = vadd.f32 %v471, %v2011
        %v2013 = vpop.f32.mrb[0].mxu0
        %2014 = vmatprep.mubr.bf16.mxu0 0
        %2015 = vmatmul.mubr.bf16.gmra.mrb[0].mxu0 %v1304
        %v2016 = vpop.f32.mrb[0].mxu0
        %v2017 = vadd.f32 %v471, %v2016
        %v2018 = vpop.f32.mrb[0].mxu0
        %v2019 = vpop.f32.mrb[0].mxu0
        %v2020 = vadd.f32 %v471, %v2019
        %v2021 = vpop.f32.mrb[0].mxu0
        %2022 = vmatprep.mubr.bf16.mxu0 0
        %2023 = vmatmul.mubr.bf16.gmra.mrb[0].mxu0 %v1307
        %v2024 = vpop.f32.mrb[0].mxu0
        %v2025 = vadd.f32 %v471, %v2024
        %v2026 = vpop.f32.mrb[0].mxu0
        %v2027 = vpop.f32.mrb[0].mxu0
        %v2028 = vadd.f32 %v471, %v2027
        %v2029 = vpop.f32.mrb[0].mxu0
        %2030 = vmatprep.mubr.bf16.mxu0 0
        %2031 = vmatmul.mubr.bf16.gmra.mrb[0].mxu0 %v1310
        %v2032 = vpop.f32.mrb[0].mxu0
        %v2033 = vadd.f32 %v471, %v2032
        %v2034 = vpop.f32.mrb[0].mxu0
        %v2035 = vpop.f32.mrb[0].mxu0
        %v2036 = vadd.f32 %v471, %v2035
        %v2037 = vpop.f32.mrb[0].mxu0
        %2038 = vmatprep.mubr.bf16.mxu0 0
        %2039 = vmatmul.mubr.bf16.gmra.mrb[0].mxu0 %v1313
        %v2040 = vpop.f32.mrb[0].mxu0
        %v2041 = vadd.f32 %v471, %v2040
        %v2042 = vpop.f32.mrb[0].mxu0
        %v2043 = vpop.f32.mrb[0].mxu0
        %v2044 = vadd.f32 %v471, %v2043
        %v2045 = vpop.f32.mrb[0].mxu0
        %2046 = vmatprep.mubr.bf16.mxu0 0
        %2047 = vmatmul.mubr.bf16.gmra.mrb[0].mxu0 %v1316
        %v2048 = vpop.f32.mrb[0].mxu0
        %v2049 = vadd.f32 %v471, %v2048
        %v2050 = vpop.f32.mrb[0].mxu0
        %v2051 = vpop.f32.mrb[0].mxu0
        %v2052 = vadd.f32 %v471, %v2051
        %v2053 = vpop.f32.mrb[0].mxu0
        %2054 = vmatprep.mubr.bf16.mxu0 0
        %2055 = vmatmul.mubr.bf16.gmra.mrb[0].mxu0 %v1319
        %v2056 = vpop.f32.mrb[0].mxu0
        %v2057 = vadd.f32 %v471, %v2056
        %v2058 = vpop.f32.mrb[0].mxu0
        %v2059 = vpop.f32.mrb[0].mxu0
        %v2060 = vadd.f32 %v471, %v2059
        %v2061 = vpop.f32.mrb[0].mxu0
        %2062 = vmatprep.mubr.bf16.mxu0 0
        %2063 = vmatmul.mubr.bf16.gmra.mrb[0].mxu0 %v1322
        %v2064 = vpop.f32.mrb[0].mxu0
        %v2065 = vadd.f32 %v471, %v2064
        %v2066 = vpop.f32.mrb[0].mxu0
        %v2067 = vpop.f32.mrb[0].mxu0
        %v2068 = vadd.f32 %v471, %v2067
        %v2069 = vpop.f32.mrb[0].mxu0
        %2070 = vmatprep.mubr.bf16.mxu0 0
        %2071 = vmatmul.mubr.bf16.gmra.mrb[0].mxu0 %v1325
        %v2072 = vpop.f32.mrb[0].mxu0
        %v2073 = vadd.f32 %v471, %v2072
        %v2074 = vpop.f32.mrb[0].mxu0
        %v2075 = vpop.f32.mrb[0].mxu0
        %v2076 = vadd.f32 %v471, %v2075
        %v2077 = vpop.f32.mrb[0].mxu0
        %2078 = vmatprep.mubr.bf16.mxu0 0
        %2079 = vmatmul.mubr.bf16.gmra.mrb[0].mxu0 %v1328
        %v2080 = vpop.f32.mrb[0].mxu0
        %v2081 = vadd.f32 %v471, %v2080
        %v2082 = vpop.f32.mrb[0].mxu0
        %v2083 = vpop.f32.mrb[0].mxu0
        %v2084 = vadd.f32 %v471, %v2083
        %v2085 = vpop.f32.mrb[0].mxu0
        %2086 = vmatprep.mubr.bf16.mxu0 0
        %2087 = vmatmul.mubr.bf16.gmra.mrb[0].mxu0 %v1331
        %v2088 = vpop.f32.mrb[0].mxu0
        %v2089 = vadd.f32 %v471, %v2088
        %v2090 = vpop.f32.mrb[0].mxu0
        %v2091 = vpop.f32.mrb[0].mxu0
        %v2092 = vadd.f32 %v471, %v2091
        %v2093 = vpop.f32.mrb[0].mxu0
        %2094 = vmatprep.mubr.bf16.mxu0 0
        %2095 = vmatmul.mubr.bf16.gmra.mrb[0].mxu0 %v1334
        %v2096 = vpop.f32.mrb[0].mxu0
        %v2097 = vadd.f32 %v471, %v2096
        %v2098 = vpop.f32.mrb[0].mxu0
        %v2099 = vpop.f32.mrb[0].mxu0
        %v2100 = vadd.f32 %v471, %v2099
        %v2101 = vpop.f32.mrb[0].mxu0
        %2102 = vmatprep.mubr.bf16.mxu0 0
        %2103 = vmatmul.mubr.bf16.gmra.mrb[0].mxu0 %v1337
        %v2104 = vpop.f32.mrb[0].mxu0
        %v2105 = vadd.f32 %v471, %v2104
        %v2106 = vpop.f32.mrb[0].mxu0
        %v2107 = vpop.f32.mrb[0].mxu0
        %v2108 = vadd.f32 %v471, %v2107
        %v2109 = vpop.f32.mrb[0].mxu0
        %2110 = vmatprep.mubr.bf16.mxu0 0
        %2111 = vmatmul.mubr.bf16.gmra.mrb[0].mxu0 %v1340
        %v2112 = vpop.f32.mrb[0].mxu0
        %v2113 = vadd.f32 %v471, %v2112
        %v2114 = vpop.f32.mrb[0].mxu0
        %v2115 = vpop.f32.mrb[0].mxu0
        %v2116 = vadd.f32 %v471, %v2115
        %v2117 = vpop.f32.mrb[0].mxu0
        %2118 = vmatprep.mubr.bf16.mxu0 0
        %2119 = vmatmul.mubr.bf16.gmra.mrb[0].mxu0 %v1343
        %v2120 = vpop.f32.mrb[0].mxu0
        %v2121 = vadd.f32 %v471, %v2120
        %v2122 = vpop.f32.mrb[0].mxu0
        %v2123 = vpop.f32.mrb[0].mxu0
        %v2124 = vadd.f32 %v471, %v2123
        %v2125 = vpop.f32.mrb[0].mxu0
        %2126 = vmatprep.mubr.bf16.mxu0 0
        %2127 = vmatmul.mubr.bf16.gmra.mrb[0].mxu0 %v1346
        %v2128 = vpop.f32.mrb[0].mxu0
        %v2129 = vadd.f32 %v471, %v2128
        %v2130 = vpop.f32.mrb[0].mxu0
        %v2131 = vpop.f32.mrb[0].mxu0
        %v2132 = vadd.f32 %v471, %v2131
        %v2133 = vpop.f32.mrb[0].mxu0
        %2134 = vmatprep.mubr.bf16.mxu0 0
        %2135 = vmatmul.mubr.bf16.gmra.mrb[0].mxu0 %v1349
        %v2136 = vpop.f32.mrb[0].mxu0
        %v2137 = vadd.f32 %v471, %v2136
        %v2138 = vpop.f32.mrb[0].mxu0
        %v2139 = vpop.f32.mrb[0].mxu0
        %v2140 = vadd.f32 %v471, %v2139
        %v2141 = vpop.f32.mrb[0].mxu0
        %2142 = vmatprep.mubr.bf16.mxu0 0
        %2143 = vmatmul.mubr.bf16.gmra.mrb[0].mxu0 %v1352
        %v2144 = vpop.f32.mrb[0].mxu0
        %v2145 = vadd.f32 %v471, %v2144
        %v2146 = vpop.f32.mrb[0].mxu0
        %v2147 = vpop.f32.mrb[0].mxu0
        %v2148 = vadd.f32 %v471, %v2147
        %v2149 = vpop.f32.mrb[0].mxu0
        %2150 = vmatprep.mubr.bf16.mxu0 0
        %2151 = vmatmul.mubr.bf16.gmra.mrb[0].mxu0 %v1355
        %v2152 = vpop.f32.mrb[0].mxu0
        %v2153 = vadd.f32 %v471, %v2152
        %v2154 = vpop.f32.mrb[0].mxu0
        %v2155 = vpop.f32.mrb[0].mxu0
        %v2156 = vadd.f32 %v471, %v2155
        %v2157 = vpop.f32.mrb[0].mxu0
        %2158 = vmatprep.mubr.bf16.mxu0 0
        %2159 = vmatmul.mubr.bf16.gmra.mrb[0].mxu0 %v1358
        %v2160 = vpop.f32.mrb[0].mxu0
        %v2161 = vadd.f32 %v471, %v2160
        %v2162 = vpop.f32.mrb[0].mxu0
        %v2163 = vpop.f32.mrb[0].mxu0
        %v2164 = vadd.f32 %v471, %v2163
        %v2165 = vpop.f32.mrb[0].mxu0
        %2166 = vmatprep.mubr.bf16.mxu0 0
        %2167 = vmatmul.mubr.bf16.gmra.mrb[0].mxu0 %v1361
        %v2168 = vpop.f32.mrb[0].mxu0
        %v2169 = vadd.f32 %v471, %v2168
        %v2170 = vpop.f32.mrb[0].mxu0
        %v2171 = vpop.f32.mrb[0].mxu0
        %v2172 = vadd.f32 %v471, %v2171
        %v2173 = vpop.f32.mrb[0].mxu0
        %2174 = vmatprep.mubr.bf16.mxu0 0
        %2175 = vmatmul.mubr.bf16.gmra.mrb[0].mxu0 %v1364
        %v2176 = vpop.f32.mrb[0].mxu0
        %v2177 = vadd.f32 %v471, %v2176
        %v2178 = vpop.f32.mrb[0].mxu0
        %v2179 = vpop.f32.mrb[0].mxu0
        %v2180 = vadd.f32 %v471, %v2179
        %v2181 = vpop.f32.mrb[0].mxu0
        %2182 = vmatprep.mubr.bf16.mxu0 0
        %2183 = vmatmul.mubr.bf16.gmra.mrb[0].mxu0 %v1367
        %v2184 = vpop.f32.mrb[0].mxu0
        %v2185 = vadd.f32 %v471, %v2184
        %v2186 = vpop.f32.mrb[0].mxu0
        %v2187 = vpop.f32.mrb[0].mxu0
        %v2188 = vadd.f32 %v471, %v2187
        %v2189 = vpop.f32.mrb[0].mxu0
        %2190 = vmatprep.mubr.bf16.mxu0 0
        %2191 = vmatmul.mubr.bf16.gmra.mrb[0].mxu0 %v1370
        %v2192 = vpop.f32.mrb[0].mxu0
        %v2193 = vadd.f32 %v471, %v2192
        %v2194 = vpop.f32.mrb[0].mxu0
        %v2195 = vpop.f32.mrb[0].mxu0
        %v2196 = vadd.f32 %v471, %v2195
        %v2197 = vpop.f32.mrb[0].mxu0
        %2198 = vmatprep.mubr.bf16.mxu0 0
        %2199 = vmatmul.mubr.bf16.gmra.mrb[0].mxu0 %v1373
        %v2200 = vpop.f32.mrb[0].mxu0
        %v2201 = vadd.f32 %v471, %v2200
        %v2202 = vpop.f32.mrb[0].mxu0
        %v2203 = vpop.f32.mrb[0].mxu0
        %v2204 = vadd.f32 %v471, %v2203
        %v2205 = vpop.f32.mrb[0].mxu0
        %2206 = vmatprep.mubr.bf16.mxu0 0
        %2207 = vmatmul.mubr.bf16.gmra.mrb[0].mxu0 %v1376
        %v2208 = vpop.f32.mrb[0].mxu0
        %v2209 = vadd.f32 %v471, %v2208
        %v2210 = vpop.f32.mrb[0].mxu0
        %v2211 = vpop.f32.mrb[0].mxu0
        %v2212 = vadd.f32 %v471, %v2211
        %v2213 = vpop.f32.mrb[0].mxu0
        %2214 = vmatprep.mubr.bf16.mxu0 0
        %2215 = vmatmul.mubr.bf16.gmra.mrb[0].mxu0 %v1379
        %v2216 = vpop.f32.mrb[0].mxu0
        %v2217 = vadd.f32 %v471, %v2216
        %v2218 = vpop.f32.mrb[0].mxu0
        %v2219 = vpop.f32.mrb[0].mxu0
        %v2220 = vadd.f32 %v471, %v2219
        %v2221 = vpop.f32.mrb[0].mxu0
        %2222 = vmatprep.mubr.bf16.mxu0 0
        %2223 = vmatmul.mubr.bf16.gmra.mrb[0].mxu0 %v1382
        %v2224 = vpop.f32.mrb[0].mxu0
        %v2225 = vadd.f32 %v471, %v2224
        %v2226 = vpop.f32.mrb[0].mxu0
        %v2227 = vpop.f32.mrb[0].mxu0
        %v2228 = vadd.f32 %v471, %v2227
        %v2229 = vpop.f32.mrb[0].mxu0
        %2230 = vmatprep.mubr.bf16.mxu0 0
        %2231 = vmatmul.mubr.bf16.gmra.mrb[0].mxu0 %v1385
        %v2232 = vpop.f32.mrb[0].mxu0
        %v2233 = vadd.f32 %v471, %v2232
        %v2234 = vpop.f32.mrb[0].mxu0
        %v2235 = vpop.f32.mrb[0].mxu0
        %v2236 = vadd.f32 %v471, %v2235
        %v2237 = vpop.f32.mrb[0].mxu0
        %2238 = vmatprep.mubr.bf16.mxu0 0
        %2239 = vmatmul.mubr.bf16.gmra.mrb[0].mxu0 %v1388
        %v2240 = vpop.f32.mrb[0].mxu0
        %v2241 = vadd.f32 %v471, %v2240
        %v2242 = vpop.f32.mrb[0].mxu0
        %v2243 = vpop.f32.mrb[0].mxu0
        %v2244 = vadd.f32 %v471, %v2243
        %v2245 = vpop.f32.mrb[0].mxu0
        %2246 = vmatprep.mubr.bf16.mxu0 0
        %2247 = vmatmul.mubr.bf16.gmra.mrb[0].mxu0 %v1391
        %v2248 = vpop.f32.mrb[0].mxu0
        %v2249 = vadd.f32 %v471, %v2248
        %v2250 = vpop.f32.mrb[0].mxu0
        %v2251 = vpop.f32.mrb[0].mxu0
        %v2252 = vadd.f32 %v471, %v2251
        %v2253 = vpop.f32.mrb[0].mxu0
        %2254 = vmatprep.mubr.bf16.mxu0 0
        %2255 = vmatmul.mubr.bf16.gmra.mrb[0].mxu0 %v1394
        %v2256 = vpop.f32.mrb[0].mxu0
        %v2257 = vadd.f32 %v471, %v2256
        %v2258 = vpop.f32.mrb[0].mxu0
        %v2259 = vpop.f32.mrb[0].mxu0
        %v2260 = vadd.f32 %v471, %v2259
        %v2261 = vpop.f32.mrb[0].mxu0
        %2262 = vmatprep.mubr.bf16.mxu0 0
        %2263 = vmatmul.mubr.bf16.gmra.mrb[0].mxu0 %v1397
        %v2264 = vpop.f32.mrb[0].mxu0
        %v2265 = vadd.f32 %v471, %v2264
        %v2266 = vpop.f32.mrb[0].mxu0
        %v2267 = vpop.f32.mrb[0].mxu0
        %v2268 = vadd.f32 %v471, %v2267
        %v2269 = vpop.f32.mrb[0].mxu0
        %2270 = vmatprep.mubr.bf16.mxu0 0
        %2271 = vmatmul.mubr.bf16.gmra.mrb[0].mxu0 %v1400
        %v2272 = vpop.f32.mrb[0].mxu0
        %v2273 = vadd.f32 %v471, %v2272
        %v2274 = vpop.f32.mrb[0].mxu0
        %v2275 = vpop.f32.mrb[0].mxu0
        %v2276 = vadd.f32 %v471, %v2275
        %v2277 = vpop.f32.mrb[0].mxu0
        %2278 = vmatprep.mubr.bf16.mxu0 0
        %2279 = vmatmul.mubr.bf16.gmra.mrb[0].mxu0 %v1403
        %v2280 = vpop.f32.mrb[0].mxu0
        %v2281 = vadd.f32 %v471, %v2280
        %v2282 = vpop.f32.mrb[0].mxu0
        %v2283 = vpop.f32.mrb[0].mxu0
        %v2284 = vadd.f32 %v471, %v2283
        %v2285 = vpop.f32.mrb[0].mxu0
        %2286 = vmatprep.mubr.bf16.mxu0 0
        %2287 = vmatmul.mubr.bf16.gmra.mrb[0].mxu0 %v1406
        %v2288 = vpop.f32.mrb[0].mxu0
        %v2289 = vadd.f32 %v471, %v2288
        %v2290 = vpop.f32.mrb[0].mxu0
        %v2291 = vpop.f32.mrb[0].mxu0
        %v2292 = vadd.f32 %v471, %v2291
        %v2293 = vpop.f32.mrb[0].mxu0
        %2294 = vmatprep.mubr.bf16.mxu0 0
        %2295 = vmatmul.mubr.bf16.gmra.mrb[0].mxu0 %v1409
        %v2296 = vpop.f32.mrb[0].mxu0
        %v2297 = vadd.f32 %v471, %v2296
        %v2298 = vpop.f32.mrb[0].mxu0
        %v2299 = vpop.f32.mrb[0].mxu0
        %v2300 = vadd.f32 %v471, %v2299
        %v2301 = vpop.f32.mrb[0].mxu0
        %2302 = vmatprep.mubr.bf16.mxu0 0
        %2303 = vmatmul.mubr.bf16.gmra.mrb[0].mxu0 %v1412
        %v2304 = vpop.f32.mrb[0].mxu0
        %v2305 = vadd.f32 %v471, %v2304
        %v2306 = vpop.f32.mrb[0].mxu0
        %v2307 = vpop.f32.mrb[0].mxu0
        %v2308 = vadd.f32 %v471, %v2307
        %v2309 = vpop.f32.mrb[0].mxu0
        %2310 = vmatprep.mubr.bf16.mxu0 0
        %2311 = vmatmul.mubr.bf16.gmra.mrb[0].mxu0 %v1415
        %v2312 = vpop.f32.mrb[0].mxu0
        %v2313 = vadd.f32 %v471, %v2312
        %v2314 = vpop.f32.mrb[0].mxu0
        %v2315 = vpop.f32.mrb[0].mxu0
        %v2316 = vadd.f32 %v471, %v2315
        %v2317 = vpop.f32.mrb[0].mxu0
        %2318 = vmatprep.mubr.bf16.mxu0 0
        %2319 = vmatmul.mubr.bf16.gmra.mrb[0].mxu0 %v1418
        %v2320 = vpop.f32.mrb[0].mxu0
        %v2321 = vadd.f32 %v471, %v2320
        %v2322 = vpop.f32.mrb[0].mxu0
        %v2323 = vpop.f32.mrb[0].mxu0
        %v2324 = vadd.f32 %v471, %v2323
        %v2325 = vpop.f32.mrb[0].mxu0
        %2326 = vmatprep.mubr.bf16.mxu0 0
        %2327 = vmatmul.mubr.bf16.gmra.mrb[0].mxu0 %v1421
        %v2328 = vpop.f32.mrb[0].mxu0
        %v2329 = vadd.f32 %v471, %v2328
        %v2330 = vpop.f32.mrb[0].mxu0
        %v2331 = vpop.f32.mrb[0].mxu0
        %v2332 = vadd.f32 %v471, %v2331
        %v2333 = vpop.f32.mrb[0].mxu0
        %2334 = vmatprep.mubr.bf16.mxu0 0
        %2335 = vmatmul.mubr.bf16.gmra.mrb[0].mxu0 %v1424
        %v2336 = vpop.f32.mrb[0].mxu0
        %v2337 = vadd.f32 %v471, %v2336
        %v2338 = vpop.f32.mrb[0].mxu0
        %v2339 = vpop.f32.mrb[0].mxu0
        %v2340 = vadd.f32 %v471, %v2339
        %v2341 = vpop.f32.mrb[0].mxu0
        %2342 = vmatprep.mubr.bf16.mxu0 0
        %2343 = vmatmul.mubr.bf16.gmra.mrb[0].mxu0 %v1427
        %v2344 = vpop.f32.mrb[0].mxu0
        %v2345 = vadd.f32 %v471, %v2344
        %v2346 = vpop.f32.mrb[0].mxu0
        %v2347 = vpop.f32.mrb[0].mxu0
        %v2348 = vadd.f32 %v471, %v2347
        %v2349 = vpop.f32.mrb[0].mxu0
        %2350 = vmatprep.mubr.bf16.mxu0 0
        %2351 = vmatmul.mubr.bf16.gmra.mrb[0].mxu0 %v1430
        %v2352 = vpop.f32.mrb[0].mxu0
        %v2353 = vadd.f32 %v471, %v2352
        %v2354 = vpop.f32.mrb[0].mxu0
        %v2355 = vpop.f32.mrb[0].mxu0
        %v2356 = vadd.f32 %v471, %v2355
        %v2357 = vpop.f32.mrb[0].mxu0
        %2358 = vmatprep.mubr.bf16.mxu0 0
        %2359 = vmatmul.mubr.bf16.gmra.mrb[0].mxu0 %v1433
        %v2360 = vpop.f32.mrb[0].mxu0
        %v2361 = vadd.f32 %v471, %v2360
        %v2362 = vpop.f32.mrb[0].mxu0
        %v2363 = vpop.f32.mrb[0].mxu0
        %v2364 = vadd.f32 %v471, %v2363
        %v2365 = vpop.f32.mrb[0].mxu0
        %2366 = vmatprep.mubr.bf16.mxu0 0
        %2367 = vmatmul.mubr.bf16.gmra.mrb[0].mxu0 %v1436
        %v2368 = vpop.f32.mrb[0].mxu0
        %v2369 = vadd.f32 %v471, %v2368
        %v2370 = vpop.f32.mrb[0].mxu0
        %v2371 = vpop.f32.mrb[0].mxu0
        %v2372 = vadd.f32 %v471, %v2371
        %v2373 = vpop.f32.mrb[0].mxu0
        %2374 = vmatprep.mubr.bf16.mxu0 0
        %2375 = vmatmul.mubr.bf16.gmra.mrb[0].mxu0 %v1439
        %v2376 = vpop.f32.mrb[0].mxu0
        %v2377 = vadd.f32 %v471, %v2376
        %v2378 = vpop.f32.mrb[0].mxu0
        %v2379 = vpop.f32.mrb[0].mxu0
        %v2380 = vadd.f32 %v471, %v2379
        %v2381 = vpop.f32.mrb[0].mxu0
        %2382 = vmatprep.mubr.bf16.mxu0 0
        %2383 = vmatmul.mubr.bf16.gmra.mrb[0].mxu0 %v1442
        %v2384 = vpop.f32.mrb[0].mxu0
        %v2385 = vadd.f32 %v471, %v2384
        %v2386 = vpop.f32.mrb[0].mxu0
        %v2387 = vpop.f32.mrb[0].mxu0
        %v2388 = vadd.f32 %v471, %v2387
        %v2389 = vpop.f32.mrb[0].mxu0
        %2390 = vmatprep.mubr.bf16.mxu0 0
        %2391 = vmatmul.mubr.bf16.gmra.mrb[0].mxu0 %v1445
        %v2392 = vpop.f32.mrb[0].mxu0
        %v2393 = vadd.f32 %v471, %v2392
        %v2394 = vpop.f32.mrb[0].mxu0
        %v2395 = vpop.f32.mrb[0].mxu0
        %v2396 = vadd.f32 %v471, %v2395
        %v2397 = vpop.f32.mrb[0].mxu0
        %2398 = vmatprep.mubr.bf16.mxu0 0
        %2399 = vmatmul.mubr.bf16.gmra.mrb[0].mxu0 %v1448
        %v2400 = vpop.f32.mrb[0].mxu0
        %v2401 = vadd.f32 %v471, %v2400
        %v2402 = vpop.f32.mrb[0].mxu0
        %v2403 = vpop.f32.mrb[0].mxu0
        %v2404 = vadd.f32 %v471, %v2403
        %v2405 = vpop.f32.mrb[0].mxu0
        %2406 = vmatprep.mubr.bf16.mxu0 0
        %2407 = vmatmul.mubr.bf16.gmra.mrb[0].mxu0 %v1451
        %v2408 = vpop.f32.mrb[0].mxu0
        %v2409 = vadd.f32 %v471, %v2408
        %v2410 = vpop.f32.mrb[0].mxu0
        %v2411 = vpop.f32.mrb[0].mxu0
        %v2412 = vadd.f32 %v471, %v2411
        %v2413 = vpop.f32.mrb[0].mxu0
        %2414 = vmatprep.mubr.bf16.mxu0 0
        %2415 = vmatmul.mubr.bf16.gmra.mrb[0].mxu0 %v1454
        %v2416 = vpop.f32.mrb[0].mxu0
        %v2417 = vadd.f32 %v471, %v2416
        %v2418 = vpop.f32.mrb[0].mxu0
        %v2419 = vpop.f32.mrb[0].mxu0
        %v2420 = vadd.f32 %v471, %v2419
        %v2421 = vpop.f32.mrb[0].mxu0
        %2422 = vmatprep.mubr.bf16.mxu0 0
        %2423 = vmatmul.mubr.bf16.gmra.mrb[0].mxu0 %v1457
        %v2424 = vpop.f32.mrb[0].mxu0
        %v2425 = vadd.f32 %v471, %v2424
        %v2426 = vpop.f32.mrb[0].mxu0
        %v2427 = vpop.f32.mrb[0].mxu0
        %v2428 = vadd.f32 %v471, %v2427
        %v2429 = vpop.f32.mrb[0].mxu0
        %2430 = vmatprep.mubr.bf16.mxu0 0
        %2431 = vmatmul.mubr.bf16.gmra.mrb[0].mxu0 %v1460
        %v2432 = vpop.f32.mrb[0].mxu0
        %v2433 = vadd.f32 %v471, %v2432
        %v2434 = vpop.f32.mrb[0].mxu0
        %v2435 = vpop.f32.mrb[0].mxu0
        %v2436 = vadd.f32 %v471, %v2435
        %v2437 = vpop.f32.mrb[0].mxu0
        %2438 = vmatprep.mubr.bf16.mxu0 0
        %2439 = vmatmul.mubr.bf16.gmra.mrb[0].mxu0 %v1463
        %v2440 = vpop.f32.mrb[0].mxu0
        %v2441 = vadd.f32 %v471, %v2440
        %v2442 = vpop.f32.mrb[0].mxu0
        %v2443 = vpop.f32.mrb[0].mxu0
        %v2444 = vadd.f32 %v471, %v2443
        %v2445 = vpop.f32.mrb[0].mxu0
        %2446 = vmatprep.mubr.bf16.mxu0 0
        %2447 = vmatmul.mubr.bf16.gmra.mrb[0].mxu0 %v1466
        %v2448 = vpop.f32.mrb[0].mxu0
        %v2449 = vadd.f32 %v471, %v2448
        %v2450 = vpop.f32.mrb[0].mxu0
        %v2451 = vpop.f32.mrb[0].mxu0
        %v2452 = vadd.f32 %v471, %v2451
        %v2453 = vpop.f32.mrb[0].mxu0
        %2454 = vmatprep.mubr.bf16.mxu0 0
        %2455 = vmatmul.mubr.bf16.gmra.mrb[0].mxu0 %v1469
        %v2456 = vpop.f32.mrb[0].mxu0
        %v2457 = vadd.f32 %v471, %v2456
        %v2458 = vpop.f32.mrb[0].mxu0
        %v2459 = vpop.f32.mrb[0].mxu0
        %v2460 = vadd.f32 %v471, %v2459
        %v2461 = vpop.f32.mrb[0].mxu0
        %2462 = vmatprep.mubr.bf16.mxu0 0
        %2463 = vmatmul.mubr.bf16.gmra.mrb[0].mxu0 %v1472
        %v2464 = vpop.f32.mrb[0].mxu0
        %v2465 = vadd.f32 %v471, %v2464
        %v2466 = vpop.f32.mrb[0].mxu0
        %v2467 = vpop.f32.mrb[0].mxu0
        %v2468 = vadd.f32 %v471, %v2467
        %v2469 = vpop.f32.mrb[0].mxu0
        %2470 = vmatprep.mubr.bf16.mxu0 0
        %2471 = vmatmul.mubr.bf16.gmra.mrb[0].mxu0 %v1475
        %v2472 = vpop.f32.mrb[0].mxu0
        %v2473 = vadd.f32 %v471, %v2472
        %v2474 = vpop.f32.mrb[0].mxu0
        %v2475 = vpop.f32.mrb[0].mxu0
        %v2476 = vadd.f32 %v471, %v2475
        %v2477 = vpop.f32.mrb[0].mxu0
        %2478 = vmatprep.mubr.bf16.mxu0 0
        %2479 = vmatmul.mubr.bf16.gmra.mrb[0].mxu0 %v1478
        %v2480 = vpop.f32.mrb[0].mxu0
        %v2481 = vadd.f32 %v471, %v2480
        %v2482 = vpop.f32.mrb[0].mxu0
        %v2483 = vpop.f32.mrb[0].mxu0
        %v2484 = vadd.f32 %v471, %v2483
        %v2485 = vpop.f32.mrb[0].mxu0
        %2486 = vmatprep.mubr.bf16.mxu0 0
        %2487 = vmatmul.mubr.bf16.gmra.mrb[0].mxu0 %v1481
        %v2488 = vpop.f32.mrb[0].mxu0
        %v2489 = vadd.f32 %v471, %v2488
        %v2490 = vpop.f32.mrb[0].mxu0
        %v2491 = vpop.f32.mrb[0].mxu0
        %v2492 = vadd.f32 %v471, %v2491
        %v2493 = vpop.f32.mrb[0].mxu0
        %2494 = vmatprep.mubr.bf16.mxu0 0
        %2495 = vmatmul.mubr.bf16.gmra.mrb[0].mxu0 %v1484
        %v2496 = vpop.f32.mrb[0].mxu0
        %v2497 = vadd.f32 %v471, %v2496
        %v2498 = vpop.f32.mrb[0].mxu0
        %v2499 = vpop.f32.mrb[0].mxu0
        %v2500 = vadd.f32 %v471, %v2499
        %v2501 = vpop.f32.mrb[0].mxu0
        %2502 = vmatprep.mubr.bf16.mxu0 0
        %2503 = vmatmul.mubr.bf16.gmra.mrb[0].mxu0 %v1487
        %v2504 = vpop.f32.mrb[0].mxu0
        %v2505 = vadd.f32 %v471, %v2504
        %v2506 = vpop.f32.mrb[0].mxu0
        %v2507 = vpop.f32.mrb[0].mxu0
        %v2508 = vadd.f32 %v471, %v2507
        %v2509 = vpop.f32.mrb[0].mxu0
        %2510 = vmatprep.mubr.bf16.mxu0 0
        %2511 = vmatmul.mubr.bf16.gmra.mrb[0].mxu0 %v1490
        %v2512 = vpop.f32.mrb[0].mxu0
        %v2513 = vadd.f32 %v471, %v2512
        %v2514 = vpop.f32.mrb[0].mxu0
        %v2515 = vpop.f32.mrb[0].mxu0
        %v2516 = vadd.f32 %v471, %v2515
        %v2517 = vpop.f32.mrb[0].mxu0
        %2518 = vmatprep.mubr.bf16.mxu0 0
        %2519 = vmatmul.mubr.bf16.gmra.mrb[0].mxu0 %v1493
        %v2520 = vpop.f32.mrb[0].mxu0
        %v2521 = vadd.f32 %v471, %v2520
        %v2522 = vpop.f32.mrb[0].mxu0
        %v2523 = vpop.f32.mrb[0].mxu0
        %v2524 = vadd.f32 %v471, %v2523
        %v2525 = vpop.f32.mrb[0].mxu0
        %2526 = vmatprep.mubr.bf16.mxu0 0
        %2527 = vmatmul.mubr.bf16.gmra.mrb[0].mxu0 %v1496
        %v2528 = vpop.f32.mrb[0].mxu0
        %v2529 = vadd.f32 %v471, %v2528
        %v2530 = vpop.f32.mrb[0].mxu0
        %v2531 = vpop.f32.mrb[0].mxu0
        %v2532 = vadd.f32 %v471, %v2531
        %v2533 = vpop.f32.mrb[0].mxu0
        %2534 = vmatprep.mubr.bf16.mxu0 0
        %2535 = vmatmul.mubr.bf16.gmra.mrb[0].mxu0 %v1499
        %v2536 = vpop.f32.mrb[0].mxu0
        %v2537 = vadd.f32 %v471, %v2536
        %v2538 = vpop.f32.mrb[0].mxu0
        %v2539 = vpop.f32.mrb[0].mxu0
        %v2540 = vadd.f32 %v471, %v2539
        %v2541 = vpop.f32.mrb[0].mxu0
        %2542 = vmatprep.mubr.bf16.mxu0 0
        %2543 = vmatmul.mubr.bf16.gmra.mrb[0].mxu0 %v1502
        %v2544 = vpop.f32.mrb[0].mxu0
        %v2545 = vadd.f32 %v471, %v2544
        %v2546 = vpop.f32.mrb[0].mxu0
        %v2547 = vpop.f32.mrb[0].mxu0
        %v2548 = vadd.f32 %v471, %v2547
        %v2549 = vpop.f32.mrb[0].mxu0
        %2550 = vmatprep.mubr.bf16.mxu0 0
        %2551 = vmatmul.mubr.bf16.gmra.mrb[0].mxu0 %v1505
        %v2552 = vpop.f32.mrb[0].mxu0
        %v2553 = vadd.f32 %v471, %v2552
        %v2554 = vpop.f32.mrb[0].mxu0
        %v2555 = vpop.f32.mrb[0].mxu0
        %v2556 = vadd.f32 %v471, %v2555
        %v2557 = vpop.f32.mrb[0].mxu0
        %2558 = vmatprep.mubr.bf16.mxu0 0
        %2559 = vmatmul.mubr.bf16.gmra.mrb[0].mxu0 %v1508
        %v2560 = vpop.f32.mrb[0].mxu0
        %v2561 = vadd.f32 %v471, %v2560
        %v2562 = vpop.f32.mrb[0].mxu0
        %v2563 = vpop.f32.mrb[0].mxu0
        %v2564 = vadd.f32 %v471, %v2563
        %v2565 = vpop.f32.mrb[0].mxu0
        %2566 = vdwg.mxu0
        %v2567 = vmax.f32 %v1545, 0.0
        %v2568 = vmax.f32 %v1548, 0.0
        %v2569 = vmax.f32 %v1553, 0.0
        %v2570 = vmax.f32 %v1556, 0.0
        %v2571 = vmax.f32 %v1561, 0.0
        %v2572 = vmax.f32 %v1564, 0.0
        %v2573 = vmax.f32 %v1569, 0.0
        %v2574 = vmax.f32 %v1572, 0.0
        %v2575 = vmax.f32 %v1577, 0.0
        %v2576 = vmax.f32 %v1580, 0.0
        %v2577 = vmax.f32 %v1585, 0.0
        %v2578 = vmax.f32 %v1588, 0.0
        %v2579 = vmax.f32 %v1593, 0.0
        %v2580 = vmax.f32 %v1596, 0.0
        %v2581 = vmax.f32 %v1601, 0.0
        %v2582 = vmax.f32 %v1604, 0.0
        %v2583 = vmax.f32 %v1609, 0.0
        %v2584 = vmax.f32 %v1612, 0.0
        %v2585 = vmax.f32 %v1617, 0.0
        %v2586 = vmax.f32 %v1620, 0.0
        %v2587 = vmax.f32 %v1625, 0.0
        %v2588 = vmax.f32 %v1628, 0.0
        %v2589 = vmax.f32 %v1633, 0.0
        %v2590 = vmax.f32 %v1636, 0.0
        %v2591 = vmax.f32 %v1641, 0.0
        %v2592 = vmax.f32 %v1644, 0.0
        %v2593 = vmax.f32 %v1649, 0.0
        %v2594 = vmax.f32 %v1652, 0.0
        %v2595 = vmax.f32 %v1657, 0.0
        %v2596 = vmax.f32 %v1660, 0.0
        %v2597 = vmax.f32 %v1665, 0.0
        %v2598 = vmax.f32 %v1668, 0.0
        %v2599 = vmax.f32 %v1673, 0.0
        %v2600 = vmax.f32 %v1676, 0.0
        %v2601 = vmax.f32 %v1681, 0.0
        %v2602 = vmax.f32 %v1684, 0.0
        %v2603 = vmax.f32 %v1689, 0.0
        %v2604 = vmax.f32 %v1692, 0.0
        %v2605 = vmax.f32 %v1697, 0.0
        %v2606 = vmax.f32 %v1700, 0.0
        %v2607 = vmax.f32 %v1705, 0.0
        %v2608 = vmax.f32 %v1708, 0.0
        %v2609 = vmax.f32 %v1713, 0.0
        %v2610 = vmax.f32 %v1716, 0.0
        %v2611 = vmax.f32 %v1721, 0.0
        %v2612 = vmax.f32 %v1724, 0.0
        %v2613 = vmax.f32 %v1729, 0.0
        %v2614 = vmax.f32 %v1732, 0.0
        %v2615 = vmax.f32 %v1737, 0.0
        %v2616 = vmax.f32 %v1740, 0.0
        %v2617 = vmax.f32 %v1745, 0.0
        %v2618 = vmax.f32 %v1748, 0.0
        %v2619 = vmax.f32 %v1753, 0.0
        %v2620 = vmax.f32 %v1756, 0.0
        %v2621 = vmax.f32 %v1761, 0.0
        %v2622 = vmax.f32 %v1764, 0.0
        %v2623 = vmax.f32 %v1769, 0.0
        %v2624 = vmax.f32 %v1772, 0.0
        %v2625 = vmax.f32 %v1777, 0.0
        %v2626 = vmax.f32 %v1780, 0.0
        %v2627 = vmax.f32 %v1785, 0.0
        %v2628 = vmax.f32 %v1788, 0.0
        %v2629 = vmax.f32 %v1793, 0.0
        %v2630 = vmax.f32 %v1796, 0.0
        %v2631 = vmax.f32 %v1801, 0.0
        %v2632 = vmax.f32 %v1804, 0.0
        %v2633 = vmax.f32 %v1809, 0.0
        %v2634 = vmax.f32 %v1812, 0.0
        %v2635 = vmax.f32 %v1817, 0.0
        %v2636 = vmax.f32 %v1820, 0.0
        %v2637 = vmax.f32 %v1825, 0.0
        %v2638 = vmax.f32 %v1828, 0.0
        %v2639 = vmax.f32 %v1833, 0.0
        %v2640 = vmax.f32 %v1836, 0.0
        %v2641 = vmax.f32 %v1841, 0.0
        %v2642 = vmax.f32 %v1844, 0.0
        %v2643 = vmax.f32 %v1849, 0.0
        %v2644 = vmax.f32 %v1852, 0.0
        %v2645 = vmax.f32 %v1857, 0.0
        %v2646 = vmax.f32 %v1860, 0.0
        %v2647 = vmax.f32 %v1865, 0.0
        %v2648 = vmax.f32 %v1868, 0.0
        %v2649 = vmax.f32 %v1873, 0.0
        %v2650 = vmax.f32 %v1876, 0.0
        %v2651 = vmax.f32 %v1881, 0.0
        %v2652 = vmax.f32 %v1884, 0.0
        %v2653 = vmax.f32 %v1889, 0.0
        %v2654 = vmax.f32 %v1892, 0.0
        %v2655 = vmax.f32 %v1897, 0.0
        %v2656 = vmax.f32 %v1900, 0.0
        %v2657 = vmax.f32 %v1905, 0.0
        %v2658 = vmax.f32 %v1908, 0.0
        %v2659 = vmax.f32 %v1913, 0.0
        %v2660 = vmax.f32 %v1916, 0.0
        %v2661 = vmax.f32 %v1921, 0.0
        %v2662 = vmax.f32 %v1924, 0.0
        %v2663 = vmax.f32 %v1929, 0.0
        %v2664 = vmax.f32 %v1932, 0.0
        %v2665 = vmax.f32 %v1937, 0.0
        %v2666 = vmax.f32 %v1940, 0.0
        %v2667 = vmax.f32 %v1945, 0.0
        %v2668 = vmax.f32 %v1948, 0.0
        %v2669 = vmax.f32 %v1953, 0.0
        %v2670 = vmax.f32 %v1956, 0.0
        %v2671 = vmax.f32 %v1961, 0.0
        %v2672 = vmax.f32 %v1964, 0.0
        %v2673 = vmax.f32 %v1969, 0.0
        %v2674 = vmax.f32 %v1972, 0.0
        %v2675 = vmax.f32 %v1977, 0.0
        %v2676 = vmax.f32 %v1980, 0.0
        %v2677 = vmax.f32 %v1985, 0.0
        %v2678 = vmax.f32 %v1988, 0.0
        %v2679 = vmax.f32 %v1993, 0.0
        %v2680 = vmax.f32 %v1996, 0.0
        %v2681 = vmax.f32 %v2001, 0.0
        %v2682 = vmax.f32 %v2004, 0.0
        %v2683 = vmax.f32 %v2009, 0.0
        %v2684 = vmax.f32 %v2012, 0.0
        %v2685 = vmax.f32 %v2017, 0.0
        %v2686 = vmax.f32 %v2020, 0.0
        %v2687 = vmax.f32 %v2025, 0.0
        %v2688 = vmax.f32 %v2028, 0.0
        %v2689 = vmax.f32 %v2033, 0.0
        %v2690 = vmax.f32 %v2036, 0.0
        %v2691 = vmax.f32 %v2041, 0.0
        %v2692 = vmax.f32 %v2044, 0.0
        %v2693 = vmax.f32 %v2049, 0.0
        %v2694 = vmax.f32 %v2052, 0.0
        %v2695 = vmax.f32 %v2057, 0.0
        %v2696 = vmax.f32 %v2060, 0.0
        %v2697 = vmax.f32 %v2065, 0.0
        %v2698 = vmax.f32 %v2068, 0.0
        %v2699 = vmax.f32 %v2073, 0.0
        %v2700 = vmax.f32 %v2076, 0.0
        %v2701 = vmax.f32 %v2081, 0.0
        %v2702 = vmax.f32 %v2084, 0.0
        %v2703 = vmax.f32 %v2089, 0.0
        %v2704 = vmax.f32 %v2092, 0.0
        %v2705 = vmax.f32 %v2097, 0.0
        %v2706 = vmax.f32 %v2100, 0.0
        %v2707 = vmax.f32 %v2105, 0.0
        %v2708 = vmax.f32 %v2108, 0.0
        %v2709 = vmax.f32 %v2113, 0.0
        %v2710 = vmax.f32 %v2116, 0.0
        %v2711 = vmax.f32 %v2121, 0.0
        %v2712 = vmax.f32 %v2124, 0.0
        %v2713 = vmax.f32 %v2129, 0.0
        %v2714 = vmax.f32 %v2132, 0.0
        %v2715 = vmax.f32 %v2137, 0.0
        %v2716 = vmax.f32 %v2140, 0.0
        %v2717 = vmax.f32 %v2145, 0.0
        %v2718 = vmax.f32 %v2148, 0.0
        %v2719 = vmax.f32 %v2153, 0.0
        %v2720 = vmax.f32 %v2156, 0.0
        %v2721 = vmax.f32 %v2161, 0.0
        %v2722 = vmax.f32 %v2164, 0.0
        %v2723 = vmax.f32 %v2169, 0.0
        %v2724 = vmax.f32 %v2172, 0.0
        %v2725 = vmax.f32 %v2177, 0.0
        %v2726 = vmax.f32 %v2180, 0.0
        %v2727 = vmax.f32 %v2185, 0.0
        %v2728 = vmax.f32 %v2188, 0.0
        %v2729 = vmax.f32 %v2193, 0.0
        %v2730 = vmax.f32 %v2196, 0.0
        %v2731 = vmax.f32 %v2201, 0.0
        %v2732 = vmax.f32 %v2204, 0.0
        %v2733 = vmax.f32 %v2209, 0.0
        %v2734 = vmax.f32 %v2212, 0.0
        %v2735 = vmax.f32 %v2217, 0.0
        %v2736 = vmax.f32 %v2220, 0.0
        %v2737 = vmax.f32 %v2225, 0.0
        %v2738 = vmax.f32 %v2228, 0.0
        %v2739 = vmax.f32 %v2233, 0.0
        %v2740 = vmax.f32 %v2236, 0.0
        %v2741 = vmax.f32 %v2241, 0.0
        %v2742 = vmax.f32 %v2244, 0.0
        %v2743 = vmax.f32 %v2249, 0.0
        %v2744 = vmax.f32 %v2252, 0.0
        %v2745 = vmax.f32 %v2257, 0.0
        %v2746 = vmax.f32 %v2260, 0.0
        %v2747 = vmax.f32 %v2265, 0.0
        %v2748 = vmax.f32 %v2268, 0.0
        %v2749 = vmax.f32 %v2273, 0.0
        %v2750 = vmax.f32 %v2276, 0.0
        %v2751 = vmax.f32 %v2281, 0.0
        %v2752 = vmax.f32 %v2284, 0.0
        %v2753 = vmax.f32 %v2289, 0.0
        %v2754 = vmax.f32 %v2292, 0.0
        %v2755 = vmax.f32 %v2297, 0.0
        %v2756 = vmax.f32 %v2300, 0.0
        %v2757 = vmax.f32 %v2305, 0.0
        %v2758 = vmax.f32 %v2308, 0.0
        %v2759 = vmax.f32 %v2313, 0.0
        %v2760 = vmax.f32 %v2316, 0.0
        %v2761 = vmax.f32 %v2321, 0.0
        %v2762 = vmax.f32 %v2324, 0.0
        %v2763 = vmax.f32 %v2329, 0.0
        %v2764 = vmax.f32 %v2332, 0.0
        %v2765 = vmax.f32 %v2337, 0.0
        %v2766 = vmax.f32 %v2340, 0.0
        %v2767 = vmax.f32 %v2345, 0.0
        %v2768 = vmax.f32 %v2348, 0.0
        %v2769 = vmax.f32 %v2353, 0.0
        %v2770 = vmax.f32 %v2356, 0.0
        %v2771 = vmax.f32 %v2361, 0.0
        %v2772 = vmax.f32 %v2364, 0.0
        %v2773 = vmax.f32 %v2369, 0.0
        %v2774 = vmax.f32 %v2372, 0.0
        %v2775 = vmax.f32 %v2377, 0.0
        %v2776 = vmax.f32 %v2380, 0.0
        %v2777 = vmax.f32 %v2385, 0.0
        %v2778 = vmax.f32 %v2388, 0.0
        %v2779 = vmax.f32 %v2393, 0.0
        %v2780 = vmax.f32 %v2396, 0.0
        %v2781 = vmax.f32 %v2401, 0.0
        %v2782 = vmax.f32 %v2404, 0.0
        %v2783 = vmax.f32 %v2409, 0.0
        %v2784 = vmax.f32 %v2412, 0.0
        %v2785 = vmax.f32 %v2417, 0.0
        %v2786 = vmax.f32 %v2420, 0.0
        %v2787 = vmax.f32 %v2425, 0.0
        %v2788 = vmax.f32 %v2428, 0.0
        %v2789 = vmax.f32 %v2433, 0.0
        %v2790 = vmax.f32 %v2436, 0.0
        %v2791 = vmax.f32 %v2441, 0.0
        %v2792 = vmax.f32 %v2444, 0.0
        %v2793 = vmax.f32 %v2449, 0.0
        %v2794 = vmax.f32 %v2452, 0.0
        %v2795 = vmax.f32 %v2457, 0.0
        %v2796 = vmax.f32 %v2460, 0.0
        %v2797 = vmax.f32 %v2465, 0.0
        %v2798 = vmax.f32 %v2468, 0.0
        %v2799 = vmax.f32 %v2473, 0.0
        %v2800 = vmax.f32 %v2476, 0.0
        %v2801 = vmax.f32 %v2481, 0.0
        %v2802 = vmax.f32 %v2484, 0.0
        %v2803 = vmax.f32 %v2489, 0.0
        %v2804 = vmax.f32 %v2492, 0.0
        %v2805 = vmax.f32 %v2497, 0.0
        %v2806 = vmax.f32 %v2500, 0.0
        %v2807 = vmax.f32 %v2505, 0.0
        %v2808 = vmax.f32 %v2508, 0.0
        %v2809 = vmax.f32 %v2513, 0.0
        %v2810 = vmax.f32 %v2516, 0.0
        %v2811 = vmax.f32 %v2521, 0.0
        %v2812 = vmax.f32 %v2524, 0.0
        %v2813 = vmax.f32 %v2529, 0.0
        %v2814 = vmax.f32 %v2532, 0.0
        %v2815 = vmax.f32 %v2537, 0.0
        %v2816 = vmax.f32 %v2540, 0.0
        %v2817 = vmax.f32 %v2545, 0.0
        %v2818 = vmax.f32 %v2548, 0.0
        %v2819 = vmax.f32 %v2553, 0.0
        %v2820 = vmax.f32 %v2556, 0.0
        %v2821 = vmax.f32 %v2561, 0.0
        %v2822 = vmax.f32 %v2564, 0.0
        %v2823 = vpack.c.bf16 %v2568, %v2567
        %v2824 = vpack.c.bf16 %v2570, %v2569
        %v2825 = vpack.c.bf16 %v2572, %v2571
        %v2826 = vpack.c.bf16 %v2574, %v2573
        %v2827 = vpack.c.bf16 %v2576, %v2575
        %v2828 = vpack.c.bf16 %v2578, %v2577
        %v2829 = vpack.c.bf16 %v2580, %v2579
        %v2830 = vpack.c.bf16 %v2582, %v2581
        %v2831 = vpack.c.bf16 %v2584, %v2583
        %v2832 = vpack.c.bf16 %v2586, %v2585
        %v2833 = vpack.c.bf16 %v2588, %v2587
        %v2834 = vpack.c.bf16 %v2590, %v2589
        %v2835 = vpack.c.bf16 %v2592, %v2591
        %v2836 = vpack.c.bf16 %v2594, %v2593
        %v2837 = vpack.c.bf16 %v2596, %v2595
        %v2838 = vpack.c.bf16 %v2598, %v2597
        %v2839 = vpack.c.bf16 %v2600, %v2599
        %v2840 = vpack.c.bf16 %v2602, %v2601
        %v2841 = vpack.c.bf16 %v2604, %v2603
        %v2842 = vpack.c.bf16 %v2606, %v2605
        %v2843 = vpack.c.bf16 %v2608, %v2607
        %v2844 = vpack.c.bf16 %v2610, %v2609
        %v2845 = vpack.c.bf16 %v2612, %v2611
        %v2846 = vpack.c.bf16 %v2614, %v2613
        %v2847 = vpack.c.bf16 %v2616, %v2615
        %v2848 = vpack.c.bf16 %v2618, %v2617
        %v2849 = vpack.c.bf16 %v2620, %v2619
        %v2850 = vpack.c.bf16 %v2622, %v2621
        %v2851 = vpack.c.bf16 %v2624, %v2623
        %v2852 = vpack.c.bf16 %v2626, %v2625
        %v2853 = vpack.c.bf16 %v2628, %v2627
        %v2854 = vpack.c.bf16 %v2630, %v2629
        %v2855 = vpack.c.bf16 %v2632, %v2631
        %v2856 = vpack.c.bf16 %v2634, %v2633
        %v2857 = vpack.c.bf16 %v2636, %v2635
        %v2858 = vpack.c.bf16 %v2638, %v2637
        %v2859 = vpack.c.bf16 %v2640, %v2639
        %v2860 = vpack.c.bf16 %v2642, %v2641
        %v2861 = vpack.c.bf16 %v2644, %v2643
        %v2862 = vpack.c.bf16 %v2646, %v2645
        %v2863 = vpack.c.bf16 %v2648, %v2647
        %v2864 = vpack.c.bf16 %v2650, %v2649
        %v2865 = vpack.c.bf16 %v2652, %v2651
        %v2866 = vpack.c.bf16 %v2654, %v2653
        %v2867 = vpack.c.bf16 %v2656, %v2655
        %v2868 = vpack.c.bf16 %v2658, %v2657
        %v2869 = vpack.c.bf16 %v2660, %v2659
        %v2870 = vpack.c.bf16 %v2662, %v2661
        %v2871 = vpack.c.bf16 %v2664, %v2663
        %v2872 = vpack.c.bf16 %v2666, %v2665
        %v2873 = vpack.c.bf16 %v2668, %v2667
        %v2874 = vpack.c.bf16 %v2670, %v2669
        %v2875 = vpack.c.bf16 %v2672, %v2671
        %v2876 = vpack.c.bf16 %v2674, %v2673
        %v2877 = vpack.c.bf16 %v2676, %v2675
        %v2878 = vpack.c.bf16 %v2678, %v2677
        %v2879 = vpack.c.bf16 %v2680, %v2679
        %v2880 = vpack.c.bf16 %v2682, %v2681
        %v2881 = vpack.c.bf16 %v2684, %v2683
        %v2882 = vpack.c.bf16 %v2686, %v2685
        %v2883 = vpack.c.bf16 %v2688, %v2687
        %v2884 = vpack.c.bf16 %v2690, %v2689
        %v2885 = vpack.c.bf16 %v2692, %v2691
        %v2886 = vpack.c.bf16 %v2694, %v2693
        %v2887 = vpack.c.bf16 %v2696, %v2695
        %v2888 = vpack.c.bf16 %v2698, %v2697
        %v2889 = vpack.c.bf16 %v2700, %v2699
        %v2890 = vpack.c.bf16 %v2702, %v2701
        %v2891 = vpack.c.bf16 %v2704, %v2703
        %v2892 = vpack.c.bf16 %v2706, %v2705
        %v2893 = vpack.c.bf16 %v2708, %v2707
        %v2894 = vpack.c.bf16 %v2710, %v2709
        %v2895 = vpack.c.bf16 %v2712, %v2711
        %v2896 = vpack.c.bf16 %v2714, %v2713
        %v2897 = vpack.c.bf16 %v2716, %v2715
        %v2898 = vpack.c.bf16 %v2718, %v2717
        %v2899 = vpack.c.bf16 %v2720, %v2719
        %v2900 = vpack.c.bf16 %v2722, %v2721
        %v2901 = vpack.c.bf16 %v2724, %v2723
        %v2902 = vpack.c.bf16 %v2726, %v2725
        %v2903 = vpack.c.bf16 %v2728, %v2727
        %v2904 = vpack.c.bf16 %v2730, %v2729
        %v2905 = vpack.c.bf16 %v2732, %v2731
        %v2906 = vpack.c.bf16 %v2734, %v2733
        %v2907 = vpack.c.bf16 %v2736, %v2735
        %v2908 = vpack.c.bf16 %v2738, %v2737
        %v2909 = vpack.c.bf16 %v2740, %v2739
        %v2910 = vpack.c.bf16 %v2742, %v2741
        %v2911 = vpack.c.bf16 %v2744, %v2743
        %v2912 = vpack.c.bf16 %v2746, %v2745
        %v2913 = vpack.c.bf16 %v2748, %v2747
        %v2914 = vpack.c.bf16 %v2750, %v2749
        %v2915 = vpack.c.bf16 %v2752, %v2751
        %v2916 = vpack.c.bf16 %v2754, %v2753
        %v2917 = vpack.c.bf16 %v2756, %v2755
        %v2918 = vpack.c.bf16 %v2758, %v2757
        %v2919 = vpack.c.bf16 %v2760, %v2759
        %v2920 = vpack.c.bf16 %v2762, %v2761
        %v2921 = vpack.c.bf16 %v2764, %v2763
        %v2922 = vpack.c.bf16 %v2766, %v2765
        %v2923 = vpack.c.bf16 %v2768, %v2767
        %v2924 = vpack.c.bf16 %v2770, %v2769
        %v2925 = vpack.c.bf16 %v2772, %v2771
        %v2926 = vpack.c.bf16 %v2774, %v2773
        %v2927 = vpack.c.bf16 %v2776, %v2775
        %v2928 = vpack.c.bf16 %v2778, %v2777
        %v2929 = vpack.c.bf16 %v2780, %v2779
        %v2930 = vpack.c.bf16 %v2782, %v2781
        %v2931 = vpack.c.bf16 %v2784, %v2783
        %v2932 = vpack.c.bf16 %v2786, %v2785
        %v2933 = vpack.c.bf16 %v2788, %v2787
        %v2934 = vpack.c.bf16 %v2790, %v2789
        %v2935 = vpack.c.bf16 %v2792, %v2791
        %v2936 = vpack.c.bf16 %v2794, %v2793
        %v2937 = vpack.c.bf16 %v2796, %v2795
        %v2938 = vpack.c.bf16 %v2798, %v2797
        %v2939 = vpack.c.bf16 %v2800, %v2799
        %v2940 = vpack.c.bf16 %v2802, %v2801
        %v2941 = vpack.c.bf16 %v2804, %v2803
        %v2942 = vpack.c.bf16 %v2806, %v2805
        %v2943 = vpack.c.bf16 %v2808, %v2807
        %v2944 = vpack.c.bf16 %v2810, %v2809
        %v2945 = vpack.c.bf16 %v2812, %v2811
        %v2946 = vpack.c.bf16 %v2814, %v2813
        %v2947 = vpack.c.bf16 %v2816, %v2815
        %v2948 = vpack.c.bf16 %v2818, %v2817
        %v2949 = vpack.c.bf16 %v2820, %v2819
        %v2950 = vpack.c.bf16 %v2822, %v2821
        %v3079 = vunpack.c.l.b16 %v2823
        %v3080 = vunpack.c.h.b16 %v2823
        %v3081 = vunpack.c.l.b16 %v2824
        %v3082 = vunpack.c.h.b16 %v2824
        %v3083 = vunpack.c.l.b16 %v2825
        %v3084 = vunpack.c.h.b16 %v2825
        %v3085 = vunpack.c.l.b16 %v2826
        %v3086 = vunpack.c.h.b16 %v2826
        %v3087 = vunpack.c.l.b16 %v2827
        %v3088 = vunpack.c.h.b16 %v2827
        %v3089 = vunpack.c.l.b16 %v2828
        %v3090 = vunpack.c.h.b16 %v2828
        %v3091 = vunpack.c.l.b16 %v2829
        %v3092 = vunpack.c.h.b16 %v2829
        %v3093 = vunpack.c.l.b16 %v2830
        %v3094 = vunpack.c.h.b16 %v2830
        %v3095 = vunpack.c.l.b16 %v2831
        %v3096 = vunpack.c.h.b16 %v2831
        %v3097 = vunpack.c.l.b16 %v2832
        %v3098 = vunpack.c.h.b16 %v2832
        %v3099 = vunpack.c.l.b16 %v2833
        %v3100 = vunpack.c.h.b16 %v2833
        %v3101 = vunpack.c.l.b16 %v2834
        %v3102 = vunpack.c.h.b16 %v2834
        %v3103 = vunpack.c.l.b16 %v2835
        %v3104 = vunpack.c.h.b16 %v2835
        %v3105 = vunpack.c.l.b16 %v2836
        %v3106 = vunpack.c.h.b16 %v2836
        %v3107 = vunpack.c.l.b16 %v2837
        %v3108 = vunpack.c.h.b16 %v2837
        %v3109 = vunpack.c.l.b16 %v2838
        %v3110 = vunpack.c.h.b16 %v2838
        %v3111 = vunpack.c.l.b16 %v2839
        %v3112 = vunpack.c.h.b16 %v2839
        %v3113 = vunpack.c.l.b16 %v2840
        %v3114 = vunpack.c.h.b16 %v2840
        %v3115 = vunpack.c.l.b16 %v2841
        %v3116 = vunpack.c.h.b16 %v2841
        %v3117 = vunpack.c.l.b16 %v2842
        %v3118 = vunpack.c.h.b16 %v2842
        %v3119 = vunpack.c.l.b16 %v2843
        %v3120 = vunpack.c.h.b16 %v2843
        %v3121 = vunpack.c.l.b16 %v2844
        %v3122 = vunpack.c.h.b16 %v2844
        %v3123 = vunpack.c.l.b16 %v2845
        %v3124 = vunpack.c.h.b16 %v2845
        %v3125 = vunpack.c.l.b16 %v2846
        %v3126 = vunpack.c.h.b16 %v2846
        %v3127 = vunpack.c.l.b16 %v2847
        %v3128 = vunpack.c.h.b16 %v2847
        %v3129 = vunpack.c.l.b16 %v2848
        %v3130 = vunpack.c.h.b16 %v2848
        %v3131 = vunpack.c.l.b16 %v2849
        %v3132 = vunpack.c.h.b16 %v2849
        %v3133 = vunpack.c.l.b16 %v2850
        %v3134 = vunpack.c.h.b16 %v2850
        %v3135 = vunpack.c.l.b16 %v2851
        %v3136 = vunpack.c.h.b16 %v2851
        %v3137 = vunpack.c.l.b16 %v2852
        %v3138 = vunpack.c.h.b16 %v2852
        %v3139 = vunpack.c.l.b16 %v2853
        %v3140 = vunpack.c.h.b16 %v2853
        %v3141 = vunpack.c.l.b16 %v2854
        %v3142 = vunpack.c.h.b16 %v2854
        %v3143 = vunpack.c.l.b16 %v2855
        %v3144 = vunpack.c.h.b16 %v2855
        %v3145 = vunpack.c.l.b16 %v2856
        %v3146 = vunpack.c.h.b16 %v2856
        %v3147 = vunpack.c.l.b16 %v2857
        %v3148 = vunpack.c.h.b16 %v2857
        %v3149 = vunpack.c.l.b16 %v2858
        %v3150 = vunpack.c.h.b16 %v2858
        %v3151 = vunpack.c.l.b16 %v2859
        %v3152 = vunpack.c.h.b16 %v2859
        %v3153 = vunpack.c.l.b16 %v2860
        %v3154 = vunpack.c.h.b16 %v2860
        %v3155 = vunpack.c.l.b16 %v2861
        %v3156 = vunpack.c.h.b16 %v2861
        %v3157 = vunpack.c.l.b16 %v2862
        %v3158 = vunpack.c.h.b16 %v2862
        %v3159 = vunpack.c.l.b16 %v2863
        %v3160 = vunpack.c.h.b16 %v2863
        %v3161 = vunpack.c.l.b16 %v2864
        %v3162 = vunpack.c.h.b16 %v2864
        %v3163 = vunpack.c.l.b16 %v2865
        %v3164 = vunpack.c.h.b16 %v2865
        %v3165 = vunpack.c.l.b16 %v2866
        %v3166 = vunpack.c.h.b16 %v2866
        %v3167 = vunpack.c.l.b16 %v2867
        %v3168 = vunpack.c.h.b16 %v2867
        %v3169 = vunpack.c.l.b16 %v2868
        %v3170 = vunpack.c.h.b16 %v2868
        %v3171 = vunpack.c.l.b16 %v2869
        %v3172 = vunpack.c.h.b16 %v2869
        %v3173 = vunpack.c.l.b16 %v2870
        %v3174 = vunpack.c.h.b16 %v2870
        %v3175 = vunpack.c.l.b16 %v2871
        %v3176 = vunpack.c.h.b16 %v2871
        %v3177 = vunpack.c.l.b16 %v2872
        %v3178 = vunpack.c.h.b16 %v2872
        %v3179 = vunpack.c.l.b16 %v2873
        %v3180 = vunpack.c.h.b16 %v2873
        %v3181 = vunpack.c.l.b16 %v2874
        %v3182 = vunpack.c.h.b16 %v2874
        %v3183 = vunpack.c.l.b16 %v2875
        %v3184 = vunpack.c.h.b16 %v2875
        %v3185 = vunpack.c.l.b16 %v2876
        %v3186 = vunpack.c.h.b16 %v2876
        %v3187 = vunpack.c.l.b16 %v2877
        %v3188 = vunpack.c.h.b16 %v2877
        %v3189 = vunpack.c.l.b16 %v2878
        %v3190 = vunpack.c.h.b16 %v2878
        %v3191 = vunpack.c.l.b16 %v2879
        %v3192 = vunpack.c.h.b16 %v2879
        %v3193 = vunpack.c.l.b16 %v2880
        %v3194 = vunpack.c.h.b16 %v2880
        %v3195 = vunpack.c.l.b16 %v2881
        %v3196 = vunpack.c.h.b16 %v2881
        %v3197 = vunpack.c.l.b16 %v2882
        %v3198 = vunpack.c.h.b16 %v2882
        %v3199 = vunpack.c.l.b16 %v2883
        %v3200 = vunpack.c.h.b16 %v2883
        %v3201 = vunpack.c.l.b16 %v2884
        %v3202 = vunpack.c.h.b16 %v2884
        %v3203 = vunpack.c.l.b16 %v2885
        %v3204 = vunpack.c.h.b16 %v2885
        %v3205 = vunpack.c.l.b16 %v2886
        %v3206 = vunpack.c.h.b16 %v2886
        %v3207 = vunpack.c.l.b16 %v2887
        %v3208 = vunpack.c.h.b16 %v2887
        %v3209 = vunpack.c.l.b16 %v2888
        %v3210 = vunpack.c.h.b16 %v2888
        %v3211 = vunpack.c.l.b16 %v2889
        %v3212 = vunpack.c.h.b16 %v2889
        %v3213 = vunpack.c.l.b16 %v2890
        %v3214 = vunpack.c.h.b16 %v2890
        %v3215 = vunpack.c.l.b16 %v2891
        %v3216 = vunpack.c.h.b16 %v2891
        %v3217 = vunpack.c.l.b16 %v2892
        %v3218 = vunpack.c.h.b16 %v2892
        %v3219 = vunpack.c.l.b16 %v2893
        %v3220 = vunpack.c.h.b16 %v2893
        %v3221 = vunpack.c.l.b16 %v2894
        %v3222 = vunpack.c.h.b16 %v2894
        %v3223 = vunpack.c.l.b16 %v2895
        %v3224 = vunpack.c.h.b16 %v2895
        %v3225 = vunpack.c.l.b16 %v2896
        %v3226 = vunpack.c.h.b16 %v2896
        %v3227 = vunpack.c.l.b16 %v2897
        %v3228 = vunpack.c.h.b16 %v2897
        %v3229 = vunpack.c.l.b16 %v2898
        %v3230 = vunpack.c.h.b16 %v2898
        %v3231 = vunpack.c.l.b16 %v2899
        %v3232 = vunpack.c.h.b16 %v2899
        %v3233 = vunpack.c.l.b16 %v2900
        %v3234 = vunpack.c.h.b16 %v2900
        %v3235 = vunpack.c.l.b16 %v2901
        %v3236 = vunpack.c.h.b16 %v2901
        %v3237 = vunpack.c.l.b16 %v2902
        %v3238 = vunpack.c.h.b16 %v2902
        %v3239 = vunpack.c.l.b16 %v2903
        %v3240 = vunpack.c.h.b16 %v2903
        %v3241 = vunpack.c.l.b16 %v2904
        %v3242 = vunpack.c.h.b16 %v2904
        %v3243 = vunpack.c.l.b16 %v2905
        %v3244 = vunpack.c.h.b16 %v2905
        %v3245 = vunpack.c.l.b16 %v2906
        %v3246 = vunpack.c.h.b16 %v2906
        %v3247 = vunpack.c.l.b16 %v2907
        %v3248 = vunpack.c.h.b16 %v2907
        %v3249 = vunpack.c.l.b16 %v2908
        %v3250 = vunpack.c.h.b16 %v2908
        %v3251 = vunpack.c.l.b16 %v2909
        %v3252 = vunpack.c.h.b16 %v2909
        %v3253 = vunpack.c.l.b16 %v2910
        %v3254 = vunpack.c.h.b16 %v2910
        %v3255 = vunpack.c.l.b16 %v2911
        %v3256 = vunpack.c.h.b16 %v2911
        %v3257 = vunpack.c.l.b16 %v2912
        %v3258 = vunpack.c.h.b16 %v2912
        %v3259 = vunpack.c.l.b16 %v2913
        %v3260 = vunpack.c.h.b16 %v2913
        %v3261 = vunpack.c.l.b16 %v2914
        %v3262 = vunpack.c.h.b16 %v2914
        %v3263 = vunpack.c.l.b16 %v2915
        %v3264 = vunpack.c.h.b16 %v2915
        %v3265 = vunpack.c.l.b16 %v2916
        %v3266 = vunpack.c.h.b16 %v2916
        %v3267 = vunpack.c.l.b16 %v2917
        %v3268 = vunpack.c.h.b16 %v2917
        %v3269 = vunpack.c.l.b16 %v2918
        %v3270 = vunpack.c.h.b16 %v2918
        %v3271 = vunpack.c.l.b16 %v2919
        %v3272 = vunpack.c.h.b16 %v2919
        %v3273 = vunpack.c.l.b16 %v2920
        %v3274 = vunpack.c.h.b16 %v2920
        %v3275 = vunpack.c.l.b16 %v2921
        %v3276 = vunpack.c.h.b16 %v2921
        %v3277 = vunpack.c.l.b16 %v2922
        %v3278 = vunpack.c.h.b16 %v2922
        %v3279 = vunpack.c.l.b16 %v2923
        %v3280 = vunpack.c.h.b16 %v2923
        %v3281 = vunpack.c.l.b16 %v2924
        %v3282 = vunpack.c.h.b16 %v2924
        %v3283 = vunpack.c.l.b16 %v2925
        %v3284 = vunpack.c.h.b16 %v2925
        %v3285 = vunpack.c.l.b16 %v2926
        %v3286 = vunpack.c.h.b16 %v2926
        %v3287 = vunpack.c.l.b16 %v2927
        %v3288 = vunpack.c.h.b16 %v2927
        %v3289 = vunpack.c.l.b16 %v2928
        %v3290 = vunpack.c.h.b16 %v2928
        %v3291 = vunpack.c.l.b16 %v2929
        %v3292 = vunpack.c.h.b16 %v2929
        %v3293 = vunpack.c.l.b16 %v2930
        %v3294 = vunpack.c.h.b16 %v2930
        %v3295 = vunpack.c.l.b16 %v2931
        %v3296 = vunpack.c.h.b16 %v2931
        %v3297 = vunpack.c.l.b16 %v2932
        %v3298 = vunpack.c.h.b16 %v2932
        %v3299 = vunpack.c.l.b16 %v2933
        %v3300 = vunpack.c.h.b16 %v2933
        %v3301 = vunpack.c.l.b16 %v2934
        %v3302 = vunpack.c.h.b16 %v2934
        %v3303 = vunpack.c.l.b16 %v2935
        %v3304 = vunpack.c.h.b16 %v2935
        %v3305 = vunpack.c.l.b16 %v2936
        %v3306 = vunpack.c.h.b16 %v2936
        %v3307 = vunpack.c.l.b16 %v2937
        %v3308 = vunpack.c.h.b16 %v2937
        %v3309 = vunpack.c.l.b16 %v2938
        %v3310 = vunpack.c.h.b16 %v2938
        %v3311 = vunpack.c.l.b16 %v2939
        %v3312 = vunpack.c.h.b16 %v2939
        %v3313 = vunpack.c.l.b16 %v2940
        %v3314 = vunpack.c.h.b16 %v2940
        %v3315 = vunpack.c.l.b16 %v2941
        %v3316 = vunpack.c.h.b16 %v2941
        %v3317 = vunpack.c.l.b16 %v2942
        %v3318 = vunpack.c.h.b16 %v2942
        %v3319 = vunpack.c.l.b16 %v2943
        %v3320 = vunpack.c.h.b16 %v2943
        %v3321 = vunpack.c.l.b16 %v2944
        %v3322 = vunpack.c.h.b16 %v2944
        %v3323 = vunpack.c.l.b16 %v2945
        %v3324 = vunpack.c.h.b16 %v2945
        %v3325 = vunpack.c.l.b16 %v2946
        %v3326 = vunpack.c.h.b16 %v2946
        %v3327 = vunpack.c.l.b16 %v2947
        %v3328 = vunpack.c.h.b16 %v2947
        %v3329 = vunpack.c.l.b16 %v2948
        %v3330 = vunpack.c.h.b16 %v2948
        %v3331 = vunpack.c.l.b16 %v2949
        %v3332 = vunpack.c.h.b16 %v2949
        %v3333 = vunpack.c.l.b16 %v2950
        %v3334 = vunpack.c.h.b16 %v2950
        %v3335 = vpack.c.b16 %v3079, %v3079
        %v3336 = vpack.c.b16 %v3080, %v3080
        %v3337 = vpack.c.b16 %v3081, %v3081
        %v3338 = vpack.c.b16 %v3082, %v3082
        %v3339 = vpack.c.b16 %v3083, %v3083
        %v3340 = vpack.c.b16 %v3084, %v3084
        %v3341 = vpack.c.b16 %v3085, %v3085
        %v3342 = vpack.c.b16 %v3086, %v3086
        %v3343 = vpack.c.b16 %v3087, %v3087
        %v3344 = vpack.c.b16 %v3088, %v3088
        %v3345 = vpack.c.b16 %v3089, %v3089
        %v3346 = vpack.c.b16 %v3090, %v3090
        %v3347 = vpack.c.b16 %v3091, %v3091
        %v3348 = vpack.c.b16 %v3092, %v3092
        %v3349 = vpack.c.b16 %v3093, %v3093
        %v3350 = vpack.c.b16 %v3094, %v3094
        %v3351 = vpack.c.b16 %v3095, %v3095
        %v3352 = vpack.c.b16 %v3096, %v3096
        %v3353 = vpack.c.b16 %v3097, %v3097
        %v3354 = vpack.c.b16 %v3098, %v3098
        %v3355 = vpack.c.b16 %v3099, %v3099
        %v3356 = vpack.c.b16 %v3100, %v3100
        %v3357 = vpack.c.b16 %v3101, %v3101
        %v3358 = vpack.c.b16 %v3102, %v3102
        %v3359 = vpack.c.b16 %v3103, %v3103
        %v3360 = vpack.c.b16 %v3104, %v3104
        %v3361 = vpack.c.b16 %v3105, %v3105
        %v3362 = vpack.c.b16 %v3106, %v3106
        %v3363 = vpack.c.b16 %v3107, %v3107
        %v3364 = vpack.c.b16 %v3108, %v3108
        %v3365 = vpack.c.b16 %v3109, %v3109
        %v3366 = vpack.c.b16 %v3110, %v3110
        %v3367 = vpack.c.b16 %v3111, %v3111
        %v3368 = vpack.c.b16 %v3112, %v3112
        %v3369 = vpack.c.b16 %v3113, %v3113
        %v3370 = vpack.c.b16 %v3114, %v3114
        %v3371 = vpack.c.b16 %v3115, %v3115
        %v3372 = vpack.c.b16 %v3116, %v3116
        %v3373 = vpack.c.b16 %v3117, %v3117
        %v3374 = vpack.c.b16 %v3118, %v3118
        %v3375 = vpack.c.b16 %v3119, %v3119
        %v3376 = vpack.c.b16 %v3120, %v3120
        %v3377 = vpack.c.b16 %v3121, %v3121
        %v3378 = vpack.c.b16 %v3122, %v3122
        %v3379 = vpack.c.b16 %v3123, %v3123
        %v3380 = vpack.c.b16 %v3124, %v3124
        %v3381 = vpack.c.b16 %v3125, %v3125
        %v3382 = vpack.c.b16 %v3126, %v3126
        %v3383 = vpack.c.b16 %v3127, %v3127
        %v3384 = vpack.c.b16 %v3128, %v3128
        %v3385 = vpack.c.b16 %v3129, %v3129
        %v3386 = vpack.c.b16 %v3130, %v3130
        %v3387 = vpack.c.b16 %v3131, %v3131
        %v3388 = vpack.c.b16 %v3132, %v3132
        %v3389 = vpack.c.b16 %v3133, %v3133
        %v3390 = vpack.c.b16 %v3134, %v3134
        %v3391 = vpack.c.b16 %v3135, %v3135
        %v3392 = vpack.c.b16 %v3136, %v3136
        %v3393 = vpack.c.b16 %v3137, %v3137
        %v3394 = vpack.c.b16 %v3138, %v3138
        %v3395 = vpack.c.b16 %v3139, %v3139
        %v3396 = vpack.c.b16 %v3140, %v3140
        %v3397 = vpack.c.b16 %v3141, %v3141
        %v3398 = vpack.c.b16 %v3142, %v3142
        %v3399 = vpack.c.b16 %v3143, %v3143
        %v3400 = vpack.c.b16 %v3144, %v3144
        %v3401 = vpack.c.b16 %v3145, %v3145
        %v3402 = vpack.c.b16 %v3146, %v3146
        %v3403 = vpack.c.b16 %v3147, %v3147
        %v3404 = vpack.c.b16 %v3148, %v3148
        %v3405 = vpack.c.b16 %v3149, %v3149
        %v3406 = vpack.c.b16 %v3150, %v3150
        %v3407 = vpack.c.b16 %v3151, %v3151
        %v3408 = vpack.c.b16 %v3152, %v3152
        %v3409 = vpack.c.b16 %v3153, %v3153
        %v3410 = vpack.c.b16 %v3154, %v3154
        %v3411 = vpack.c.b16 %v3155, %v3155
        %v3412 = vpack.c.b16 %v3156, %v3156
        %v3413 = vpack.c.b16 %v3157, %v3157
        %v3414 = vpack.c.b16 %v3158, %v3158
        %v3415 = vpack.c.b16 %v3159, %v3159
        %v3416 = vpack.c.b16 %v3160, %v3160
        %v3417 = vpack.c.b16 %v3161, %v3161
        %v3418 = vpack.c.b16 %v3162, %v3162
        %v3419 = vpack.c.b16 %v3163, %v3163
        %v3420 = vpack.c.b16 %v3164, %v3164
        %v3421 = vpack.c.b16 %v3165, %v3165
        %v3422 = vpack.c.b16 %v3166, %v3166
        %v3423 = vpack.c.b16 %v3167, %v3167
        %v3424 = vpack.c.b16 %v3168, %v3168
        %v3425 = vpack.c.b16 %v3169, %v3169
        %v3426 = vpack.c.b16 %v3170, %v3170
        %v3427 = vpack.c.b16 %v3171, %v3171
        %v3428 = vpack.c.b16 %v3172, %v3172
        %v3429 = vpack.c.b16 %v3173, %v3173
        %v3430 = vpack.c.b16 %v3174, %v3174
        %v3431 = vpack.c.b16 %v3175, %v3175
        %v3432 = vpack.c.b16 %v3176, %v3176
        %v3433 = vpack.c.b16 %v3177, %v3177
        %v3434 = vpack.c.b16 %v3178, %v3178
        %v3435 = vpack.c.b16 %v3179, %v3179
        %v3436 = vpack.c.b16 %v3180, %v3180
        %v3437 = vpack.c.b16 %v3181, %v3181
        %v3438 = vpack.c.b16 %v3182, %v3182
        %v3439 = vpack.c.b16 %v3183, %v3183
        %v3440 = vpack.c.b16 %v3184, %v3184
        %v3441 = vpack.c.b16 %v3185, %v3185
        %v3442 = vpack.c.b16 %v3186, %v3186
        %v3443 = vpack.c.b16 %v3187, %v3187
        %v3444 = vpack.c.b16 %v3188, %v3188
        %v3445 = vpack.c.b16 %v3189, %v3189
        %v3446 = vpack.c.b16 %v3190, %v3190
        %v3447 = vpack.c.b16 %v3191, %v3191
        %v3448 = vpack.c.b16 %v3192, %v3192
        %v3449 = vpack.c.b16 %v3193, %v3193
        %v3450 = vpack.c.b16 %v3194, %v3194
        %v3451 = vpack.c.b16 %v3195, %v3195
        %v3452 = vpack.c.b16 %v3196, %v3196
        %v3453 = vpack.c.b16 %v3197, %v3197
        %v3454 = vpack.c.b16 %v3198, %v3198
        %v3455 = vpack.c.b16 %v3199, %v3199
        %v3456 = vpack.c.b16 %v3200, %v3200
        %v3457 = vpack.c.b16 %v3201, %v3201
        %v3458 = vpack.c.b16 %v3202, %v3202
        %v3459 = vpack.c.b16 %v3203, %v3203
        %v3460 = vpack.c.b16 %v3204, %v3204
        %v3461 = vpack.c.b16 %v3205, %v3205
        %v3462 = vpack.c.b16 %v3206, %v3206
        %v3463 = vpack.c.b16 %v3207, %v3207
        %v3464 = vpack.c.b16 %v3208, %v3208
        %v3465 = vpack.c.b16 %v3209, %v3209
        %v3466 = vpack.c.b16 %v3210, %v3210
        %v3467 = vpack.c.b16 %v3211, %v3211
        %v3468 = vpack.c.b16 %v3212, %v3212
        %v3469 = vpack.c.b16 %v3213, %v3213
        %v3470 = vpack.c.b16 %v3214, %v3214
        %v3471 = vpack.c.b16 %v3215, %v3215
        %v3472 = vpack.c.b16 %v3216, %v3216
        %v3473 = vpack.c.b16 %v3217, %v3217
        %v3474 = vpack.c.b16 %v3218, %v3218
        %v3475 = vpack.c.b16 %v3219, %v3219
        %v3476 = vpack.c.b16 %v3220, %v3220
        %v3477 = vpack.c.b16 %v3221, %v3221
        %v3478 = vpack.c.b16 %v3222, %v3222
        %v3479 = vpack.c.b16 %v3223, %v3223
        %v3480 = vpack.c.b16 %v3224, %v3224
        %v3481 = vpack.c.b16 %v3225, %v3225
        %v3482 = vpack.c.b16 %v3226, %v3226
        %v3483 = vpack.c.b16 %v3227, %v3227
        %v3484 = vpack.c.b16 %v3228, %v3228
        %v3485 = vpack.c.b16 %v3229, %v3229
        %v3486 = vpack.c.b16 %v3230, %v3230
        %v3487 = vpack.c.b16 %v3231, %v3231
        %v3488 = vpack.c.b16 %v3232, %v3232
        %v3489 = vpack.c.b16 %v3233, %v3233
        %v3490 = vpack.c.b16 %v3234, %v3234
        %v3491 = vpack.c.b16 %v3235, %v3235
        %v3492 = vpack.c.b16 %v3236, %v3236
        %v3493 = vpack.c.b16 %v3237, %v3237
        %v3494 = vpack.c.b16 %v3238, %v3238
        %v3495 = vpack.c.b16 %v3239, %v3239
        %v3496 = vpack.c.b16 %v3240, %v3240
        %v3497 = vpack.c.b16 %v3241, %v3241
        %v3498 = vpack.c.b16 %v3242, %v3242
        %v3499 = vpack.c.b16 %v3243, %v3243
        %v3500 = vpack.c.b16 %v3244, %v3244
        %v3501 = vpack.c.b16 %v3245, %v3245
        %v3502 = vpack.c.b16 %v3246, %v3246
        %v3503 = vpack.c.b16 %v3247, %v3247
        %v3504 = vpack.c.b16 %v3248, %v3248
        %v3505 = vpack.c.b16 %v3249, %v3249
        %v3506 = vpack.c.b16 %v3250, %v3250
        %v3507 = vpack.c.b16 %v3251, %v3251
        %v3508 = vpack.c.b16 %v3252, %v3252
        %v3509 = vpack.c.b16 %v3253, %v3253
        %v3510 = vpack.c.b16 %v3254, %v3254
        %v3511 = vpack.c.b16 %v3255, %v3255
        %v3512 = vpack.c.b16 %v3256, %v3256
        %v3513 = vpack.c.b16 %v3257, %v3257
        %v3514 = vpack.c.b16 %v3258, %v3258
        %v3515 = vpack.c.b16 %v3259, %v3259
        %v3516 = vpack.c.b16 %v3260, %v3260
        %v3517 = vpack.c.b16 %v3261, %v3261
        %v3518 = vpack.c.b16 %v3262, %v3262
        %v3519 = vpack.c.b16 %v3263, %v3263
        %v3520 = vpack.c.b16 %v3264, %v3264
        %v3521 = vpack.c.b16 %v3265, %v3265
        %v3522 = vpack.c.b16 %v3266, %v3266
        %v3523 = vpack.c.b16 %v3267, %v3267
        %v3524 = vpack.c.b16 %v3268, %v3268
        %v3525 = vpack.c.b16 %v3269, %v3269
        %v3526 = vpack.c.b16 %v3270, %v3270
        %v3527 = vpack.c.b16 %v3271, %v3271
        %v3528 = vpack.c.b16 %v3272, %v3272
        %v3529 = vpack.c.b16 %v3273, %v3273
        %v3530 = vpack.c.b16 %v3274, %v3274
        %v3531 = vpack.c.b16 %v3275, %v3275
        %v3532 = vpack.c.b16 %v3276, %v3276
        %v3533 = vpack.c.b16 %v3277, %v3277
        %v3534 = vpack.c.b16 %v3278, %v3278
        %v3535 = vpack.c.b16 %v3279, %v3279
        %v3536 = vpack.c.b16 %v3280, %v3280
        %v3537 = vpack.c.b16 %v3281, %v3281
        %v3538 = vpack.c.b16 %v3282, %v3282
        %v3539 = vpack.c.b16 %v3283, %v3283
        %v3540 = vpack.c.b16 %v3284, %v3284
        %v3541 = vpack.c.b16 %v3285, %v3285
        %v3542 = vpack.c.b16 %v3286, %v3286
        %v3543 = vpack.c.b16 %v3287, %v3287
        %v3544 = vpack.c.b16 %v3288, %v3288
        %v3545 = vpack.c.b16 %v3289, %v3289
        %v3546 = vpack.c.b16 %v3290, %v3290
        %v3547 = vpack.c.b16 %v3291, %v3291
        %v3548 = vpack.c.b16 %v3292, %v3292
        %v3549 = vpack.c.b16 %v3293, %v3293
        %v3550 = vpack.c.b16 %v3294, %v3294
        %v3551 = vpack.c.b16 %v3295, %v3295
        %v3552 = vpack.c.b16 %v3296, %v3296
        %v3553 = vpack.c.b16 %v3297, %v3297
        %v3554 = vpack.c.b16 %v3298, %v3298
        %v3555 = vpack.c.b16 %v3299, %v3299
        %v3556 = vpack.c.b16 %v3300, %v3300
        %v3557 = vpack.c.b16 %v3301, %v3301
        %v3558 = vpack.c.b16 %v3302, %v3302
        %v3559 = vpack.c.b16 %v3303, %v3303
        %v3560 = vpack.c.b16 %v3304, %v3304
        %v3561 = vpack.c.b16 %v3305, %v3305
        %v3562 = vpack.c.b16 %v3306, %v3306
        %v3563 = vpack.c.b16 %v3307, %v3307
        %v3564 = vpack.c.b16 %v3308, %v3308
        %v3565 = vpack.c.b16 %v3309, %v3309
        %v3566 = vpack.c.b16 %v3310, %v3310
        %v3567 = vpack.c.b16 %v3311, %v3311
        %v3568 = vpack.c.b16 %v3312, %v3312
        %v3569 = vpack.c.b16 %v3313, %v3313
        %v3570 = vpack.c.b16 %v3314, %v3314
        %v3571 = vpack.c.b16 %v3315, %v3315
        %v3572 = vpack.c.b16 %v3316, %v3316
        %v3573 = vpack.c.b16 %v3317, %v3317
        %v3574 = vpack.c.b16 %v3318, %v3318
        %v3575 = vpack.c.b16 %v3319, %v3319
        %v3576 = vpack.c.b16 %v3320, %v3320
        %v3577 = vpack.c.b16 %v3321, %v3321
        %v3578 = vpack.c.b16 %v3322, %v3322
        %v3579 = vpack.c.b16 %v3323, %v3323
        %v3580 = vpack.c.b16 %v3324, %v3324
        %v3581 = vpack.c.b16 %v3325, %v3325
        %v3582 = vpack.c.b16 %v3326, %v3326
        %v3583 = vpack.c.b16 %v3327, %v3327
        %v3584 = vpack.c.b16 %v3328, %v3328
        %v3585 = vpack.c.b16 %v3329, %v3329
        %v3586 = vpack.c.b16 %v3330, %v3330
        %v3587 = vpack.c.b16 %v3331, %v3331
        %v3588 = vpack.c.b16 %v3332, %v3332
        %v3589 = vpack.c.b16 %v3333, %v3333
        %v3590 = vpack.c.b16 %v3334, %v3334
        %vm3847 = vcmask 60416
        %3848 = vst.msk [vmem:[%s194] sm:$0xf] %vm3847, %v3335
        %3849 = vst.msk [vmem:[%s194 + $0x4] sm:$0xf] %vm3847, %v3336
        %3850 = vst.msk [vmem:[%s194 + $0x8] sm:$0xf] %vm3847, %v3337
        %3851 = vst.msk [vmem:[%s194 + $0xc] sm:$0xf] %vm3847, %v3338
        %3852 = vst.msk [vmem:[%s194 + $0x10] sm:$0xf] %vm3847, %v3339
        %3853 = vst.msk [vmem:[%s194 + $0x14] sm:$0xf] %vm3847, %v3340
        %3854 = vst.msk [vmem:[%s194 + $0x18] sm:$0xf] %vm3847, %v3341
        %3855 = vst.msk [vmem:[%s194 + $0x1c] sm:$0xf] %vm3847, %v3342
        %3856 = vst.msk [vmem:[%s194 + $0x20] sm:$0xf] %vm3847, %v3343
        %3857 = vst.msk [vmem:[%s194 + $0x24] sm:$0xf] %vm3847, %v3344
        %3858 = vst.msk [vmem:[%s194 + $0x28] sm:$0xf] %vm3847, %v3345
        %3859 = vst.msk [vmem:[%s194 + $0x2c] sm:$0xf] %vm3847, %v3346
        %3860 = vst.msk [vmem:[%s194 + $0x30] sm:$0xf] %vm3847, %v3347
        %3861 = vst.msk [vmem:[%s194 + $0x34] sm:$0xf] %vm3847, %v3348
        %3862 = vst.msk [vmem:[%s194 + $0x38] sm:$0xf] %vm3847, %v3349
        %3863 = vst.msk [vmem:[%s194 + $0x3c] sm:$0xf] %vm3847, %v3350
        %3864 = vst.msk [vmem:[%s194 + $0x40] sm:$0xf] %vm3847, %v3351
        %3865 = vst.msk [vmem:[%s194 + $0x44] sm:$0xf] %vm3847, %v3352
        %3866 = vst.msk [vmem:[%s194 + $0x48] sm:$0xf] %vm3847, %v3353
        %3867 = vst.msk [vmem:[%s194 + $0x4c] sm:$0xf] %vm3847, %v3354
        %3868 = vst.msk [vmem:[%s194 + $0x50] sm:$0xf] %vm3847, %v3355
        %3869 = vst.msk [vmem:[%s194 + $0x54] sm:$0xf] %vm3847, %v3356
        %3870 = vst.msk [vmem:[%s194 + $0x58] sm:$0xf] %vm3847, %v3357
        %3871 = vst.msk [vmem:[%s194 + $0x5c] sm:$0xf] %vm3847, %v3358
        %3872 = vst.msk [vmem:[%s194 + $0x60] sm:$0xf] %vm3847, %v3359
        %3873 = vst.msk [vmem:[%s194 + $0x64] sm:$0xf] %vm3847, %v3360
        %3874 = vst.msk [vmem:[%s194 + $0x68] sm:$0xf] %vm3847, %v3361
        %3875 = vst.msk [vmem:[%s194 + $0x6c] sm:$0xf] %vm3847, %v3362
        %3876 = vst.msk [vmem:[%s194 + $0x70] sm:$0xf] %vm3847, %v3363
        %3877 = vst.msk [vmem:[%s194 + $0x74] sm:$0xf] %vm3847, %v3364
        %3878 = vst.msk [vmem:[%s194 + $0x78] sm:$0xf] %vm3847, %v3365
        %3879 = vst.msk [vmem:[%s194 + $0x7c] sm:$0xf] %vm3847, %v3366
        %3880 = vst.msk [vmem:[%s194 + $0x80] sm:$0xf] %vm3847, %v3367
        %3881 = vst.msk [vmem:[%s194 + $0x84] sm:$0xf] %vm3847, %v3368
        %3882 = vst.msk [vmem:[%s194 + $0x88] sm:$0xf] %vm3847, %v3369
        %3883 = vst.msk [vmem:[%s194 + $0x8c] sm:$0xf] %vm3847, %v3370
        %3884 = vst.msk [vmem:[%s194 + $0x90] sm:$0xf] %vm3847, %v3371
        %3885 = vst.msk [vmem:[%s194 + $0x94] sm:$0xf] %vm3847, %v3372
        %3886 = vst.msk [vmem:[%s194 + $0x98] sm:$0xf] %vm3847, %v3373
        %3887 = vst.msk [vmem:[%s194 + $0x9c] sm:$0xf] %vm3847, %v3374
        %3888 = vst.msk [vmem:[%s194 + $0xa0] sm:$0xf] %vm3847, %v3375
        %3889 = vst.msk [vmem:[%s194 + $0xa4] sm:$0xf] %vm3847, %v3376
        %3890 = vst.msk [vmem:[%s194 + $0xa8] sm:$0xf] %vm3847, %v3377
        %3891 = vst.msk [vmem:[%s194 + $0xac] sm:$0xf] %vm3847, %v3378
        %3892 = vst.msk [vmem:[%s194 + $0xb0] sm:$0xf] %vm3847, %v3379
        %3893 = vst.msk [vmem:[%s194 + $0xb4] sm:$0xf] %vm3847, %v3380
        %3894 = vst.msk [vmem:[%s194 + $0xb8] sm:$0xf] %vm3847, %v3381
        %3895 = vst.msk [vmem:[%s194 + $0xbc] sm:$0xf] %vm3847, %v3382
        %3896 = vst.msk [vmem:[%s194 + $0xc0] sm:$0xf] %vm3847, %v3383
        %3897 = vst.msk [vmem:[%s194 + $0xc4] sm:$0xf] %vm3847, %v3384
        %3898 = vst.msk [vmem:[%s194 + $0xc8] sm:$0xf] %vm3847, %v3385
        %3899 = vst.msk [vmem:[%s194 + $0xcc] sm:$0xf] %vm3847, %v3386
        %3900 = vst.msk [vmem:[%s194 + $0xd0] sm:$0xf] %vm3847, %v3387
        %3901 = vst.msk [vmem:[%s194 + $0xd4] sm:$0xf] %vm3847, %v3388
        %3902 = vst.msk [vmem:[%s194 + $0xd8] sm:$0xf] %vm3847, %v3389
        %3903 = vst.msk [vmem:[%s194 + $0xdc] sm:$0xf] %vm3847, %v3390
        %3904 = vst.msk [vmem:[%s194 + $0xe0] sm:$0xf] %vm3847, %v3391
        %3905 = vst.msk [vmem:[%s194 + $0xe4] sm:$0xf] %vm3847, %v3392
        %3906 = vst.msk [vmem:[%s194 + $0xe8] sm:$0xf] %vm3847, %v3393
        %3907 = vst.msk [vmem:[%s194 + $0xec] sm:$0xf] %vm3847, %v3394
        %3908 = vst.msk [vmem:[%s194 + $0xf0] sm:$0xf] %vm3847, %v3395
        %3909 = vst.msk [vmem:[%s194 + $0xf4] sm:$0xf] %vm3847, %v3396
        %3910 = vst.msk [vmem:[%s194 + $0xf8] sm:$0xf] %vm3847, %v3397
        %3911 = vst.msk [vmem:[%s194 + $0xfc] sm:$0xf] %vm3847, %v3398
        %3912 = vst.msk [vmem:[%s194 + $0x100] sm:$0xf] %vm3847, %v3399
        %3913 = vst.msk [vmem:[%s194 + $0x104] sm:$0xf] %vm3847, %v3400
        %3914 = vst.msk [vmem:[%s194 + $0x108] sm:$0xf] %vm3847, %v3401
        %3915 = vst.msk [vmem:[%s194 + $0x10c] sm:$0xf] %vm3847, %v3402
        %3916 = vst.msk [vmem:[%s194 + $0x110] sm:$0xf] %vm3847, %v3403
        %3917 = vst.msk [vmem:[%s194 + $0x114] sm:$0xf] %vm3847, %v3404
        %3918 = vst.msk [vmem:[%s194 + $0x118] sm:$0xf] %vm3847, %v3405
        %3919 = vst.msk [vmem:[%s194 + $0x11c] sm:$0xf] %vm3847, %v3406
        %3920 = vst.msk [vmem:[%s194 + $0x120] sm:$0xf] %vm3847, %v3407
        %3921 = vst.msk [vmem:[%s194 + $0x124] sm:$0xf] %vm3847, %v3408
        %3922 = vst.msk [vmem:[%s194 + $0x128] sm:$0xf] %vm3847, %v3409
        %3923 = vst.msk [vmem:[%s194 + $0x12c] sm:$0xf] %vm3847, %v3410
        %3924 = vst.msk [vmem:[%s194 + $0x130] sm:$0xf] %vm3847, %v3411
        %3925 = vst.msk [vmem:[%s194 + $0x134] sm:$0xf] %vm3847, %v3412
        %3926 = vst.msk [vmem:[%s194 + $0x138] sm:$0xf] %vm3847, %v3413
        %3927 = vst.msk [vmem:[%s194 + $0x13c] sm:$0xf] %vm3847, %v3414
        %3928 = vst.msk [vmem:[%s194 + $0x140] sm:$0xf] %vm3847, %v3415
        %3929 = vst.msk [vmem:[%s194 + $0x144] sm:$0xf] %vm3847, %v3416
        %3930 = vst.msk [vmem:[%s194 + $0x148] sm:$0xf] %vm3847, %v3417
        %3931 = vst.msk [vmem:[%s194 + $0x14c] sm:$0xf] %vm3847, %v3418
        %3932 = vst.msk [vmem:[%s194 + $0x150] sm:$0xf] %vm3847, %v3419
        %3933 = vst.msk [vmem:[%s194 + $0x154] sm:$0xf] %vm3847, %v3420
        %3934 = vst.msk [vmem:[%s194 + $0x158] sm:$0xf] %vm3847, %v3421
        %3935 = vst.msk [vmem:[%s194 + $0x15c] sm:$0xf] %vm3847, %v3422
        %3936 = vst.msk [vmem:[%s194 + $0x160] sm:$0xf] %vm3847, %v3423
        %3937 = vst.msk [vmem:[%s194 + $0x164] sm:$0xf] %vm3847, %v3424
        %3938 = vst.msk [vmem:[%s194 + $0x168] sm:$0xf] %vm3847, %v3425
        %3939 = vst.msk [vmem:[%s194 + $0x16c] sm:$0xf] %vm3847, %v3426
        %3940 = vst.msk [vmem:[%s194 + $0x170] sm:$0xf] %vm3847, %v3427
        %3941 = vst.msk [vmem:[%s194 + $0x174] sm:$0xf] %vm3847, %v3428
        %3942 = vst.msk [vmem:[%s194 + $0x178] sm:$0xf] %vm3847, %v3429
        %3943 = vst.msk [vmem:[%s194 + $0x17c] sm:$0xf] %vm3847, %v3430
        %3944 = vst.msk [vmem:[%s194 + $0x180] sm:$0xf] %vm3847, %v3431
        %3945 = vst.msk [vmem:[%s194 + $0x184] sm:$0xf] %vm3847, %v3432
        %3946 = vst.msk [vmem:[%s194 + $0x188] sm:$0xf] %vm3847, %v3433
        %3947 = vst.msk [vmem:[%s194 + $0x18c] sm:$0xf] %vm3847, %v3434
        %3948 = vst.msk [vmem:[%s194 + $0x190] sm:$0xf] %vm3847, %v3435
        %3949 = vst.msk [vmem:[%s194 + $0x194] sm:$0xf] %vm3847, %v3436
        %3950 = vst.msk [vmem:[%s194 + $0x198] sm:$0xf] %vm3847, %v3437
        %3951 = vst.msk [vmem:[%s194 + $0x19c] sm:$0xf] %vm3847, %v3438
        %3952 = vst.msk [vmem:[%s194 + $0x1a0] sm:$0xf] %vm3847, %v3439
        %3953 = vst.msk [vmem:[%s194 + $0x1a4] sm:$0xf] %vm3847, %v3440
        %3954 = vst.msk [vmem:[%s194 + $0x1a8] sm:$0xf] %vm3847, %v3441
        %3955 = vst.msk [vmem:[%s194 + $0x1ac] sm:$0xf] %vm3847, %v3442
        %3956 = vst.msk [vmem:[%s194 + $0x1b0] sm:$0xf] %vm3847, %v3443
        %3957 = vst.msk [vmem:[%s194 + $0x1b4] sm:$0xf] %vm3847, %v3444
        %3958 = vst.msk [vmem:[%s194 + $0x1b8] sm:$0xf] %vm3847, %v3445
        %3959 = vst.msk [vmem:[%s194 + $0x1bc] sm:$0xf] %vm3847, %v3446
        %3960 = vst.msk [vmem:[%s194 + $0x1c0] sm:$0xf] %vm3847, %v3447
        %3961 = vst.msk [vmem:[%s194 + $0x1c4] sm:$0xf] %vm3847, %v3448
        %3962 = vst.msk [vmem:[%s194 + $0x1c8] sm:$0xf] %vm3847, %v3449
        %3963 = vst.msk [vmem:[%s194 + $0x1cc] sm:$0xf] %vm3847, %v3450
        %3964 = vst.msk [vmem:[%s194 + $0x1d0] sm:$0xf] %vm3847, %v3451
        %3965 = vst.msk [vmem:[%s194 + $0x1d4] sm:$0xf] %vm3847, %v3452
        %3966 = vst.msk [vmem:[%s194 + $0x1d8] sm:$0xf] %vm3847, %v3453
        %3967 = vst.msk [vmem:[%s194 + $0x1dc] sm:$0xf] %vm3847, %v3454
        %3968 = vst.msk [vmem:[%s194 + $0x1e0] sm:$0xf] %vm3847, %v3455
        %3969 = vst.msk [vmem:[%s194 + $0x1e4] sm:$0xf] %vm3847, %v3456
        %3970 = vst.msk [vmem:[%s194 + $0x1e8] sm:$0xf] %vm3847, %v3457
        %3971 = vst.msk [vmem:[%s194 + $0x1ec] sm:$0xf] %vm3847, %v3458
        %3972 = vst.msk [vmem:[%s194 + $0x1f0] sm:$0xf] %vm3847, %v3459
        %3973 = vst.msk [vmem:[%s194 + $0x1f4] sm:$0xf] %vm3847, %v3460
        %3974 = vst.msk [vmem:[%s194 + $0x1f8] sm:$0xf] %vm3847, %v3461
        %3975 = vst.msk [vmem:[%s194 + $0x1fc] sm:$0xf] %vm3847, %v3462
        %3976 = vst.msk [vmem:[%s194 + $0x200] sm:$0xf] %vm3847, %v3463
        %3977 = vst.msk [vmem:[%s194 + $0x204] sm:$0xf] %vm3847, %v3464
        %3978 = vst.msk [vmem:[%s194 + $0x208] sm:$0xf] %vm3847, %v3465
        %3979 = vst.msk [vmem:[%s194 + $0x20c] sm:$0xf] %vm3847, %v3466
        %3980 = vst.msk [vmem:[%s194 + $0x210] sm:$0xf] %vm3847, %v3467
        %3981 = vst.msk [vmem:[%s194 + $0x214] sm:$0xf] %vm3847, %v3468
        %3982 = vst.msk [vmem:[%s194 + $0x218] sm:$0xf] %vm3847, %v3469
        %3983 = vst.msk [vmem:[%s194 + $0x21c] sm:$0xf] %vm3847, %v3470
        %3984 = vst.msk [vmem:[%s194 + $0x220] sm:$0xf] %vm3847, %v3471
        %3985 = vst.msk [vmem:[%s194 + $0x224] sm:$0xf] %vm3847, %v3472
        %3986 = vst.msk [vmem:[%s194 + $0x228] sm:$0xf] %vm3847, %v3473
        %3987 = vst.msk [vmem:[%s194 + $0x22c] sm:$0xf] %vm3847, %v3474
        %3988 = vst.msk [vmem:[%s194 + $0x230] sm:$0xf] %vm3847, %v3475
        %3989 = vst.msk [vmem:[%s194 + $0x234] sm:$0xf] %vm3847, %v3476
        %3990 = vst.msk [vmem:[%s194 + $0x238] sm:$0xf] %vm3847, %v3477
        %3991 = vst.msk [vmem:[%s194 + $0x23c] sm:$0xf] %vm3847, %v3478
        %3992 = vst.msk [vmem:[%s194 + $0x240] sm:$0xf] %vm3847, %v3479
        %3993 = vst.msk [vmem:[%s194 + $0x244] sm:$0xf] %vm3847, %v3480
        %3994 = vst.msk [vmem:[%s194 + $0x248] sm:$0xf] %vm3847, %v3481
        %3995 = vst.msk [vmem:[%s194 + $0x24c] sm:$0xf] %vm3847, %v3482
        %3996 = vst.msk [vmem:[%s194 + $0x250] sm:$0xf] %vm3847, %v3483
        %3997 = vst.msk [vmem:[%s194 + $0x254] sm:$0xf] %vm3847, %v3484
        %3998 = vst.msk [vmem:[%s194 + $0x258] sm:$0xf] %vm3847, %v3485
        %3999 = vst.msk [vmem:[%s194 + $0x25c] sm:$0xf] %vm3847, %v3486
        %4000 = vst.msk [vmem:[%s194 + $0x260] sm:$0xf] %vm3847, %v3487
        %4001 = vst.msk [vmem:[%s194 + $0x264] sm:$0xf] %vm3847, %v3488
        %4002 = vst.msk [vmem:[%s194 + $0x268] sm:$0xf] %vm3847, %v3489
        %4003 = vst.msk [vmem:[%s194 + $0x26c] sm:$0xf] %vm3847, %v3490
        %4004 = vst.msk [vmem:[%s194 + $0x270] sm:$0xf] %vm3847, %v3491
        %4005 = vst.msk [vmem:[%s194 + $0x274] sm:$0xf] %vm3847, %v3492
        %4006 = vst.msk [vmem:[%s194 + $0x278] sm:$0xf] %vm3847, %v3493
        %4007 = vst.msk [vmem:[%s194 + $0x27c] sm:$0xf] %vm3847, %v3494
        %4008 = vst.msk [vmem:[%s194 + $0x280] sm:$0xf] %vm3847, %v3495
        %4009 = vst.msk [vmem:[%s194 + $0x284] sm:$0xf] %vm3847, %v3496
        %4010 = vst.msk [vmem:[%s194 + $0x288] sm:$0xf] %vm3847, %v3497
        %4011 = vst.msk [vmem:[%s194 + $0x28c] sm:$0xf] %vm3847, %v3498
        %4012 = vst.msk [vmem:[%s194 + $0x290] sm:$0xf] %vm3847, %v3499
        %4013 = vst.msk [vmem:[%s194 + $0x294] sm:$0xf] %vm3847, %v3500
        %4014 = vst.msk [vmem:[%s194 + $0x298] sm:$0xf] %vm3847, %v3501
        %4015 = vst.msk [vmem:[%s194 + $0x29c] sm:$0xf] %vm3847, %v3502
        %4016 = vst.msk [vmem:[%s194 + $0x2a0] sm:$0xf] %vm3847, %v3503
        %4017 = vst.msk [vmem:[%s194 + $0x2a4] sm:$0xf] %vm3847, %v3504
        %4018 = vst.msk [vmem:[%s194 + $0x2a8] sm:$0xf] %vm3847, %v3505
        %4019 = vst.msk [vmem:[%s194 + $0x2ac] sm:$0xf] %vm3847, %v3506
        %4020 = vst.msk [vmem:[%s194 + $0x2b0] sm:$0xf] %vm3847, %v3507
        %4021 = vst.msk [vmem:[%s194 + $0x2b4] sm:$0xf] %vm3847, %v3508
        %4022 = vst.msk [vmem:[%s194 + $0x2b8] sm:$0xf] %vm3847, %v3509
        %4023 = vst.msk [vmem:[%s194 + $0x2bc] sm:$0xf] %vm3847, %v3510
        %4024 = vst.msk [vmem:[%s194 + $0x2c0] sm:$0xf] %vm3847, %v3511
        %4025 = vst.msk [vmem:[%s194 + $0x2c4] sm:$0xf] %vm3847, %v3512
        %4026 = vst.msk [vmem:[%s194 + $0x2c8] sm:$0xf] %vm3847, %v3513
        %4027 = vst.msk [vmem:[%s194 + $0x2cc] sm:$0xf] %vm3847, %v3514
        %4028 = vst.msk [vmem:[%s194 + $0x2d0] sm:$0xf] %vm3847, %v3515
        %4029 = vst.msk [vmem:[%s194 + $0x2d4] sm:$0xf] %vm3847, %v3516
        %4030 = vst.msk [vmem:[%s194 + $0x2d8] sm:$0xf] %vm3847, %v3517
        %4031 = vst.msk [vmem:[%s194 + $0x2dc] sm:$0xf] %vm3847, %v3518
        %4032 = vst.msk [vmem:[%s194 + $0x2e0] sm:$0xf] %vm3847, %v3519
        %4033 = vst.msk [vmem:[%s194 + $0x2e4] sm:$0xf] %vm3847, %v3520
        %4034 = vst.msk [vmem:[%s194 + $0x2e8] sm:$0xf] %vm3847, %v3521
        %4035 = vst.msk [vmem:[%s194 + $0x2ec] sm:$0xf] %vm3847, %v3522
        %4036 = vst.msk [vmem:[%s194 + $0x2f0] sm:$0xf] %vm3847, %v3523
        %4037 = vst.msk [vmem:[%s194 + $0x2f4] sm:$0xf] %vm3847, %v3524
        %4038 = vst.msk [vmem:[%s194 + $0x2f8] sm:$0xf] %vm3847, %v3525
        %4039 = vst.msk [vmem:[%s194 + $0x2fc] sm:$0xf] %vm3847, %v3526
        %4040 = vst.msk [vmem:[%s194 + $0x300] sm:$0xf] %vm3847, %v3527
        %4041 = vst.msk [vmem:[%s194 + $0x304] sm:$0xf] %vm3847, %v3528
        %4042 = vst.msk [vmem:[%s194 + $0x308] sm:$0xf] %vm3847, %v3529
        %4043 = vst.msk [vmem:[%s194 + $0x30c] sm:$0xf] %vm3847, %v3530
        %4044 = vst.msk [vmem:[%s194 + $0x310] sm:$0xf] %vm3847, %v3531
        %4045 = vst.msk [vmem:[%s194 + $0x314] sm:$0xf] %vm3847, %v3532
        %4046 = vst.msk [vmem:[%s194 + $0x318] sm:$0xf] %vm3847, %v3533
        %4047 = vst.msk [vmem:[%s194 + $0x31c] sm:$0xf] %vm3847, %v3534
        %4048 = vst.msk [vmem:[%s194 + $0x320] sm:$0xf] %vm3847, %v3535
        %4049 = vst.msk [vmem:[%s194 + $0x324] sm:$0xf] %vm3847, %v3536
        %4050 = vst.msk [vmem:[%s194 + $0x328] sm:$0xf] %vm3847, %v3537
        %4051 = vst.msk [vmem:[%s194 + $0x32c] sm:$0xf] %vm3847, %v3538
        %4052 = vst.msk [vmem:[%s194 + $0x330] sm:$0xf] %vm3847, %v3539
        %4053 = vst.msk [vmem:[%s194 + $0x334] sm:$0xf] %vm3847, %v3540
        %4054 = vst.msk [vmem:[%s194 + $0x338] sm:$0xf] %vm3847, %v3541
        %4055 = vst.msk [vmem:[%s194 + $0x33c] sm:$0xf] %vm3847, %v3542
        %4056 = vst.msk [vmem:[%s194 + $0x340] sm:$0xf] %vm3847, %v3543
        %4057 = vst.msk [vmem:[%s194 + $0x344] sm:$0xf] %vm3847, %v3544
        %4058 = vst.msk [vmem:[%s194 + $0x348] sm:$0xf] %vm3847, %v3545
        %4059 = vst.msk [vmem:[%s194 + $0x34c] sm:$0xf] %vm3847, %v3546
        %4060 = vst.msk [vmem:[%s194 + $0x350] sm:$0xf] %vm3847, %v3547
        %4061 = vst.msk [vmem:[%s194 + $0x354] sm:$0xf] %vm3847, %v3548
        %4062 = vst.msk [vmem:[%s194 + $0x358] sm:$0xf] %vm3847, %v3549
        %4063 = vst.msk [vmem:[%s194 + $0x35c] sm:$0xf] %vm3847, %v3550
        %4064 = vst.msk [vmem:[%s194 + $0x360] sm:$0xf] %vm3847, %v3551
        %4065 = vst.msk [vmem:[%s194 + $0x364] sm:$0xf] %vm3847, %v3552
        %4066 = vst.msk [vmem:[%s194 + $0x368] sm:$0xf] %vm3847, %v3553
        %4067 = vst.msk [vmem:[%s194 + $0x36c] sm:$0xf] %vm3847, %v3554
        %4068 = vst.msk [vmem:[%s194 + $0x370] sm:$0xf] %vm3847, %v3555
        %4069 = vst.msk [vmem:[%s194 + $0x374] sm:$0xf] %vm3847, %v3556
        %4070 = vst.msk [vmem:[%s194 + $0x378] sm:$0xf] %vm3847, %v3557
        %4071 = vst.msk [vmem:[%s194 + $0x37c] sm:$0xf] %vm3847, %v3558
        %4072 = vst.msk [vmem:[%s194 + $0x380] sm:$0xf] %vm3847, %v3559
        %4073 = vst.msk [vmem:[%s194 + $0x384] sm:$0xf] %vm3847, %v3560
        %4074 = vst.msk [vmem:[%s194 + $0x388] sm:$0xf] %vm3847, %v3561
        %4075 = vst.msk [vmem:[%s194 + $0x38c] sm:$0xf] %vm3847, %v3562
        %4076 = vst.msk [vmem:[%s194 + $0x390] sm:$0xf] %vm3847, %v3563
        %4077 = vst.msk [vmem:[%s194 + $0x394] sm:$0xf] %vm3847, %v3564
        %4078 = vst.msk [vmem:[%s194 + $0x398] sm:$0xf] %vm3847, %v3565
        %4079 = vst.msk [vmem:[%s194 + $0x39c] sm:$0xf] %vm3847, %v3566
        %4080 = vst.msk [vmem:[%s194 + $0x3a0] sm:$0xf] %vm3847, %v3567
        %4081 = vst.msk [vmem:[%s194 + $0x3a4] sm:$0xf] %vm3847, %v3568
        %4082 = vst.msk [vmem:[%s194 + $0x3a8] sm:$0xf] %vm3847, %v3569
        %4083 = vst.msk [vmem:[%s194 + $0x3ac] sm:$0xf] %vm3847, %v3570
        %4084 = vst.msk [vmem:[%s194 + $0x3b0] sm:$0xf] %vm3847, %v3571
        %4085 = vst.msk [vmem:[%s194 + $0x3b4] sm:$0xf] %vm3847, %v3572
        %4086 = vst.msk [vmem:[%s194 + $0x3b8] sm:$0xf] %vm3847, %v3573
        %4087 = vst.msk [vmem:[%s194 + $0x3bc] sm:$0xf] %vm3847, %v3574
        %4088 = vst.msk [vmem:[%s194 + $0x3c0] sm:$0xf] %vm3847, %v3575
        %4089 = vst.msk [vmem:[%s194 + $0x3c4] sm:$0xf] %vm3847, %v3576
        %4090 = vst.msk [vmem:[%s194 + $0x3c8] sm:$0xf] %vm3847, %v3577
        %4091 = vst.msk [vmem:[%s194 + $0x3cc] sm:$0xf] %vm3847, %v3578
        %4092 = vst.msk [vmem:[%s194 + $0x3d0] sm:$0xf] %vm3847, %v3579
        %4093 = vst.msk [vmem:[%s194 + $0x3d4] sm:$0xf] %vm3847, %v3580
        %4094 = vst.msk [vmem:[%s194 + $0x3d8] sm:$0xf] %vm3847, %v3581
        %4095 = vst.msk [vmem:[%s194 + $0x3dc] sm:$0xf] %vm3847, %v3582
        %4096 = vst.msk [vmem:[%s194 + $0x3e0] sm:$0xf] %vm3847, %v3583
        %4097 = vst.msk [vmem:[%s194 + $0x3e4] sm:$0xf] %vm3847, %v3584
        %4098 = vst.msk [vmem:[%s194 + $0x3e8] sm:$0xf] %vm3847, %v3585
        %4099 = vst.msk [vmem:[%s194 + $0x3ec] sm:$0xf] %vm3847, %v3586
        %4100 = vst.msk [vmem:[%s194 + $0x3f0] sm:$0xf] %vm3847, %v3587
        %4101 = vst.msk [vmem:[%s194 + $0x3f4] sm:$0xf] %vm3847, %v3588
        %4102 = vst.msk [vmem:[%s194 + $0x3f8] sm:$0xf] %vm3847, %v3589
        %4103 = vst.msk [vmem:[%s194 + $0x3fc] sm:$0xf] %vm3847, %v3590
        %s4104 = sand.u32 %s96, 1
        %s4105 = scalar_lea.sflag [#allocation4], %s4104
        %s4106 = sand.u32 %s96, 1
        %s4107 = smul.addr %s4106, 1024
        %s4108 = scalar_lea.vmem [#allocation5], %s4107
        // Predicated region
        $region37: #{_conv2d_impl.1} parent=31 // pred_check
          %p4109 = pneg %p106
        $region38: #{_conv2d_impl.1} parent=31 // pred_check_branch
          %4111 = sbr.rel (%p4109) target = $region40
        $region39: #{_conv2d_impl.1} parent=31 // pred_region
          %s4112 = smul.u32 256, %s20
          %s4113 = ssub.s32 22500, %s4112
          %p4114 = scmp.lt.s32.totalorder %s4113, 256
          %s4115 = scalar_select %p4114, %s4113, 256
          %s4116 = smul.u32 64, %s4115
          %s4118 = ssub.s32 16384, %s4116
          %4119 = vsyncadd %s4105, %s4118
          %p4120 = scmp.ne.s32.totalorder 0, %s4116
          %s4121 = smul.addr %s4112, 64
          %s4122 = scalar_lea.hbm %s3, %s4121
          %s4123 = smul.u32 4, %s4115
          %s4124 = sshll.u32 %s4108, 4
          %s4125 = int_to_ptr.vmem [resolvable:$true] %s4124
          %s4126 = sshll.u32 %s4123, 4
          %4130 = dma.vmem_to_hbm [thread:$0]  (%p4120), %s4125, %s4126, %s4122, %s4105, 64, 64, 4
        $region40: #{_conv2d_impl.1} parent=31 // pred_fallthru
          _
      $region32: #{_conv2d_impl.1} parent=5 // pred_fallthru
        _
      %p4131 = scmp.le.s32.totalorder 2, %s15
      // Predicated region
      $region41: #{_conv2d_impl.1} parent=5 // pred_check
        %p4132 = pneg %p4131
      $region42: #{_conv2d_impl.1} parent=5 // pred_check_branch
        %4134 = sbr.rel (%p4132) target = $region44
      $region43: #{_conv2d_impl.1} parent=5 // pred_region
        %s4135 = ssub.s32 %s15, 2
        // Predicated region
        $region45: #{_conv2d_impl.1} parent=43 // pred_check
          %p4136 = pneg %p112
        $region46: #{_conv2d_impl.1} parent=43 // pred_check_branch
          %4138 = sbr.rel (%p4136) target = $region48
        $region47: #{_conv2d_impl.1} parent=43 // pred_region
          %s4139 = sand.u32 %s97, 1
          %s4140 = scalar_lea.sflag [#allocation4], %s4139
          %s4141 = sand.u32 %s97, 1
          %s4142 = smul.addr %s4141, 1024
          %s4143 = scalar_lea.vmem [#allocation5], %s4142
          %4144 = dma.done %s4140, 16384
        $region48: #{_conv2d_impl.1} parent=43 // pred_fallthru
          _
      $region44: #{_conv2d_impl.1} parent=5 // pred_fallthru
        _
    $region6: #{_conv2d_impl.1} parent=1 // loop_footer
      %s19 = sadd.s32 1, %s15
    $region7: #{_conv2d_impl.1} parent=1 // loop_footer_branch
      %14 = sbr.rel target = $region3
    $region8: #{_conv2d_impl.1} parent=1 // loop_exit
      _
    %4145 = vsyncpa [#allocation3], 1
    %s4146 = scalar_lea.sflag [#allocation3], 1
    %4147 = vsyncpa %s4146, 1
    %4148 = vsyncpa [#allocation4], 1
    %s4149 = scalar_lea.sflag [#allocation4], 1
    %4150 = vsyncpa %s4149, 1

</llo_original>
